<compile_context>
chip_gen: v7x
topology: tpu7x:2x2x1
jax: 0.10.0
libtpu: 0.0.40
codegen_flags: <defaults>
</compile_context>

<pallas_src>
import functools

import jax
import jax.numpy as jnp
import numpy as np
from jax import lax
from jax.experimental import pallas as pl
from jax.experimental.pallas import tpu as pltpu


# ------------------------------- fused Pallas kernel --------------------------------------


def _posenet_kernel(x_ref, mask_ref, cw_ref, bias_ref, mlpw_ref, headw_ref, o_ref,
                    buf_a, buf_b, *, B, S, Wp, GL, inv, alpha):
    """Whole PoseNet forward (after the stride-2 avg pool) for the full batch.

    Activation layout: channels on sublanes, flat pixel index r = b*Hp*Wp + y*Wp + x on
    lanes.  Buffers have a GL-lane left guard (one lane tile -> tile-aligned stores) and a
    small right guard so every dy/dx-shifted read stays in bounds; halo pixels are kept at
    literal zero so they act as each conv's zero padding.
    """
    R = B * S

    # Zero the ping/pong buffers once: guard lanes are never written afterwards and must
    # not inject NaNs into the (masked) halo outputs.  ~2 x 12 vregs of aligned stores.
    buf_a[...] = jnp.zeros_like(buf_a)
    buf_b[...] = jnp.zeros_like(buf_b)

    mask = mask_ref[...]                                   # (1, R): 1 on interior pixels

    def leaky(v):
        return jnp.where(v >= 0.0, v, alpha * v)

    def conv_layer(src, layer):
        # 3x3 conv as 3 MXU dots (one per dy), each with K = 3*C: the three dx-shifted
        # views are lane-offset slices of the flat buffer stacked along K, so the MXU
        # accumulates over dx internally instead of popping 9 partial results.
        acc = None
        for dy in range(3):
            start = GL + (dy - 1) * Wp - 1
            rhs = jnp.concatenate(
                [src[:, pl.ds(start + dx, R)] for dx in range(3)], axis=0)   # (3C, R)
            t = jnp.dot(cw_ref[layer, dy], rhs, preferred_element_type=jnp.float32)
            acc = t if acc is None else acc + t
        y = leaky(acc + bias_ref[layer])                   # folded conv-bias + BN shift
        return y * mask                                    # re-zero halo -> next layer's padding

    buf_a[:, pl.ds(GL, R)] = conv_layer(x_ref, 0)          # conv1 reads the input ref directly
    buf_b[:, pl.ds(GL, R)] = conv_layer(buf_a, 1)
    y3 = conv_layer(buf_b, 2)                              # (C, R); feeds pooling from registers

    # AdaptiveAvgPool2d((1,1)): one MXU matmul against an iota-built per-image segment
    # matrix.  Halo pixels are zero, so summing all S pixels per image and scaling by
    # 1/(Ho*Wo) is exact.
    r_idx = lax.broadcasted_iota(jnp.int32, (R, B), 0)
    b_idx = lax.broadcasted_iota(jnp.int32, (R, B), 1)
    seg = jnp.where((r_idx >= b_idx * S) & (r_idx < (b_idx + 1) * S), inv, 0.0)
    g = jnp.dot(y3, seg, preferred_element_type=jnp.float32)          # (C, B)

    # BasicMLP: Linear -> LeakyReLU -> Linear -> LeakyReLU -> Linear, each (out,in) @ (in,B).
    h = leaky(jnp.dot(mlpw_ref[0], g, preferred_element_type=jnp.float32) + bias_ref[3])
    h = leaky(jnp.dot(mlpw_ref[1], h, preferred_element_type=jnp.float32) + bias_ref[4])
    out = jnp.dot(headw_ref[...], h, preferred_element_type=jnp.float32)
    o_ref[...] = out + bias_ref[5, pl.ds(0, o_ref.shape[0])]


# --------------------------- parameter folding / packing ----------------------------------


def _pack_params(params, hid, eps=1e-5):
    """Fold conv bias + eval-mode BN into scale-folded weights + per-channel shifts and pack
    everything into 4 dense arrays (6 kernel inputs total, down from 13)."""
    cw_list, shift_list = [], []
    for (w, b, gamma, beta, mean, var) in params["convs"]:
        cin = w.shape[1]
        scale = gamma / jnp.sqrt(var + eps)
        shift = beta + (b - mean) * scale
        wf = w * scale[:, None, None, None]                          # fold BN scale into weights
        wf = jnp.pad(wf, ((0, 0), (0, hid - cin), (0, 0), (0, 0)))   # pad Cin -> hid (conv1)
        # (cout, cin, kh, kw) -> (kh, cout, kw, cin) -> (3, hid, 3*hid); K index = kw*hid + cin
        wf = jnp.transpose(wf, (2, 0, 3, 1)).reshape(3, hid, 3 * hid)
        cw_list.append(wf)
        shift_list.append(shift[:, None])
    cw = jnp.stack(cw_list)                                          # (3, 3, hid, 3*hid)

    (w1, b1), (w2, b2), (w3, b3) = params["mlp"]                     # torch (out, in) layout
    biases = jnp.stack(shift_list + [b1[:, None], b2[:, None],
                                     jnp.pad(b3, (0, hid - b3.shape[0]))[:, None]])  # (6, hid, 1)
    mlp_w = jnp.stack([w1, w2])                                      # (2, hid, hid)
    return cw, biases, mlp_w, w3                                     # w3: (n_out, hid)


# ----------------------------------- forward wrapper --------------------------------------


def pose_net_forward(x_nchw, params):
    x = x_nchw.astype(jnp.float32)
    B, C0, H, W = x.shape
    hid = params["convs"][0][0].shape[0]
    assert C0 <= hid

    Ho, Wo = (H - 3) // 2 + 1, (W - 3) // 2 + 1            # AvgPool2d(3, stride=2), VALID
    Hp, Wp = Ho + 2, Wo + 2                                # +1 zero-pad ring for the convs
    S, R = Hp * Wp, B * Hp * Wp
    GL, GR = 128, Wp + 1                                   # left guard = 1 lane tile
    assert GL >= Wp + 1
    Wbuf = GL + R + GR

    # TODO(synk): the stride-2 3x3 window gather of AvgPool2d stays as one tiny fused XLA op
    # here; stride-2 pixel gathers have no clean mapping onto the kernel's flat-lane layout.
    p = sum(x[:, :, dy:dy + 2 * Ho - 1:2, dx:dx + 2 * Wo - 1:2]
            for dy in range(3) for dx in range(3)) * (1.0 / 9.0)     # (B, C0, Ho, Wo)
    p = jnp.pad(p, ((0, 0), (0, 0), (1, 1), (1, 1)))                 # (B, C0, Hp, Wp)
    p = jnp.transpose(p, (1, 0, 2, 3)).reshape(C0, R)                # channels x flat pixels
    x_in = jnp.pad(p, ((0, hid - C0), (GL, GR)))                     # (hid, Wbuf), zero guards

    # interior mask (648 B compile-time constant): 1 on valid (y, x), 0 on the halo ring.
    m = np.zeros((B, Hp, Wp), np.float32)
    m[:, 1:-1, 1:-1] = 1.0
    mask = jnp.asarray(m.reshape(1, R))

    cw, biases, mlp_w, head_w = _pack_params(params, hid)
    n_out = head_w.shape[0]

    kernel = functools.partial(_posenet_kernel, B=B, S=S, Wp=Wp, GL=GL,
                               inv=1.0 / float(Ho * Wo), alpha=0.01)
    out = pl.pallas_call(
        kernel,
        out_shape=jax.ShapeDtypeStruct((n_out, B), jnp.float32),
        grid=(1,),
        in_specs=[
            pl.BlockSpec((hid, Wbuf), lambda i: (0, 0)),                 # pooled input
            pl.BlockSpec((1, R), lambda i: (0, 0)),                      # interior mask
            pl.BlockSpec((3, 3, hid, 3 * hid), lambda i: (0, 0, 0, 0)),  # scale-folded conv weights
            pl.BlockSpec((6, hid, 1), lambda i: (0, 0, 0)),              # conv shifts + MLP biases
            pl.BlockSpec((2, hid, hid), lambda i: (0, 0, 0)),            # MLP hidden weights
            pl.BlockSpec((n_out, hid), lambda i: (0, 0)),                # MLP head weight
        ],
        out_specs=pl.BlockSpec((n_out, B), lambda i: (0, 0)),
        scratch_shapes=[pltpu.VMEM((hid, Wbuf), jnp.float32),
                        pltpu.VMEM((hid, Wbuf), jnp.float32)],
        compiler_params=pltpu.CompilerParams(dimension_semantics=("arbitrary",)),
    )(x_in, mask, cw, biases, mlp_w, head_w)
    return out[0], out[1]


# ----------------------------- pure-JAX reference (for verification) ----------------------


def ref_forward(x_nchw, params):
    x = x_nchw.astype(jnp.float32)
    x = lax.reduce_window(x, 0.0, lax.add, (1, 1, 3, 3), (1, 1, 2, 2), "VALID") / 9.0
    for (w, b, gamma, beta, mean, var) in params["convs"]:
        x = lax.conv_general_dilated(x, w, (1, 1), ((1, 1), (1, 1)),
                                     dimension_numbers=("NCHW", "OIHW", "NCHW"))
        x = x + b[None, :, None, None]
        x = (x - mean[None, :, None, None]) / jnp.sqrt(var[None, :, None, None] + 1e-5)
        x = x * gamma[None, :, None, None] + beta[None, :, None, None]
        x = jnp.where(x >= 0, x, 0.01 * x)
    x = x.mean(axis=(2, 3))
    for i, (w, b) in enumerate(params["mlp"]):           # w: (out, in) as in torch.nn.Linear
        x = x @ w.T + b
        if i < 2:
            x = jnp.where(x >= 0, x, 0.01 * x)
    return x[:, 0], x[:, 1]


# ----------------------------- deterministic parameter init -------------------------------


def init_params(key, indim, hid_dim):
    keys = jax.random.split(key, 32)
    ki = 0
    convs = []
    cin = indim
    for _ in range(3):
        w = jax.random.normal(keys[ki], (hid_dim, cin, 3, 3), jnp.float32) * 0.1; ki += 1
        b = jax.random.normal(keys[ki], (hid_dim,), jnp.float32) * 0.1; ki += 1
        gamma = jax.random.uniform(keys[ki], (hid_dim,), jnp.float32, 0.5, 1.5); ki += 1
        beta = jax.random.normal(keys[ki], (hid_dim,), jnp.float32) * 0.1; ki += 1
        mean = jax.random.normal(keys[ki], (hid_dim,), jnp.float32) * 0.1; ki += 1
        var = jax.random.uniform(keys[ki], (hid_dim,), jnp.float32, 0.5, 1.5); ki += 1
        convs.append((w, b, gamma, beta, mean, var))
        cin = hid_dim
    mlp = []
    dims = [(hid_dim, hid_dim), (hid_dim, hid_dim), (2, hid_dim)]    # torch (out, in)
    for (dout, din) in dims:
        w = jax.random.normal(keys[ki], (dout, din), jnp.float32) * 0.1; ki += 1
        b = jax.random.normal(keys[ki], (dout,), jnp.float32) * 0.1; ki += 1
        mlp.append((w, b))
    return {"convs": convs, "mlp": mlp}


# ----------------------------------------- main --------------------------------------------

if __name__ == "__main__":
    B, indim, H, W, hid_dim = 2, 4, 16, 16, 32
    key = jax.random.PRNGKey(0)
    kx, kp = jax.random.split(key)
    x = jax.random.normal(kx, (B, indim, H, W), jnp.float32)
    params = init_params(kp, indim, hid_dim)

    forward = jax.jit(pose_net_forward)
    out0, out1 = forward(x, params)
    jax.block_until_ready((out0, out1))

    r0, r1 = ref_forward(x, params)
    assert out0.shape == (B,) and out1.shape == (B,)
    np.testing.assert_allclose(np.asarray(out0), np.asarray(r0), rtol=1e-4, atol=1e-4)
    np.testing.assert_allclose(np.asarray(out1), np.asarray(r1), rtol=1e-4, atol=1e-4)
    print("KERNEL_OK")
</pallas_src>

<mosaic_0001>
module attributes {stable_mosaic.version = 11 : i64} {
  func.func @_posenet_kernel(%arg0: i32, %arg1: memref<32x300xf32, #tpu.memory_space<vmem>>, %arg2: memref<1x162xf32, #tpu.memory_space<vmem>>, %arg3: memref<3x3x32x96xf32, #tpu.memory_space<vmem>>, %arg4: memref<6x32x1xf32, #tpu.memory_space<vmem>>, %arg5: memref<2x32x32xf32, #tpu.memory_space<vmem>>, %arg6: memref<2x32xf32, #tpu.memory_space<vmem>>, %arg7: memref<2x2xf32, #tpu.memory_space<vmem>>, %arg8: memref<32x300xf32, #tpu.memory_space<vmem>>, %arg9: memref<32x300xf32, #tpu.memory_space<vmem>>) attributes {dimension_semantics = [#tpu.dimension_semantics<arbitrary>], iteration_bounds = array<i64: 1>, scalar_prefetch = 0 : i64, scratch_operands = 2 : i64, tpu.core_type = #tpu.core_type<tc>, window_params = [{pipeline_mode = #tpu.pipeline_mode<synchronous>, transform_indices = @transform_0, window_bounds = array<i64: 32, 300>}, {pipeline_mode = #tpu.pipeline_mode<synchronous>, transform_indices = @transform_1, window_bounds = array<i64: 1, 162>}, {pipeline_mode = #tpu.pipeline_mode<synchronous>, transform_indices = @transform_2, window_bounds = array<i64: 3, 3, 32, 96>}, {pipeline_mode = #tpu.pipeline_mode<synchronous>, transform_indices = @transform_3, window_bounds = array<i64: 6, 32, 1>}, {pipeline_mode = #tpu.pipeline_mode<synchronous>, transform_indices = @transform_4, window_bounds = array<i64: 2, 32, 32>}, {pipeline_mode = #tpu.pipeline_mode<synchronous>, transform_indices = @transform_5, window_bounds = array<i64: 2, 32>}, {pipeline_mode = #tpu.pipeline_mode<synchronous>, transform_indices = @transform_6, window_bounds = array<i64: 2, 2>}]} {
    %cst = arith.constant 0.000000e+00 : f32
    %0 = vector.broadcast %cst : f32 to vector<32x300xf32>
    %c0 = arith.constant 0 : index
    %c0_0 = arith.constant 0 : index
    %1 = vector.load %arg8[%c0, %c0_0] : memref<32x300xf32, #tpu.memory_space<vmem>>, vector<32x300xf32>
    tpu.vector_store %arg8[%c0, %c0_0], %0 {strides = array<i32>} : memref<32x300xf32, #tpu.memory_space<vmem>>, vector<32x300xf32>,
    %cst_1 = arith.constant 0.000000e+00 : f32
    %2 = vector.broadcast %cst_1 : f32 to vector<32x300xf32>
    %c0_2 = arith.constant 0 : index
    %c0_3 = arith.constant 0 : index
    %3 = vector.load %arg9[%c0_2, %c0_3] : memref<32x300xf32, #tpu.memory_space<vmem>>, vector<32x300xf32>
    tpu.vector_store %arg9[%c0_2, %c0_3], %2 {strides = array<i32>} : memref<32x300xf32, #tpu.memory_space<vmem>>, vector<32x300xf32>,
    %c0_4 = arith.constant 0 : index
    %c0_5 = arith.constant 0 : index
    %4 = vector.load %arg2[%c0_4, %c0_5] : memref<1x162xf32, #tpu.memory_space<vmem>>, vector<1x162xf32>
    %c0_6 = arith.constant 0 : index
    %c118 = arith.constant 118 : index
    %5 = vector.load %arg1[%c0_6, %c118] : memref<32x300xf32, #tpu.memory_space<vmem>>, vector<32x162xf32>
    %c0_7 = arith.constant 0 : index
    %c119 = arith.constant 119 : index
    %6 = vector.load %arg1[%c0_7, %c119] : memref<32x300xf32, #tpu.memory_space<vmem>>, vector<32x162xf32>
    %c0_8 = arith.constant 0 : index
    %c120 = arith.constant 120 : index
    %7 = vector.load %arg1[%c0_8, %c120] : memref<32x300xf32, #tpu.memory_space<vmem>>, vector<32x162xf32>
    %8 = tpu.concatenate %5, %6, %7 in 0 : vector<32x162xf32>, vector<32x162xf32>, vector<32x162xf32> -> vector<96x162xf32>
    %c0_9 = arith.constant 0 : index
    %c0_10 = arith.constant 0 : index
    %c0_11 = arith.constant 0 : index
    %c0_12 = arith.constant 0 : index
    %9 = vector.load %arg3[%c0_9, %c0_10, %c0_11, %c0_12] : memref<3x3x32x96xf32, #tpu.memory_space<vmem>>, vector<1x1x32x96xf32>
    %10 = vector.shape_cast %9 : vector<1x1x32x96xf32> to vector<32x96xf32>
    %cst_13 = arith.constant dense<0.000000e+00> : vector<32x162xf32>
    %11 = tpu.matmul %10, %8, %cst_13 {dimension_numbers = #tpu.dot_dimension_numbers<[1], [0], [0], [1], [0, 0, 1, 1], [], []>} : vector<32x96xf32>, vector<96x162xf32>, vector<32x162xf32> -> vector<32x162xf32>
    %c0_14 = arith.constant 0 : index
    %c127 = arith.constant 127 : index
    %12 = vector.load %arg1[%c0_14, %c127] : memref<32x300xf32, #tpu.memory_space<vmem>>, vector<32x162xf32>
    %c0_15 = arith.constant 0 : index
    %c128 = arith.constant 128 : index
    %13 = vector.load %arg1[%c0_15, %c128] : memref<32x300xf32, #tpu.memory_space<vmem>>, vector<32x162xf32>
    %c0_16 = arith.constant 0 : index
    %c129 = arith.constant 129 : index
    %14 = vector.load %arg1[%c0_16, %c129] : memref<32x300xf32, #tpu.memory_space<vmem>>, vector<32x162xf32>
    %15 = tpu.concatenate %12, %13, %14 in 0 : vector<32x162xf32>, vector<32x162xf32>, vector<32x162xf32> -> vector<96x162xf32>
    %c0_17 = arith.constant 0 : index
    %c1 = arith.constant 1 : index
    %c0_18 = arith.constant 0 : index
    %c0_19 = arith.constant 0 : index
    %16 = vector.load %arg3[%c0_17, %c1, %c0_18, %c0_19] : memref<3x3x32x96xf32, #tpu.memory_space<vmem>>, vector<1x1x32x96xf32>
    %17 = vector.shape_cast %16 : vector<1x1x32x96xf32> to vector<32x96xf32>
    %cst_20 = arith.constant dense<0.000000e+00> : vector<32x162xf32>
    %18 = tpu.matmul %17, %15, %cst_20 {dimension_numbers = #tpu.dot_dimension_numbers<[1], [0], [0], [1], [0, 0, 1, 1], [], []>} : vector<32x96xf32>, vector<96x162xf32>, vector<32x162xf32> -> vector<32x162xf32>
    %19 = arith.addf %11, %18 : vector<32x162xf32>
    %c0_21 = arith.constant 0 : index
    %c136 = arith.constant 136 : index
    %20 = vector.load %arg1[%c0_21, %c136] : memref<32x300xf32, #tpu.memory_space<vmem>>, vector<32x162xf32>
    %c0_22 = arith.constant 0 : index
    %c137 = arith.constant 137 : index
    %21 = vector.load %arg1[%c0_22, %c137] : memref<32x300xf32, #tpu.memory_space<vmem>>, vector<32x162xf32>
    %c0_23 = arith.constant 0 : index
    %c138 = arith.constant 138 : index
    %22 = vector.load %arg1[%c0_23, %c138] : memref<32x300xf32, #tpu.memory_space<vmem>>, vector<32x162xf32>
    %23 = tpu.concatenate %20, %21, %22 in 0 : vector<32x162xf32>, vector<32x162xf32>, vector<32x162xf32> -> vector<96x162xf32>
    %c0_24 = arith.constant 0 : index
    %c2 = arith.constant 2 : index
    %c0_25 = arith.constant 0 : index
    %c0_26 = arith.constant 0 : index
    %24 = vector.load %arg3[%c0_24, %c2, %c0_25, %c0_26] : memref<3x3x32x96xf32, #tpu.memory_space<vmem>>, vector<1x1x32x96xf32>
    %25 = vector.shape_cast %24 : vector<1x1x32x96xf32> to vector<32x96xf32>
    %cst_27 = arith.constant dense<0.000000e+00> : vector<32x162xf32>
    %26 = tpu.matmul %25, %23, %cst_27 {dimension_numbers = #tpu.dot_dimension_numbers<[1], [0], [0], [1], [0, 0, 1, 1], [], []>} : vector<32x96xf32>, vector<96x162xf32>, vector<32x162xf32> -> vector<32x162xf32>
    %27 = arith.addf %19, %26 : vector<32x162xf32>
    %c0_28 = arith.constant 0 : index
    %c0_29 = arith.constant 0 : index
    %c0_30 = arith.constant 0 : index
    %28 = vector.load %arg4[%c0_28, %c0_29, %c0_30] : memref<6x32x1xf32, #tpu.memory_space<vmem>>, vector<1x32x1xf32>
    %29 = vector.shape_cast %28 : vector<1x32x1xf32> to vector<32x1xf32>
    %30 = vector.broadcast %29 : vector<32x1xf32> to vector<32x162xf32>
    %31 = arith.addf %27, %30 : vector<32x162xf32>
    %cst_31 = arith.constant 0.000000e+00 : f32
    %32 = vector.broadcast %cst_31 : f32 to vector<32x162xf32>
    %33 = arith.cmpf oge, %31, %32 : vector<32x162xf32>
    %cst_32 = arith.constant 0.00999999977 : f32
    %34 = vector.broadcast %cst_32 : f32 to vector<32x162xf32>
    %35 = arith.mulf %34, %31 : vector<32x162xf32>
    %36 = arith.select %33, %31, %35 : vector<32x162xi1>, vector<32x162xf32>
    %37 = vector.broadcast %4 : vector<1x162xf32> to vector<32x162xf32>
    %38 = arith.mulf %36, %37 : vector<32x162xf32>
    %c0_33 = arith.constant 0 : index
    %c128_34 = arith.constant 128 : index
    %39 = vector.load %arg8[%c0_33, %c128_34] : memref<32x300xf32, #tpu.memory_space<vmem>>, vector<32x162xf32>
    tpu.vector_store %arg8[%c0_33, %c128_34], %38 {strides = array<i32>} : memref<32x300xf32, #tpu.memory_space<vmem>>, vector<32x162xf32>,
    %c0_35 = arith.constant 0 : index
    %c118_36 = arith.constant 118 : index
    %40 = vector.load %arg8[%c0_35, %c118_36] : memref<32x300xf32, #tpu.memory_space<vmem>>, vector<32x162xf32>
    %c0_37 = arith.constant 0 : index
    %c119_38 = arith.constant 119 : index
    %41 = vector.load %arg8[%c0_37, %c119_38] : memref<32x300xf32, #tpu.memory_space<vmem>>, vector<32x162xf32>
    %c0_39 = arith.constant 0 : index
    %c120_40 = arith.constant 120 : index
    %42 = vector.load %arg8[%c0_39, %c120_40] : memref<32x300xf32, #tpu.memory_space<vmem>>, vector<32x162xf32>
    %43 = tpu.concatenate %40, %41, %42 in 0 : vector<32x162xf32>, vector<32x162xf32>, vector<32x162xf32> -> vector<96x162xf32>
    %c1_41 = arith.constant 1 : index
    %c0_42 = arith.constant 0 : index
    %c0_43 = arith.constant 0 : index
    %c0_44 = arith.constant 0 : index
    %44 = vector.load %arg3[%c1_41, %c0_42, %c0_43, %c0_44] : memref<3x3x32x96xf32, #tpu.memory_space<vmem>>, vector<1x1x32x96xf32>
    %45 = vector.shape_cast %44 : vector<1x1x32x96xf32> to vector<32x96xf32>
    %cst_45 = arith.constant dense<0.000000e+00> : vector<32x162xf32>
    %46 = tpu.matmul %45, %43, %cst_45 {dimension_numbers = #tpu.dot_dimension_numbers<[1], [0], [0], [1], [0, 0, 1, 1], [], []>} : vector<32x96xf32>, vector<96x162xf32>, vector<32x162xf32> -> vector<32x162xf32>
    %c0_46 = arith.constant 0 : index
    %c127_47 = arith.constant 127 : index
    %47 = vector.load %arg8[%c0_46, %c127_47] : memref<32x300xf32, #tpu.memory_space<vmem>>, vector<32x162xf32>
    %c0_48 = arith.constant 0 : index
    %c128_49 = arith.constant 128 : index
    %48 = vector.load %arg8[%c0_48, %c128_49] : memref<32x300xf32, #tpu.memory_space<vmem>>, vector<32x162xf32>
    %c0_50 = arith.constant 0 : index
    %c129_51 = arith.constant 129 : index
    %49 = vector.load %arg8[%c0_50, %c129_51] : memref<32x300xf32, #tpu.memory_space<vmem>>, vector<32x162xf32>
    %50 = tpu.concatenate %47, %48, %49 in 0 : vector<32x162xf32>, vector<32x162xf32>, vector<32x162xf32> -> vector<96x162xf32>
    %c1_52 = arith.constant 1 : index
    %c1_53 = arith.constant 1 : index
    %c0_54 = arith.constant 0 : index
    %c0_55 = arith.constant 0 : index
    %51 = vector.load %arg3[%c1_52, %c1_53, %c0_54, %c0_55] : memref<3x3x32x96xf32, #tpu.memory_space<vmem>>, vector<1x1x32x96xf32>
    %52 = vector.shape_cast %51 : vector<1x1x32x96xf32> to vector<32x96xf32>
    %cst_56 = arith.constant dense<0.000000e+00> : vector<32x162xf32>
    %53 = tpu.matmul %52, %50, %cst_56 {dimension_numbers = #tpu.dot_dimension_numbers<[1], [0], [0], [1], [0, 0, 1, 1], [], []>} : vector<32x96xf32>, vector<96x162xf32>, vector<32x162xf32> -> vector<32x162xf32>
    %54 = arith.addf %46, %53 : vector<32x162xf32>
    %c0_57 = arith.constant 0 : index
    %c136_58 = arith.constant 136 : index
    %55 = vector.load %arg8[%c0_57, %c136_58] : memref<32x300xf32, #tpu.memory_space<vmem>>, vector<32x162xf32>
    %c0_59 = arith.constant 0 : index
    %c137_60 = arith.constant 137 : index
    %56 = vector.load %arg8[%c0_59, %c137_60] : memref<32x300xf32, #tpu.memory_space<vmem>>, vector<32x162xf32>
    %c0_61 = arith.constant 0 : index
    %c138_62 = arith.constant 138 : index
    %57 = vector.load %arg8[%c0_61, %c138_62] : memref<32x300xf32, #tpu.memory_space<vmem>>, vector<32x162xf32>
    %58 = tpu.concatenate %55, %56, %57 in 0 : vector<32x162xf32>, vector<32x162xf32>, vector<32x162xf32> -> vector<96x162xf32>
    %c1_63 = arith.constant 1 : index
    %c2_64 = arith.constant 2 : index
    %c0_65 = arith.constant 0 : index
    %c0_66 = arith.constant 0 : index
    %59 = vector.load %arg3[%c1_63, %c2_64, %c0_65, %c0_66] : memref<3x3x32x96xf32, #tpu.memory_space<vmem>>, vector<1x1x32x96xf32>
    %60 = vector.shape_cast %59 : vector<1x1x32x96xf32> to vector<32x96xf32>
    %cst_67 = arith.constant dense<0.000000e+00> : vector<32x162xf32>
    %61 = tpu.matmul %60, %58, %cst_67 {dimension_numbers = #tpu.dot_dimension_numbers<[1], [0], [0], [1], [0, 0, 1, 1], [], []>} : vector<32x96xf32>, vector<96x162xf32>, vector<32x162xf32> -> vector<32x162xf32>
    %62 = arith.addf %54, %61 : vector<32x162xf32>
    %c1_68 = arith.constant 1 : index
    %c0_69 = arith.constant 0 : index
    %c0_70 = arith.constant 0 : index
    %63 = vector.load %arg4[%c1_68, %c0_69, %c0_70] : memref<6x32x1xf32, #tpu.memory_space<vmem>>, vector<1x32x1xf32>
    %64 = vector.shape_cast %63 : vector<1x32x1xf32> to vector<32x1xf32>
    %65 = vector.broadcast %64 : vector<32x1xf32> to vector<32x162xf32>
    %66 = arith.addf %62, %65 : vector<32x162xf32>
    %cst_71 = arith.constant 0.000000e+00 : f32
    %67 = vector.broadcast %cst_71 : f32 to vector<32x162xf32>
    %68 = arith.cmpf oge, %66, %67 : vector<32x162xf32>
    %cst_72 = arith.constant 0.00999999977 : f32
    %69 = vector.broadcast %cst_72 : f32 to vector<32x162xf32>
    %70 = arith.mulf %69, %66 : vector<32x162xf32>
    %71 = arith.select %68, %66, %70 : vector<32x162xi1>, vector<32x162xf32>
    %72 = vector.broadcast %4 : vector<1x162xf32> to vector<32x162xf32>
    %73 = arith.mulf %71, %72 : vector<32x162xf32>
    %c0_73 = arith.constant 0 : index
    %c128_74 = arith.constant 128 : index
    %74 = vector.load %arg9[%c0_73, %c128_74] : memref<32x300xf32, #tpu.memory_space<vmem>>, vector<32x162xf32>
    tpu.vector_store %arg9[%c0_73, %c128_74], %73 {strides = array<i32>} : memref<32x300xf32, #tpu.memory_space<vmem>>, vector<32x162xf32>,
    %c0_75 = arith.constant 0 : index
    %c118_76 = arith.constant 118 : index
    %75 = vector.load %arg9[%c0_75, %c118_76] : memref<32x300xf32, #tpu.memory_space<vmem>>, vector<32x162xf32>
    %c0_77 = arith.constant 0 : index
    %c119_78 = arith.constant 119 : index
    %76 = vector.load %arg9[%c0_77, %c119_78] : memref<32x300xf32, #tpu.memory_space<vmem>>, vector<32x162xf32>
    %c0_79 = arith.constant 0 : index
    %c120_80 = arith.constant 120 : index
    %77 = vector.load %arg9[%c0_79, %c120_80] : memref<32x300xf32, #tpu.memory_space<vmem>>, vector<32x162xf32>
    %78 = tpu.concatenate %75, %76, %77 in 0 : vector<32x162xf32>, vector<32x162xf32>, vector<32x162xf32> -> vector<96x162xf32>
    %c2_81 = arith.constant 2 : index
    %c0_82 = arith.constant 0 : index
    %c0_83 = arith.constant 0 : index
    %c0_84 = arith.constant 0 : index
    %79 = vector.load %arg3[%c2_81, %c0_82, %c0_83, %c0_84] : memref<3x3x32x96xf32, #tpu.memory_space<vmem>>, vector<1x1x32x96xf32>
    %80 = vector.shape_cast %79 : vector<1x1x32x96xf32> to vector<32x96xf32>
    %cst_85 = arith.constant dense<0.000000e+00> : vector<32x162xf32>
    %81 = tpu.matmul %80, %78, %cst_85 {dimension_numbers = #tpu.dot_dimension_numbers<[1], [0], [0], [1], [0, 0, 1, 1], [], []>} : vector<32x96xf32>, vector<96x162xf32>, vector<32x162xf32> -> vector<32x162xf32>
    %c0_86 = arith.constant 0 : index
    %c127_87 = arith.constant 127 : index
    %82 = vector.load %arg9[%c0_86, %c127_87] : memref<32x300xf32, #tpu.memory_space<vmem>>, vector<32x162xf32>
    %c0_88 = arith.constant 0 : index
    %c128_89 = arith.constant 128 : index
    %83 = vector.load %arg9[%c0_88, %c128_89] : memref<32x300xf32, #tpu.memory_space<vmem>>, vector<32x162xf32>
    %c0_90 = arith.constant 0 : index
    %c129_91 = arith.constant 129 : index
    %84 = vector.load %arg9[%c0_90, %c129_91] : memref<32x300xf32, #tpu.memory_space<vmem>>, vector<32x162xf32>
    %85 = tpu.concatenate %82, %83, %84 in 0 : vector<32x162xf32>, vector<32x162xf32>, vector<32x162xf32> -> vector<96x162xf32>
    %c2_92 = arith.constant 2 : index
    %c1_93 = arith.constant 1 : index
    %c0_94 = arith.constant 0 : index
    %c0_95 = arith.constant 0 : index
    %86 = vector.load %arg3[%c2_92, %c1_93, %c0_94, %c0_95] : memref<3x3x32x96xf32, #tpu.memory_space<vmem>>, vector<1x1x32x96xf32>
    %87 = vector.shape_cast %86 : vector<1x1x32x96xf32> to vector<32x96xf32>
    %cst_96 = arith.constant dense<0.000000e+00> : vector<32x162xf32>
    %88 = tpu.matmul %87, %85, %cst_96 {dimension_numbers = #tpu.dot_dimension_numbers<[1], [0], [0], [1], [0, 0, 1, 1], [], []>} : vector<32x96xf32>, vector<96x162xf32>, vector<32x162xf32> -> vector<32x162xf32>
    %89 = arith.addf %81, %88 : vector<32x162xf32>
    %c0_97 = arith.constant 0 : index
    %c136_98 = arith.constant 136 : index
    %90 = vector.load %arg9[%c0_97, %c136_98] : memref<32x300xf32, #tpu.memory_space<vmem>>, vector<32x162xf32>
    %c0_99 = arith.constant 0 : index
    %c137_100 = arith.constant 137 : index
    %91 = vector.load %arg9[%c0_99, %c137_100] : memref<32x300xf32, #tpu.memory_space<vmem>>, vector<32x162xf32>
    %c0_101 = arith.constant 0 : index
    %c138_102 = arith.constant 138 : index
    %92 = vector.load %arg9[%c0_101, %c138_102] : memref<32x300xf32, #tpu.memory_space<vmem>>, vector<32x162xf32>
    %93 = tpu.concatenate %90, %91, %92 in 0 : vector<32x162xf32>, vector<32x162xf32>, vector<32x162xf32> -> vector<96x162xf32>
    %c2_103 = arith.constant 2 : index
    %c2_104 = arith.constant 2 : index
    %c0_105 = arith.constant 0 : index
    %c0_106 = arith.constant 0 : index
    %94 = vector.load %arg3[%c2_103, %c2_104, %c0_105, %c0_106] : memref<3x3x32x96xf32, #tpu.memory_space<vmem>>, vector<1x1x32x96xf32>
    %95 = vector.shape_cast %94 : vector<1x1x32x96xf32> to vector<32x96xf32>
    %cst_107 = arith.constant dense<0.000000e+00> : vector<32x162xf32>
    %96 = tpu.matmul %95, %93, %cst_107 {dimension_numbers = #tpu.dot_dimension_numbers<[1], [0], [0], [1], [0, 0, 1, 1], [], []>} : vector<32x96xf32>, vector<96x162xf32>, vector<32x162xf32> -> vector<32x162xf32>
    %97 = arith.addf %89, %96 : vector<32x162xf32>
    %c2_108 = arith.constant 2 : index
    %c0_109 = arith.constant 0 : index
    %c0_110 = arith.constant 0 : index
    %98 = vector.load %arg4[%c2_108, %c0_109, %c0_110] : memref<6x32x1xf32, #tpu.memory_space<vmem>>, vector<1x32x1xf32>
    %99 = vector.shape_cast %98 : vector<1x32x1xf32> to vector<32x1xf32>
    %100 = vector.broadcast %99 : vector<32x1xf32> to vector<32x162xf32>
    %101 = arith.addf %97, %100 : vector<32x162xf32>
    %cst_111 = arith.constant 0.000000e+00 : f32
    %102 = vector.broadcast %cst_111 : f32 to vector<32x162xf32>
    %103 = arith.cmpf oge, %101, %102 : vector<32x162xf32>
    %cst_112 = arith.constant 0.00999999977 : f32
    %104 = vector.broadcast %cst_112 : f32 to vector<32x162xf32>
    %105 = arith.mulf %104, %101 : vector<32x162xf32>
    %106 = arith.select %103, %101, %105 : vector<32x162xi1>, vector<32x162xf32>
    %107 = vector.broadcast %4 : vector<1x162xf32> to vector<32x162xf32>
    %108 = arith.mulf %106, %107 : vector<32x162xf32>
    %109 = tpu.iota {dimensions = array<i32: 0>} : vector<162x2xi32>
    %110 = tpu.iota {dimensions = array<i32: 1>} : vector<162x2xi32>
    %c81_i32 = arith.constant 81 : i32
    %111 = vector.broadcast %c81_i32 : i32 to vector<162x2xi32>
    %112 = arith.muli %110, %111 : vector<162x2xi32>
    %113 = arith.cmpi sge, %109, %112 : vector<162x2xi32>
    %c1_i32 = arith.constant 1 : i32
    %114 = vector.broadcast %c1_i32 : i32 to vector<162x2xi32>
    %115 = arith.addi %110, %114 : vector<162x2xi32>
    %c81_i32_113 = arith.constant 81 : i32
    %116 = vector.broadcast %c81_i32_113 : i32 to vector<162x2xi32>
    %117 = arith.muli %115, %116 : vector<162x2xi32>
    %118 = arith.cmpi slt, %109, %117 : vector<162x2xi32>
    %119 = arith.andi %113, %118 : vector<162x2xi1>
    %cst_114 = arith.constant 0.0204081628 : f32
    %cst_115 = arith.constant 0.000000e+00 : f32
    %120 = vector.broadcast %cst_114 : f32 to vector<162x2xf32>
    %121 = vector.broadcast %cst_115 : f32 to vector<162x2xf32>
    %122 = arith.select %119, %120, %121 : vector<162x2xi1>, vector<162x2xf32>
    %cst_116 = arith.constant dense<0.000000e+00> : vector<32x2xf32>
    %123 = tpu.matmul %108, %122, %cst_116 {dimension_numbers = #tpu.dot_dimension_numbers<[1], [0], [0], [1], [0, 0, 1, 1], [], []>} : vector<32x162xf32>, vector<162x2xf32>, vector<32x2xf32> -> vector<32x2xf32>
    %c0_117 = arith.constant 0 : index
    %c0_118 = arith.constant 0 : index
    %c0_119 = arith.constant 0 : index
    %124 = vector.load %arg5[%c0_117, %c0_118, %c0_119] : memref<2x32x32xf32, #tpu.memory_space<vmem>>, vector<1x32x32xf32>
    %125 = vector.shape_cast %124 : vector<1x32x32xf32> to vector<32x32xf32>
    %cst_120 = arith.constant dense<0.000000e+00> : vector<32x2xf32>
    %126 = tpu.matmul %125, %123, %cst_120 {dimension_numbers = #tpu.dot_dimension_numbers<[1], [0], [0], [1], [0, 0, 1, 1], [], []>} : vector<32x32xf32>, vector<32x2xf32>, vector<32x2xf32> -> vector<32x2xf32>
    %c3 = arith.constant 3 : index
    %c0_121 = arith.constant 0 : index
    %c0_122 = arith.constant 0 : index
    %127 = vector.load %arg4[%c3, %c0_121, %c0_122] : memref<6x32x1xf32, #tpu.memory_space<vmem>>, vector<1x32x1xf32>
    %128 = vector.shape_cast %127 : vector<1x32x1xf32> to vector<32x1xf32>
    %129 = vector.broadcast %128 : vector<32x1xf32> to vector<32x2xf32>
    %130 = arith.addf %126, %129 : vector<32x2xf32>
    %cst_123 = arith.constant 0.000000e+00 : f32
    %131 = vector.broadcast %cst_123 : f32 to vector<32x2xf32>
    %132 = arith.cmpf oge, %130, %131 : vector<32x2xf32>
    %cst_124 = arith.constant 0.00999999977 : f32
    %133 = vector.broadcast %cst_124 : f32 to vector<32x2xf32>
    %134 = arith.mulf %133, %130 : vector<32x2xf32>
    %135 = arith.select %132, %130, %134 : vector<32x2xi1>, vector<32x2xf32>
    %c1_125 = arith.constant 1 : index
    %c0_126 = arith.constant 0 : index
    %c0_127 = arith.constant 0 : index
    %136 = vector.load %arg5[%c1_125, %c0_126, %c0_127] : memref<2x32x32xf32, #tpu.memory_space<vmem>>, vector<1x32x32xf32>
    %137 = vector.shape_cast %136 : vector<1x32x32xf32> to vector<32x32xf32>
    %cst_128 = arith.constant dense<0.000000e+00> : vector<32x2xf32>
    %138 = tpu.matmul %137, %135, %cst_128 {dimension_numbers = #tpu.dot_dimension_numbers<[1], [0], [0], [1], [0, 0, 1, 1], [], []>} : vector<32x32xf32>, vector<32x2xf32>, vector<32x2xf32> -> vector<32x2xf32>
    %c4 = arith.constant 4 : index
    %c0_129 = arith.constant 0 : index
    %c0_130 = arith.constant 0 : index
    %139 = vector.load %arg4[%c4, %c0_129, %c0_130] : memref<6x32x1xf32, #tpu.memory_space<vmem>>, vector<1x32x1xf32>
    %140 = vector.shape_cast %139 : vector<1x32x1xf32> to vector<32x1xf32>
    %141 = vector.broadcast %140 : vector<32x1xf32> to vector<32x2xf32>
    %142 = arith.addf %138, %141 : vector<32x2xf32>
    %cst_131 = arith.constant 0.000000e+00 : f32
    %143 = vector.broadcast %cst_131 : f32 to vector<32x2xf32>
    %144 = arith.cmpf oge, %142, %143 : vector<32x2xf32>
    %cst_132 = arith.constant 0.00999999977 : f32
    %145 = vector.broadcast %cst_132 : f32 to vector<32x2xf32>
    %146 = arith.mulf %145, %142 : vector<32x2xf32>
    %147 = arith.select %144, %142, %146 : vector<32x2xi1>, vector<32x2xf32>
    %c0_133 = arith.constant 0 : index
    %c0_134 = arith.constant 0 : index
    %148 = vector.load %arg6[%c0_133, %c0_134] : memref<2x32xf32, #tpu.memory_space<vmem>>, vector<2x32xf32>
    %cst_135 = arith.constant dense<0.000000e+00> : vector<2x2xf32>
    %149 = tpu.matmul %148, %147, %cst_135 {dimension_numbers = #tpu.dot_dimension_numbers<[1], [0], [0], [1], [0, 0, 1, 1], [], []>} : vector<2x32xf32>, vector<32x2xf32>, vector<2x2xf32> -> vector<2x2xf32>
    %c5 = arith.constant 5 : index
    %c0_136 = arith.constant 0 : index
    %c0_137 = arith.constant 0 : index
    %150 = vector.load %arg4[%c5, %c0_136, %c0_137] : memref<6x32x1xf32, #tpu.memory_space<vmem>>, vector<1x2x1xf32>
    %151 = vector.shape_cast %150 : vector<1x2x1xf32> to vector<2x1xf32>
    %152 = vector.broadcast %151 : vector<2x1xf32> to vector<2x2xf32>
    %153 = arith.addf %149, %152 : vector<2x2xf32>
    %c0_138 = arith.constant 0 : index
    %c0_139 = arith.constant 0 : index
    %154 = vector.load %arg7[%c0_138, %c0_139] : memref<2x2xf32, #tpu.memory_space<vmem>>, vector<2x2xf32>
    tpu.vector_store %arg7[%c0_138, %c0_139], %153 {strides = array<i32>} : memref<2x2xf32, #tpu.memory_space<vmem>>, vector<2x2xf32>,
    return
  }
  func.func @transform_0(%arg0: i32) -> (i32, i32) {
    %c0_i32 = arith.constant 0 : i32
    %c0_i32_0 = arith.constant 0 : i32
    %c0_i32_1 = arith.constant 0 : i32
    return %c0_i32, %c0_i32_0 : i32, i32
  }
  func.func @transform_1(%arg0: i32) -> (i32, i32) {
    %c0_i32 = arith.constant 0 : i32
    %c0_i32_0 = arith.constant 0 : i32
    %c0_i32_1 = arith.constant 0 : i32
    return %c0_i32, %c0_i32_0 : i32, i32
  }
  func.func @transform_2(%arg0: i32) -> (i32, i32, i32, i32) {
    %c0_i32 = arith.constant 0 : i32
    %c0_i32_0 = arith.constant 0 : i32
    %c0_i32_1 = arith.constant 0 : i32
    %c0_i32_2 = arith.constant 0 : i32
    %c0_i32_3 = arith.constant 0 : i32
    return %c0_i32, %c0_i32_0, %c0_i32_1, %c0_i32_2 : i32, i32, i32, i32
  }
  func.func @transform_3(%arg0: i32) -> (i32, i32, i32) {
    %c0_i32 = arith.constant 0 : i32
    %c0_i32_0 = arith.constant 0 : i32
    %c0_i32_1 = arith.constant 0 : i32
    %c0_i32_2 = arith.constant 0 : i32
    return %c0_i32, %c0_i32_0, %c0_i32_1 : i32, i32, i32
  }
  func.func @transform_4(%arg0: i32) -> (i32, i32, i32) {
    %c0_i32 = arith.constant 0 : i32
    %c0_i32_0 = arith.constant 0 : i32
    %c0_i32_1 = arith.constant 0 : i32
    %c0_i32_2 = arith.constant 0 : i32
    return %c0_i32, %c0_i32_0, %c0_i32_1 : i32, i32, i32
  }
  func.func @transform_5(%arg0: i32) -> (i32, i32) {
    %c0_i32 = arith.constant 0 : i32
    %c0_i32_0 = arith.constant 0 : i32
    %c0_i32_1 = arith.constant 0 : i32
    return %c0_i32, %c0_i32_0 : i32, i32
  }
  func.func @transform_6(%arg0: i32) -> (i32, i32) {
    %c0_i32 = arith.constant 0 : i32
    %c0_i32_0 = arith.constant 0 : i32
    %c0_i32_1 = arith.constant 0 : i32
    return %c0_i32, %c0_i32_0 : i32, i32
  }
}

</mosaic_0001>

<llo_original>
// kernel: pose_net_forward.1
$region0: #{pose_net_forward.1}
  #allocation0 [shape = 'u32[]', space=smem, size = 0x4, offset = 0x4, fixed_abs, tag = 'smem constant byte address 0x4 - core index']
  #allocation1 [shape = 'u32[144,128]{1,0:T(1,128)}', space=vmem, size = 0x12000, scoped, tag = 'internal scratch']
  #allocation2 [shape = 'f32[32,300]{1,0:T(8,128)}', space=vmem, size = 0xc000, scoped, tag = 'scratch operand']
  #allocation3 [shape = 'f32[32,300]{1,0:T(8,128)}', space=vmem, size = 0xc000, scoped, tag = 'scratch operand']
  %s0 = inlined_call_operand.vmem [shape: f32[32,300], index: 0, kind: input, shape index: {}]
  %s1 = inlined_call_operand.vmem [shape: f32[1,162], index: 1, kind: input, shape index: {}]
  %s2 = inlined_call_operand.vmem [shape: f32[3,3,32,96], index: 2, kind: input, shape index: {}]
  %s3 = inlined_call_operand.vmem [shape: f32[6,32,1], index: 3, kind: input, shape index: {}]
  %s4 = inlined_call_operand.vmem [shape: f32[2,32,32], index: 4, kind: input, shape index: {}]
  %s5 = inlined_call_operand.vmem [shape: f32[2,32], index: 5, kind: input, shape index: {}]
  %s6 = inlined_call_operand.vmem [shape: f32[2,2], index: 6, kind: output, shape index: {}]
  %s7 = sld [smem:[#allocation0]]
  $region34: #{pose_net_forward.1} parent=0
    _
  %s9 = ssub.s32 1, %s7
  %s10 = scalar_select 0, %s9, %s7
  // Predicated region
  $region2: #{pose_net_forward.1} parent=0 // pred_check
    _
  $region3: #{pose_net_forward.1} parent=0 // pred_check_branch
    %12 = sbr.rel (0) target = $region5
  $region4: #{pose_net_forward.1} parent=0 // pred_region
    _
  $region5: #{pose_net_forward.1} parent=0 // pred_fallthru
    _
  // Predicated region
  $region6: #{pose_net_forward.1} parent=0 // pred_check
    _
  $region7: #{pose_net_forward.1} parent=0 // pred_check_branch
    %14 = sbr.rel (0) target = $region9
  $region8: #{pose_net_forward.1} parent=0 // pred_region
    _
  $region9: #{pose_net_forward.1} parent=0 // pred_fallthru
    _
  // Predicated region
  $region10: #{pose_net_forward.1} parent=0 // pred_check
    _
  $region11: #{pose_net_forward.1} parent=0 // pred_check_branch
    %16 = sbr.rel (0) target = $region13
  $region12: #{pose_net_forward.1} parent=0 // pred_region
    _
  $region13: #{pose_net_forward.1} parent=0 // pred_fallthru
    _
  // Predicated region
  $region14: #{pose_net_forward.1} parent=0 // pred_check
    _
  $region15: #{pose_net_forward.1} parent=0 // pred_check_branch
    %18 = sbr.rel (0) target = $region17
  $region16: #{pose_net_forward.1} parent=0 // pred_region
    _
  $region17: #{pose_net_forward.1} parent=0 // pred_fallthru
    _
  // Predicated region
  $region18: #{pose_net_forward.1} parent=0 // pred_check
    _
  $region19: #{pose_net_forward.1} parent=0 // pred_check_branch
    %20 = sbr.rel (0) target = $region21
  $region20: #{pose_net_forward.1} parent=0 // pred_region
    _
  $region21: #{pose_net_forward.1} parent=0 // pred_fallthru
    _
  // Predicated region
  $region22: #{pose_net_forward.1} parent=0 // pred_check
    _
  $region23: #{pose_net_forward.1} parent=0 // pred_check_branch
    %22 = sbr.rel (0) target = $region25
  $region24: #{pose_net_forward.1} parent=0 // pred_region
    _
  $region25: #{pose_net_forward.1} parent=0 // pred_fallthru
    _
  %23 = vst [vmem:[#allocation2] sm:$0xff] 0.0
  %24 = vst [vmem:[#allocation2 + $0x8] sm:$0xff] 0.0
  %vm25 = vcmask 359424
  %26 = vst.msk [vmem:[#allocation2 + $0x10] sm:$0xff] %vm25, 0.0
  %27 = vst [vmem:[#allocation2 + $0x18] sm:$0xff] 0.0
  %28 = vst [vmem:[#allocation2 + $0x20] sm:$0xff] 0.0
  %29 = vst.msk [vmem:[#allocation2 + $0x28] sm:$0xff] %vm25, 0.0
  %30 = vst [vmem:[#allocation2 + $0x30] sm:$0xff] 0.0
  %31 = vst [vmem:[#allocation2 + $0x38] sm:$0xff] 0.0
  %32 = vst.msk [vmem:[#allocation2 + $0x40] sm:$0xff] %vm25, 0.0
  %33 = vst [vmem:[#allocation2 + $0x48] sm:$0xff] 0.0
  %34 = vst [vmem:[#allocation2 + $0x50] sm:$0xff] 0.0
  %35 = vst.msk [vmem:[#allocation2 + $0x58] sm:$0xff] %vm25, 0.0
  %36 = vst [vmem:[#allocation3] sm:$0xff] 0.0
  %37 = vst [vmem:[#allocation3 + $0x8] sm:$0xff] 0.0
  %38 = vst.msk [vmem:[#allocation3 + $0x10] sm:$0xff] %vm25, 0.0
  %39 = vst [vmem:[#allocation3 + $0x18] sm:$0xff] 0.0
  %40 = vst [vmem:[#allocation3 + $0x20] sm:$0xff] 0.0
  %41 = vst.msk [vmem:[#allocation3 + $0x28] sm:$0xff] %vm25, 0.0
  %42 = vst [vmem:[#allocation3 + $0x30] sm:$0xff] 0.0
  %43 = vst [vmem:[#allocation3 + $0x38] sm:$0xff] 0.0
  %44 = vst.msk [vmem:[#allocation3 + $0x40] sm:$0xff] %vm25, 0.0
  %45 = vst [vmem:[#allocation3 + $0x48] sm:$0xff] 0.0
  %46 = vst [vmem:[#allocation3 + $0x50] sm:$0xff] 0.0
  %47 = vst.msk [vmem:[#allocation3 + $0x58] sm:$0xff] %vm25, 0.0
  %v48 = vld [vmem:[%s1] sm:$0x3]
  %v49 = vld [vmem:[%s0] sm:$0xff]
  %v50 = vld [vmem:[%s0 + $0x8] sm:$0xff]
  %v51 = vld [vmem:[%s0 + $0x10] sm:$0xff]
  %v52 = vld [vmem:[%s0 + $0x18] sm:$0xff]
  %v53 = vld [vmem:[%s0 + $0x20] sm:$0xff]
  %v54 = vld [vmem:[%s0 + $0x28] sm:$0xff]
  %v55 = vld [vmem:[%s0 + $0x30] sm:$0xff]
  %v56 = vld [vmem:[%s0 + $0x38] sm:$0xff]
  %v57 = vld [vmem:[%s0 + $0x40] sm:$0xff]
  %v58 = vld [vmem:[%s0 + $0x48] sm:$0xff]
  %v59 = vld [vmem:[%s0 + $0x50] sm:$0xff]
  %v60 = vld [vmem:[%s0 + $0x58] sm:$0xff]
  %73 = vrot.lane.b32.xlu0 %v49, 127
  %v74 = vpop.permute.xlu0 %73
  %75 = vrot.lane.b32.xlu0 %v50, 127
  %v76 = vpop.permute.xlu0 %75
  %77 = vrot.lane.b32.xlu0 %v51, 127
  %v78 = vpop.permute.xlu0 %77
  %79 = vrot.lane.b32.xlu0 %v52, 127
  %v80 = vpop.permute.xlu0 %79
  %81 = vrot.lane.b32.xlu0 %v53, 127
  %v82 = vpop.permute.xlu0 %81
  %83 = vrot.lane.b32.xlu0 %v54, 127
  %v84 = vpop.permute.xlu0 %83
  %85 = vrot.lane.b32.xlu0 %v55, 127
  %v86 = vpop.permute.xlu0 %85
  %87 = vrot.lane.b32.xlu0 %v56, 127
  %v88 = vpop.permute.xlu0 %87
  %89 = vrot.lane.b32.xlu0 %v57, 127
  %v90 = vpop.permute.xlu0 %89
  %91 = vrot.lane.b32.xlu0 %v58, 127
  %v92 = vpop.permute.xlu0 %91
  %93 = vrot.lane.b32.xlu0 %v59, 127
  %v94 = vpop.permute.xlu0 %93
  %95 = vrot.lane.b32.xlu0 %v60, 127
  %v96 = vpop.permute.xlu0 %95
  %vm97 = vcmask 1039360
  %v98 = vsel %vm97, %v74, %v76
  %v99 = vsel %vm97, %v76, %v78
  %v100 = vsel %vm97, %v80, %v82
  %v101 = vsel %vm97, %v82, %v84
  %v102 = vsel %vm97, %v86, %v88
  %v103 = vsel %vm97, %v88, %v90
  %v104 = vsel %vm97, %v92, %v94
  %v105 = vsel %vm97, %v94, %v96
  %106 = vrot.lane.b32.xlu0 %v49, 126
  %v107 = vpop.permute.xlu0 %106
  %108 = vrot.lane.b32.xlu0 %v50, 126
  %v109 = vpop.permute.xlu0 %108
  %110 = vrot.lane.b32.xlu0 %v51, 126
  %v111 = vpop.permute.xlu0 %110
  %112 = vrot.lane.b32.xlu0 %v52, 126
  %v113 = vpop.permute.xlu0 %112
  %114 = vrot.lane.b32.xlu0 %v53, 126
  %v115 = vpop.permute.xlu0 %114
  %116 = vrot.lane.b32.xlu0 %v54, 126
  %v117 = vpop.permute.xlu0 %116
  %118 = vrot.lane.b32.xlu0 %v55, 126
  %v119 = vpop.permute.xlu0 %118
  %120 = vrot.lane.b32.xlu0 %v56, 126
  %v121 = vpop.permute.xlu0 %120
  %122 = vrot.lane.b32.xlu0 %v57, 126
  %v123 = vpop.permute.xlu0 %122
  %124 = vrot.lane.b32.xlu0 %v58, 126
  %v125 = vpop.permute.xlu0 %124
  %126 = vrot.lane.b32.xlu0 %v59, 126
  %v127 = vpop.permute.xlu0 %126
  %128 = vrot.lane.b32.xlu0 %v60, 126
  %v129 = vpop.permute.xlu0 %128
  %vm130 = vcmask 1031168
  %v131 = vsel %vm130, %v107, %v109
  %v132 = vsel %vm130, %v109, %v111
  %v133 = vsel %vm130, %v113, %v115
  %v134 = vsel %vm130, %v115, %v117
  %v135 = vsel %vm130, %v119, %v121
  %v136 = vsel %vm130, %v121, %v123
  %v137 = vsel %vm130, %v125, %v127
  %v138 = vsel %vm130, %v127, %v129
  %v139 = vld [vmem:[%s2] sm:$0xff]
  %v140 = vld [vmem:[%s2 + $0x8] sm:$0xff]
  %v141 = vld [vmem:[%s2 + $0x10] sm:$0xff]
  %v142 = vld [vmem:[%s2 + $0x18] sm:$0xff]
  %s143 = scalar_lea.vmem %s2, 32
  %v144 = vld [vmem:[%s143] sm:$0xff]
  %v145 = vld [vmem:[%s143 + $0x8] sm:$0xff]
  %v146 = vld [vmem:[%s143 + $0x10] sm:$0xff]
  %v147 = vld [vmem:[%s143 + $0x18] sm:$0xff]
  %148 = vrot.lane.b32.xlu0 %v49, 1
  %v149 = vpop.permute.xlu0 %148
  %150 = vrot.lane.b32.xlu0 %v50, 1
  %v151 = vpop.permute.xlu0 %150
  %152 = vrot.lane.b32.xlu0 %v51, 1
  %v153 = vpop.permute.xlu0 %152
  %154 = vrot.lane.b32.xlu0 %v52, 1
  %v155 = vpop.permute.xlu0 %154
  %156 = vrot.lane.b32.xlu0 %v53, 1
  %v157 = vpop.permute.xlu0 %156
  %158 = vrot.lane.b32.xlu0 %v54, 1
  %v159 = vpop.permute.xlu0 %158
  %160 = vrot.lane.b32.xlu0 %v55, 1
  %v161 = vpop.permute.xlu0 %160
  %162 = vrot.lane.b32.xlu0 %v56, 1
  %v163 = vpop.permute.xlu0 %162
  %164 = vrot.lane.b32.xlu0 %v57, 1
  %v165 = vpop.permute.xlu0 %164
  %166 = vrot.lane.b32.xlu0 %v58, 1
  %v167 = vpop.permute.xlu0 %166
  %168 = vrot.lane.b32.xlu0 %v59, 1
  %v169 = vpop.permute.xlu0 %168
  %170 = vrot.lane.b32.xlu0 %v60, 1
  %v171 = vpop.permute.xlu0 %170
  %172 = vrot.lane.b32.xlu0 %v76, 1
  %v173 = vpop.permute.xlu0 %172
  %174 = vrot.lane.b32.xlu0 %v99, 1
  %v175 = vpop.permute.xlu0 %174
  %176 = vrot.lane.b32.xlu0 %v78, 1
  %v177 = vpop.permute.xlu0 %176
  %178 = vrot.lane.b32.xlu0 %v82, 1
  %v179 = vpop.permute.xlu0 %178
  %180 = vrot.lane.b32.xlu0 %v101, 1
  %v181 = vpop.permute.xlu0 %180
  %182 = vrot.lane.b32.xlu0 %v84, 1
  %v183 = vpop.permute.xlu0 %182
  %184 = vrot.lane.b32.xlu0 %v88, 1
  %v185 = vpop.permute.xlu0 %184
  %186 = vrot.lane.b32.xlu0 %v103, 1
  %v187 = vpop.permute.xlu0 %186
  %188 = vrot.lane.b32.xlu0 %v90, 1
  %v189 = vpop.permute.xlu0 %188
  %190 = vrot.lane.b32.xlu0 %v94, 1
  %v191 = vpop.permute.xlu0 %190
  %192 = vrot.lane.b32.xlu0 %v105, 1
  %v193 = vpop.permute.xlu0 %192
  %194 = vrot.lane.b32.xlu0 %v96, 1
  %v195 = vpop.permute.xlu0 %194
  %196 = vrot.lane.b32.xlu0 %v109, 1
  %v197 = vpop.permute.xlu0 %196
  %198 = vrot.lane.b32.xlu0 %v132, 1
  %v199 = vpop.permute.xlu0 %198
  %200 = vrot.lane.b32.xlu0 %v111, 1
  %v201 = vpop.permute.xlu0 %200
  %202 = vrot.lane.b32.xlu0 %v115, 1
  %v203 = vpop.permute.xlu0 %202
  %204 = vrot.lane.b32.xlu0 %v134, 1
  %v205 = vpop.permute.xlu0 %204
  %206 = vrot.lane.b32.xlu0 %v117, 1
  %v207 = vpop.permute.xlu0 %206
  %208 = vrot.lane.b32.xlu0 %v121, 1
  %v209 = vpop.permute.xlu0 %208
  %210 = vrot.lane.b32.xlu0 %v136, 1
  %v211 = vpop.permute.xlu0 %210
  %212 = vrot.lane.b32.xlu0 %v123, 1
  %v213 = vpop.permute.xlu0 %212
  %214 = vrot.lane.b32.xlu0 %v127, 1
  %v215 = vpop.permute.xlu0 %214
  %216 = vrot.lane.b32.xlu0 %v138, 1
  %v217 = vpop.permute.xlu0 %216
  %218 = vrot.lane.b32.xlu0 %v129, 1
  %v219 = vpop.permute.xlu0 %218
  %vm220 = vcmask 7168
  %v221 = vsel %vm220, %v149, %v151
  %v222 = vsel %vm220, %v151, %v153
  %v223 = vsel %vm220, %v155, %v157
  %v224 = vsel %vm220, %v157, %v159
  %v225 = vsel %vm220, %v161, %v163
  %v226 = vsel %vm220, %v163, %v165
  %v227 = vsel %vm220, %v167, %v169
  %v228 = vsel %vm220, %v169, %v171
  %v229 = vsel %vm220, %v173, %v175
  %v230 = vsel %vm220, %v175, %v177
  %v231 = vsel %vm220, %v179, %v181
  %v232 = vsel %vm220, %v181, %v183
  %v233 = vsel %vm220, %v185, %v187
  %v234 = vsel %vm220, %v187, %v189
  %v235 = vsel %vm220, %v191, %v193
  %v236 = vsel %vm220, %v193, %v195
  %v237 = vsel %vm220, %v197, %v199
  %v238 = vsel %vm220, %v199, %v201
  %v239 = vsel %vm220, %v203, %v205
  %v240 = vsel %vm220, %v205, %v207
  %v241 = vsel %vm220, %v209, %v211
  %v242 = vsel %vm220, %v211, %v213
  %v243 = vsel %vm220, %v215, %v217
  %v244 = vsel %vm220, %v217, %v219
  %vm269 = vcmask 785408
  %v271 = vsel %vm269, %v144, 0
  %v274 = vsel %vm269, %v145, 0
  %v277 = vsel %vm269, %v146, 0
  %v280 = vsel %vm269, %v147, 0
  %282 = vmatprep.subr.mxu0 %v222
  %283 = vmatpush1.msra.mxu0 %v221
  %284 = vmatprep.subr.mxu0 %v224
  %285 = vmatpush1.msra.mxu0 %v223
  %286 = vmatprep.subr.mxu0 %v226
  %287 = vmatpush1.msra.mxu0 %v225
  %288 = vmatprep.subr.mxu0 %v228
  %289 = vmatpush1.msra.mxu0 %v227
  %290 = vmatprep.subr.mxu0 %v230
  %291 = vmatpush1.msra.mxu0 %v229
  %292 = vmatprep.subr.mxu0 %v232
  %293 = vmatpush1.msra.mxu0 %v231
  %294 = vmatprep.subr.mxu0 %v234
  %295 = vmatpush1.msra.mxu0 %v233
  %296 = vmatprep.subr.mxu0 %v236
  %297 = vmatpush1.msra.mxu0 %v235
  %298 = vmatprep.subr.mxu0 %v238
  %299 = vmatpush1.msra.mxu0 %v237
  %300 = vmatprep.subr.mxu0 %v240
  %301 = vmatpush1.msra.mxu0 %v239
  %302 = vmatprep.subr.mxu0 %v242
  %303 = vmatpush1.msra.mxu0 %v241
  %304 = vmatprep.subr.mxu0 %v244
  %305 = vmatpush1.msra.mxu0 %v243
  %306 = vmatprep.subr.mxu0 0.0
  %307 = vmatpush1.msra.mxu0 0.0
  %308 = vmatprep.subr.mxu0 0.0
  %309 = vmatpush1.msra.mxu0 0.0
  %310 = vmatprep.subr.mxu0 0.0
  %311 = vmatpush1.msra.mxu0 0.0
  %312 = vmatprep.subr.mxu0 0.0
  %313 = vmatpush1.msra.mxu0 0.0
  %314 = vmatprep.subr.mxu0 0.0
  %315 = vmatpush1.msra.mxu0 0.0
  %316 = vmatprep.subr.mxu0 0.0
  %317 = vmatpush1.msra.mxu0 0.0
  %318 = vmatprep.subr.mxu0 0.0
  %319 = vmatpush1.msra.mxu0 0.0
  %320 = vmatprep.subr.mxu0 0.0
  %321 = vmatpush1.msra.mxu0 0.0
  %322 = vmatprep.subr.mxu0 0.0
  %323 = vmatpush1.msra.mxu0 0.0
  %324 = vmatprep.subr.mxu0 0.0
  %325 = vmatpush1.msra.mxu0 0.0
  %326 = vmatprep.subr.mxu0 0.0
  %327 = vmatpush1.msra.mxu0 0.0
  %328 = vmatprep.subr.mxu0 0.0
  %329 = vmatpush1.msra.mxu0 0.0
  %330 = vmatprep.subr.mxu0 0.0
  %331 = vmatpush1.msra.mxu0 0.0
  %332 = vmatprep.subr.mxu0 0.0
  %333 = vmatpush1.msra.mxu0 0.0
  %334 = vmatprep.subr.mxu0 0.0
  %335 = vmatpush1.msra.mxu0 0.0
  %336 = vmatprep.subr.mxu0 0.0
  %337 = vmatpush1.msra.mxu0 0.0
  %338 = vmatprep.subr.mxu0 0.0
  %339 = vmatpush1.msra.mxu0 0.0
  %340 = vmatprep.subr.mxu0 0.0
  %341 = vmatpush1.msra.mxu0 0.0
  %342 = vmatprep.subr.mxu0 0.0
  %343 = vmatpush1.msra.mxu0 0.0
  %344 = vmatprep.subr.mxu0 0.0
  %345 = vmatpush1.msra.mxu0 0.0
  %346 = vmatprep.mubr.f32.mxu0 0.0
  %347 = vmatmul.mubr.f32.gmra.mrb[0].mxu0 %v271
  %v348 = vpop.f32.mrb[0].mxu0
  %v349 = vadd.f32 0.0, %v348
  %v350 = vpop.f32.mrb[0].mxu0
  %v351 = vadd.f32 0.0, %v350
  %352 = vmatprep.mubr.f32.mxu0 0.0
  %353 = vmatmul.mubr.f32.gmra.mrb[0].mxu0 %v274
  %v354 = vpop.f32.mrb[0].mxu0
  %v355 = vadd.f32 0.0, %v354
  %v356 = vpop.f32.mrb[0].mxu0
  %v357 = vadd.f32 0.0, %v356
  %358 = vmatprep.mubr.f32.mxu0 0.0
  %359 = vmatmul.mubr.f32.gmra.mrb[0].mxu0 %v277
  %v360 = vpop.f32.mrb[0].mxu0
  %v361 = vadd.f32 0.0, %v360
  %v362 = vpop.f32.mrb[0].mxu0
  %v363 = vadd.f32 0.0, %v362
  %364 = vmatprep.mubr.f32.mxu0 0.0
  %365 = vmatmul.mubr.f32.gmra.mrb[0].mxu0 %v280
  %v366 = vpop.f32.mrb[0].mxu0
  %v367 = vadd.f32 0.0, %v366
  %v368 = vpop.f32.mrb[0].mxu0
  %v369 = vadd.f32 0.0, %v368
  %370 = vdwg.mxu0
  %371 = vrot.lane.b32.xlu0 %v49, 10
  %v372 = vpop.permute.xlu0 %371
  %373 = vrot.lane.b32.xlu0 %v50, 10
  %v374 = vpop.permute.xlu0 %373
  %375 = vrot.lane.b32.xlu0 %v51, 10
  %v376 = vpop.permute.xlu0 %375
  %377 = vrot.lane.b32.xlu0 %v52, 10
  %v378 = vpop.permute.xlu0 %377
  %379 = vrot.lane.b32.xlu0 %v53, 10
  %v380 = vpop.permute.xlu0 %379
  %381 = vrot.lane.b32.xlu0 %v54, 10
  %v382 = vpop.permute.xlu0 %381
  %383 = vrot.lane.b32.xlu0 %v55, 10
  %v384 = vpop.permute.xlu0 %383
  %385 = vrot.lane.b32.xlu0 %v56, 10
  %v386 = vpop.permute.xlu0 %385
  %387 = vrot.lane.b32.xlu0 %v57, 10
  %v388 = vpop.permute.xlu0 %387
  %389 = vrot.lane.b32.xlu0 %v58, 10
  %v390 = vpop.permute.xlu0 %389
  %391 = vrot.lane.b32.xlu0 %v59, 10
  %v392 = vpop.permute.xlu0 %391
  %393 = vrot.lane.b32.xlu0 %v60, 10
  %v394 = vpop.permute.xlu0 %393
  %395 = vrot.lane.b32.xlu0 %v98, 10
  %v396 = vpop.permute.xlu0 %395
  %397 = vrot.lane.b32.xlu0 %v99, 10
  %v398 = vpop.permute.xlu0 %397
  %399 = vrot.lane.b32.xlu0 %v78, 10
  %v400 = vpop.permute.xlu0 %399
  %401 = vrot.lane.b32.xlu0 %v100, 10
  %v402 = vpop.permute.xlu0 %401
  %403 = vrot.lane.b32.xlu0 %v101, 10
  %v404 = vpop.permute.xlu0 %403
  %405 = vrot.lane.b32.xlu0 %v84, 10
  %v406 = vpop.permute.xlu0 %405
  %407 = vrot.lane.b32.xlu0 %v102, 10
  %v408 = vpop.permute.xlu0 %407
  %409 = vrot.lane.b32.xlu0 %v103, 10
  %v410 = vpop.permute.xlu0 %409
  %411 = vrot.lane.b32.xlu0 %v90, 10
  %v412 = vpop.permute.xlu0 %411
  %413 = vrot.lane.b32.xlu0 %v104, 10
  %v414 = vpop.permute.xlu0 %413
  %415 = vrot.lane.b32.xlu0 %v105, 10
  %v416 = vpop.permute.xlu0 %415
  %417 = vrot.lane.b32.xlu0 %v96, 10
  %v418 = vpop.permute.xlu0 %417
  %419 = vrot.lane.b32.xlu0 %v131, 10
  %v420 = vpop.permute.xlu0 %419
  %421 = vrot.lane.b32.xlu0 %v132, 10
  %v422 = vpop.permute.xlu0 %421
  %423 = vrot.lane.b32.xlu0 %v111, 10
  %v424 = vpop.permute.xlu0 %423
  %425 = vrot.lane.b32.xlu0 %v133, 10
  %v426 = vpop.permute.xlu0 %425
  %427 = vrot.lane.b32.xlu0 %v134, 10
  %v428 = vpop.permute.xlu0 %427
  %429 = vrot.lane.b32.xlu0 %v117, 10
  %v430 = vpop.permute.xlu0 %429
  %431 = vrot.lane.b32.xlu0 %v135, 10
  %v432 = vpop.permute.xlu0 %431
  %433 = vrot.lane.b32.xlu0 %v136, 10
  %v434 = vpop.permute.xlu0 %433
  %435 = vrot.lane.b32.xlu0 %v123, 10
  %v436 = vpop.permute.xlu0 %435
  %437 = vrot.lane.b32.xlu0 %v137, 10
  %v438 = vpop.permute.xlu0 %437
  %439 = vrot.lane.b32.xlu0 %v138, 10
  %v440 = vpop.permute.xlu0 %439
  %441 = vrot.lane.b32.xlu0 %v129, 10
  %v442 = vpop.permute.xlu0 %441
  %vm443 = vcmask 80896
  %v444 = vsel %vm443, %v372, %v374
  %v445 = vsel %vm443, %v374, %v376
  %v446 = vsel %vm443, %v378, %v380
  %v447 = vsel %vm443, %v380, %v382
  %v448 = vsel %vm443, %v384, %v386
  %v449 = vsel %vm443, %v386, %v388
  %v450 = vsel %vm443, %v390, %v392
  %v451 = vsel %vm443, %v392, %v394
  %v452 = vsel %vm443, %v396, %v398
  %v453 = vsel %vm443, %v398, %v400
  %v454 = vsel %vm443, %v402, %v404
  %v455 = vsel %vm443, %v404, %v406
  %v456 = vsel %vm443, %v408, %v410
  %v457 = vsel %vm443, %v410, %v412
  %v458 = vsel %vm443, %v414, %v416
  %v459 = vsel %vm443, %v416, %v418
  %v460 = vsel %vm443, %v420, %v422
  %v461 = vsel %vm443, %v422, %v424
  %v462 = vsel %vm443, %v426, %v428
  %v463 = vsel %vm443, %v428, %v430
  %v464 = vsel %vm443, %v432, %v434
  %v465 = vsel %vm443, %v434, %v436
  %v466 = vsel %vm443, %v438, %v440
  %v467 = vsel %vm443, %v440, %v442
  %v493 = vsel %vm269, %v139, 0
  %v496 = vsel %vm269, %v140, 0
  %v499 = vsel %vm269, %v141, 0
  %v502 = vsel %vm269, %v142, 0
  %504 = vmatprep.subr.mxu0 %v445
  %505 = vmatpush1.msra.mxu0 %v444
  %506 = vmatprep.subr.mxu0 %v447
  %507 = vmatpush1.msra.mxu0 %v446
  %508 = vmatprep.subr.mxu0 %v449
  %509 = vmatpush1.msra.mxu0 %v448
  %510 = vmatprep.subr.mxu0 %v451
  %511 = vmatpush1.msra.mxu0 %v450
  %512 = vmatprep.subr.mxu0 %v453
  %513 = vmatpush1.msra.mxu0 %v452
  %514 = vmatprep.subr.mxu0 %v455
  %515 = vmatpush1.msra.mxu0 %v454
  %516 = vmatprep.subr.mxu0 %v457
  %517 = vmatpush1.msra.mxu0 %v456
  %518 = vmatprep.subr.mxu0 %v459
  %519 = vmatpush1.msra.mxu0 %v458
  %520 = vmatprep.subr.mxu0 %v461
  %521 = vmatpush1.msra.mxu0 %v460
  %522 = vmatprep.subr.mxu0 %v463
  %523 = vmatpush1.msra.mxu0 %v462
  %524 = vmatprep.subr.mxu0 %v465
  %525 = vmatpush1.msra.mxu0 %v464
  %526 = vmatprep.subr.mxu0 %v467
  %527 = vmatpush1.msra.mxu0 %v466
  %528 = vmatprep.subr.mxu0 0.0
  %529 = vmatpush1.msra.mxu0 0.0
  %530 = vmatprep.subr.mxu0 0.0
  %531 = vmatpush1.msra.mxu0 0.0
  %532 = vmatprep.subr.mxu0 0.0
  %533 = vmatpush1.msra.mxu0 0.0
  %534 = vmatprep.subr.mxu0 0.0
  %535 = vmatpush1.msra.mxu0 0.0
  %536 = vmatprep.subr.mxu0 0.0
  %537 = vmatpush1.msra.mxu0 0.0
  %538 = vmatprep.subr.mxu0 0.0
  %539 = vmatpush1.msra.mxu0 0.0
  %540 = vmatprep.subr.mxu0 0.0
  %541 = vmatpush1.msra.mxu0 0.0
  %542 = vmatprep.subr.mxu0 0.0
  %543 = vmatpush1.msra.mxu0 0.0
  %544 = vmatprep.subr.mxu0 0.0
  %545 = vmatpush1.msra.mxu0 0.0
  %546 = vmatprep.subr.mxu0 0.0
  %547 = vmatpush1.msra.mxu0 0.0
  %548 = vmatprep.subr.mxu0 0.0
  %549 = vmatpush1.msra.mxu0 0.0
  %550 = vmatprep.subr.mxu0 0.0
  %551 = vmatpush1.msra.mxu0 0.0
  %552 = vmatprep.subr.mxu0 0.0
  %553 = vmatpush1.msra.mxu0 0.0
  %554 = vmatprep.subr.mxu0 0.0
  %555 = vmatpush1.msra.mxu0 0.0
  %556 = vmatprep.subr.mxu0 0.0
  %557 = vmatpush1.msra.mxu0 0.0
  %558 = vmatprep.subr.mxu0 0.0
  %559 = vmatpush1.msra.mxu0 0.0
  %560 = vmatprep.subr.mxu0 0.0
  %561 = vmatpush1.msra.mxu0 0.0
  %562 = vmatprep.subr.mxu0 0.0
  %563 = vmatpush1.msra.mxu0 0.0
  %564 = vmatprep.subr.mxu0 0.0
  %565 = vmatpush1.msra.mxu0 0.0
  %566 = vmatprep.subr.mxu0 0.0
  %567 = vmatpush1.msra.mxu0 0.0
  %568 = vmatprep.mubr.f32.mxu0 0.0
  %569 = vmatmul.mubr.f32.gmra.mrb[0].mxu0 %v493
  %v570 = vpop.f32.mrb[0].mxu0
  %v571 = vadd.f32 %v349, %v570
  %v572 = vpop.f32.mrb[0].mxu0
  %v573 = vadd.f32 %v351, %v572
  %574 = vmatprep.mubr.f32.mxu0 0.0
  %575 = vmatmul.mubr.f32.gmra.mrb[0].mxu0 %v496
  %v576 = vpop.f32.mrb[0].mxu0
  %v577 = vadd.f32 %v355, %v576
  %v578 = vpop.f32.mrb[0].mxu0
  %v579 = vadd.f32 %v357, %v578
  %580 = vmatprep.mubr.f32.mxu0 0.0
  %581 = vmatmul.mubr.f32.gmra.mrb[0].mxu0 %v499
  %v582 = vpop.f32.mrb[0].mxu0
  %v583 = vadd.f32 %v361, %v582
  %v584 = vpop.f32.mrb[0].mxu0
  %v585 = vadd.f32 %v363, %v584
  %586 = vmatprep.mubr.f32.mxu0 0.0
  %587 = vmatmul.mubr.f32.gmra.mrb[0].mxu0 %v502
  %v588 = vpop.f32.mrb[0].mxu0
  %v589 = vadd.f32 %v367, %v588
  %v590 = vpop.f32.mrb[0].mxu0
  %v591 = vadd.f32 %v369, %v590
  %592 = vdwg.mxu0
  %s593 = scalar_lea.vmem %s2, 64
  %v594 = vld [vmem:[%s593] sm:$0xff]
  %v595 = vld [vmem:[%s593 + $0x8] sm:$0xff]
  %v596 = vld [vmem:[%s593 + $0x10] sm:$0xff]
  %v597 = vld [vmem:[%s593 + $0x18] sm:$0xff]
  %598 = vrot.lane.b32.xlu0 %v50, 120
  %v599 = vpop.permute.xlu0 %598
  %600 = vrot.lane.b32.xlu0 %v51, 120
  %v601 = vpop.permute.xlu0 %600
  %602 = vrot.lane.b32.xlu0 %v53, 120
  %v603 = vpop.permute.xlu0 %602
  %604 = vrot.lane.b32.xlu0 %v54, 120
  %v605 = vpop.permute.xlu0 %604
  %606 = vrot.lane.b32.xlu0 %v56, 120
  %v607 = vpop.permute.xlu0 %606
  %608 = vrot.lane.b32.xlu0 %v57, 120
  %v609 = vpop.permute.xlu0 %608
  %610 = vrot.lane.b32.xlu0 %v59, 120
  %v611 = vpop.permute.xlu0 %610
  %612 = vrot.lane.b32.xlu0 %v60, 120
  %v613 = vpop.permute.xlu0 %612
  %614 = vrot.lane.b32.xlu0 %v99, 120
  %v615 = vpop.permute.xlu0 %614
  %616 = vrot.lane.b32.xlu0 %v78, 120
  %v617 = vpop.permute.xlu0 %616
  %618 = vrot.lane.b32.xlu0 %v101, 120
  %v619 = vpop.permute.xlu0 %618
  %620 = vrot.lane.b32.xlu0 %v84, 120
  %v621 = vpop.permute.xlu0 %620
  %622 = vrot.lane.b32.xlu0 %v103, 120
  %v623 = vpop.permute.xlu0 %622
  %624 = vrot.lane.b32.xlu0 %v90, 120
  %v625 = vpop.permute.xlu0 %624
  %626 = vrot.lane.b32.xlu0 %v105, 120
  %v627 = vpop.permute.xlu0 %626
  %628 = vrot.lane.b32.xlu0 %v96, 120
  %v629 = vpop.permute.xlu0 %628
  %630 = vrot.lane.b32.xlu0 %v132, 120
  %v631 = vpop.permute.xlu0 %630
  %632 = vrot.lane.b32.xlu0 %v111, 120
  %v633 = vpop.permute.xlu0 %632
  %634 = vrot.lane.b32.xlu0 %v134, 120
  %v635 = vpop.permute.xlu0 %634
  %636 = vrot.lane.b32.xlu0 %v117, 120
  %v637 = vpop.permute.xlu0 %636
  %638 = vrot.lane.b32.xlu0 %v136, 120
  %v639 = vpop.permute.xlu0 %638
  %640 = vrot.lane.b32.xlu0 %v123, 120
  %v641 = vpop.permute.xlu0 %640
  %642 = vrot.lane.b32.xlu0 %v138, 120
  %v643 = vpop.permute.xlu0 %642
  %644 = vrot.lane.b32.xlu0 %v129, 120
  %v645 = vpop.permute.xlu0 %644
  %vm646 = vcmask 982016
  %v647 = vsel %vm646, %v599, %v601
  %v648 = vsel %vm646, %v603, %v605
  %v649 = vsel %vm646, %v607, %v609
  %v650 = vsel %vm646, %v611, %v613
  %v651 = vsel %vm646, %v615, %v617
  %v652 = vsel %vm646, %v619, %v621
  %v653 = vsel %vm646, %v623, %v625
  %v654 = vsel %vm646, %v627, %v629
  %v655 = vsel %vm646, %v631, %v633
  %v656 = vsel %vm646, %v635, %v637
  %v657 = vsel %vm646, %v639, %v641
  %v658 = vsel %vm646, %v643, %v645
  %v684 = vsel %vm269, %v594, 0
  %v687 = vsel %vm269, %v595, 0
  %v690 = vsel %vm269, %v596, 0
  %v693 = vsel %vm269, %v597, 0
  %695 = vmatprep.subr.mxu0 %v601
  %696 = vmatpush1.msra.mxu0 %v647
  %697 = vmatprep.subr.mxu0 %v605
  %698 = vmatpush1.msra.mxu0 %v648
  %699 = vmatprep.subr.mxu0 %v609
  %700 = vmatpush1.msra.mxu0 %v649
  %701 = vmatprep.subr.mxu0 %v613
  %702 = vmatpush1.msra.mxu0 %v650
  %703 = vmatprep.subr.mxu0 %v617
  %704 = vmatpush1.msra.mxu0 %v651
  %705 = vmatprep.subr.mxu0 %v621
  %706 = vmatpush1.msra.mxu0 %v652
  %707 = vmatprep.subr.mxu0 %v625
  %708 = vmatpush1.msra.mxu0 %v653
  %709 = vmatprep.subr.mxu0 %v629
  %710 = vmatpush1.msra.mxu0 %v654
  %711 = vmatprep.subr.mxu0 %v633
  %712 = vmatpush1.msra.mxu0 %v655
  %713 = vmatprep.subr.mxu0 %v637
  %714 = vmatpush1.msra.mxu0 %v656
  %715 = vmatprep.subr.mxu0 %v641
  %716 = vmatpush1.msra.mxu0 %v657
  %717 = vmatprep.subr.mxu0 %v645
  %718 = vmatpush1.msra.mxu0 %v658
  %719 = vmatprep.subr.mxu0 0.0
  %720 = vmatpush1.msra.mxu0 0.0
  %721 = vmatprep.subr.mxu0 0.0
  %722 = vmatpush1.msra.mxu0 0.0
  %723 = vmatprep.subr.mxu0 0.0
  %724 = vmatpush1.msra.mxu0 0.0
  %725 = vmatprep.subr.mxu0 0.0
  %726 = vmatpush1.msra.mxu0 0.0
  %727 = vmatprep.subr.mxu0 0.0
  %728 = vmatpush1.msra.mxu0 0.0
  %729 = vmatprep.subr.mxu0 0.0
  %730 = vmatpush1.msra.mxu0 0.0
  %731 = vmatprep.subr.mxu0 0.0
  %732 = vmatpush1.msra.mxu0 0.0
  %733 = vmatprep.subr.mxu0 0.0
  %734 = vmatpush1.msra.mxu0 0.0
  %735 = vmatprep.subr.mxu0 0.0
  %736 = vmatpush1.msra.mxu0 0.0
  %737 = vmatprep.subr.mxu0 0.0
  %738 = vmatpush1.msra.mxu0 0.0
  %739 = vmatprep.subr.mxu0 0.0
  %740 = vmatpush1.msra.mxu0 0.0
  %741 = vmatprep.subr.mxu0 0.0
  %742 = vmatpush1.msra.mxu0 0.0
  %743 = vmatprep.subr.mxu0 0.0
  %744 = vmatpush1.msra.mxu0 0.0
  %745 = vmatprep.subr.mxu0 0.0
  %746 = vmatpush1.msra.mxu0 0.0
  %747 = vmatprep.subr.mxu0 0.0
  %748 = vmatpush1.msra.mxu0 0.0
  %749 = vmatprep.subr.mxu0 0.0
  %750 = vmatpush1.msra.mxu0 0.0
  %751 = vmatprep.subr.mxu0 0.0
  %752 = vmatpush1.msra.mxu0 0.0
  %753 = vmatprep.subr.mxu0 0.0
  %754 = vmatpush1.msra.mxu0 0.0
  %755 = vmatprep.subr.mxu0 0.0
  %756 = vmatpush1.msra.mxu0 0.0
  %757 = vmatprep.subr.mxu0 0.0
  %758 = vmatpush1.msra.mxu0 0.0
  %759 = vmatprep.mubr.f32.mxu0 0.0
  %760 = vmatmul.mubr.f32.gmra.mrb[0].mxu0 %v684
  %v761 = vpop.f32.mrb[0].mxu0
  %v762 = vadd.f32 0.0, %v761
  %v763 = vpop.f32.mrb[0].mxu0
  %v764 = vadd.f32 0.0, %v763
  %765 = vmatprep.mubr.f32.mxu0 0.0
  %766 = vmatmul.mubr.f32.gmra.mrb[0].mxu0 %v687
  %v767 = vpop.f32.mrb[0].mxu0
  %v768 = vadd.f32 0.0, %v767
  %v769 = vpop.f32.mrb[0].mxu0
  %v770 = vadd.f32 0.0, %v769
  %771 = vmatprep.mubr.f32.mxu0 0.0
  %772 = vmatmul.mubr.f32.gmra.mrb[0].mxu0 %v690
  %v773 = vpop.f32.mrb[0].mxu0
  %v774 = vadd.f32 0.0, %v773
  %v775 = vpop.f32.mrb[0].mxu0
  %v776 = vadd.f32 0.0, %v775
  %777 = vmatprep.mubr.f32.mxu0 0.0
  %778 = vmatmul.mubr.f32.gmra.mrb[0].mxu0 %v693
  %v779 = vpop.f32.mrb[0].mxu0
  %v780 = vadd.f32 0.0, %v779
  %v781 = vpop.f32.mrb[0].mxu0
  %v782 = vadd.f32 0.0, %v781
  %783 = vdwg.mxu0
  %v784 = vadd.f32 %v571, %v762
  %v785 = vadd.f32 %v573, %v764
  %v786 = vadd.f32 %v577, %v768
  %v787 = vadd.f32 %v579, %v770
  %v788 = vadd.f32 %v583, %v774
  %v789 = vadd.f32 %v585, %v776
  %v790 = vadd.f32 %v589, %v780
  %v791 = vadd.f32 %v591, %v782
  %v792 = vld [vmem:[%s3] sm:$0xff]
  %v793 = vld [vmem:[%s3 + $0x8] sm:$0xff]
  %v794 = vld [vmem:[%s3 + $0x10] sm:$0xff]
  %v795 = vld [vmem:[%s3 + $0x18] sm:$0xff]
  %797 = vset.pattern.permute.xlu0 0
  %798 = vperm.xlu0 %797, %v792
  %v799 = vpop.permute.xlu0 %798
  %802 = vset.pattern.permute.xlu0 0
  %803 = vperm.xlu0 %802, %v793
  %v804 = vpop.permute.xlu0 %803
  %807 = vset.pattern.permute.xlu0 0
  %808 = vperm.xlu0 %807, %v794
  %v809 = vpop.permute.xlu0 %808
  %812 = vset.pattern.permute.xlu0 0
  %813 = vperm.xlu0 %812, %v795
  %v814 = vpop.permute.xlu0 %813
  %v816 = vadd.f32 %v784, %v799
  %v817 = vadd.f32 %v785, %v799
  %v818 = vadd.f32 %v786, %v804
  %v819 = vadd.f32 %v787, %v804
  %v820 = vadd.f32 %v788, %v809
  %v821 = vadd.f32 %v789, %v809
  %v822 = vadd.f32 %v790, %v814
  %v823 = vadd.f32 %v791, %v814
  %vm824 = vcmp.ge.f32.partialorder %v816, 0.0
  %vm825 = vcmp.ge.f32.partialorder %v817, 0.0
  %vm826 = vcmp.ge.f32.partialorder %v818, 0.0
  %vm827 = vcmp.ge.f32.partialorder %v819, 0.0
  %vm828 = vcmp.ge.f32.partialorder %v820, 0.0
  %vm829 = vcmp.ge.f32.partialorder %v821, 0.0
  %vm830 = vcmp.ge.f32.partialorder %v822, 0.0
  %vm831 = vcmp.ge.f32.partialorder %v823, 0.0
  %v832 = vmul.f32 %v816, 0.01
  %v833 = vmul.f32 %v817, 0.01
  %v834 = vmul.f32 %v818, 0.01
  %v835 = vmul.f32 %v819, 0.01
  %v836 = vmul.f32 %v820, 0.01
  %v837 = vmul.f32 %v821, 0.01
  %v838 = vmul.f32 %v822, 0.01
  %v839 = vmul.f32 %v823, 0.01
  %v840 = vsel %vm824, %v816, %v832
  %v841 = vsel %vm825, %v817, %v833
  %v842 = vsel %vm826, %v818, %v834
  %v843 = vsel %vm827, %v819, %v835
  %v844 = vsel %vm828, %v820, %v836
  %v845 = vsel %vm829, %v821, %v837
  %v846 = vsel %vm830, %v822, %v838
  %v847 = vsel %vm831, %v823, %v839
  %v849 = vlaneseq
  %v850 = vshrl.u32 %v849, 7
  %v851 = vsub.s32 0, %v850
  %v852 = vrot.slane %v48, %v851
  %v853 = vlaneseq
  %v854 = vshrl.u32 %v853, 7
  %v855 = vsub.s32 1, %v854
  %v856 = vrot.slane %v48, %v855
  %v859 = vmul.f32 %v840, %v852
  %v860 = vmul.f32 %v841, %v856
  %v861 = vmul.f32 %v842, %v852
  %v862 = vmul.f32 %v843, %v856
  %v863 = vmul.f32 %v844, %v852
  %v864 = vmul.f32 %v845, %v856
  %v865 = vmul.f32 %v846, %v852
  %v866 = vmul.f32 %v847, %v856
  %867 = vst [vmem:[#allocation2 + $0x8] sm:$0xff] %v859
  %vm868 = vcmask 277504
  %869 = vst.msk [vmem:[#allocation2 + $0x10] sm:$0xff] %vm868, %v860
  %870 = vst [vmem:[#allocation2 + $0x20] sm:$0xff] %v861
  %871 = vst.msk [vmem:[#allocation2 + $0x28] sm:$0xff] %vm868, %v862
  %872 = vst [vmem:[#allocation2 + $0x38] sm:$0xff] %v863
  %873 = vst.msk [vmem:[#allocation2 + $0x40] sm:$0xff] %vm868, %v864
  %874 = vst [vmem:[#allocation2 + $0x50] sm:$0xff] %v865
  %875 = vst.msk [vmem:[#allocation2 + $0x58] sm:$0xff] %vm868, %v866
  %v876 = vld [vmem:[#allocation2] sm:$0xff]
  %v877 = vld [vmem:[#allocation2 + $0x8] sm:$0xff]
  %v878 = vld [vmem:[#allocation2 + $0x10] sm:$0xff]
  %v879 = vld [vmem:[#allocation2 + $0x18] sm:$0xff]
  %v880 = vld [vmem:[#allocation2 + $0x20] sm:$0xff]
  %v881 = vld [vmem:[#allocation2 + $0x28] sm:$0xff]
  %v882 = vld [vmem:[#allocation2 + $0x30] sm:$0xff]
  %v883 = vld [vmem:[#allocation2 + $0x38] sm:$0xff]
  %v884 = vld [vmem:[#allocation2 + $0x40] sm:$0xff]
  %v885 = vld [vmem:[#allocation2 + $0x48] sm:$0xff]
  %v886 = vld [vmem:[#allocation2 + $0x50] sm:$0xff]
  %v887 = vld [vmem:[#allocation2 + $0x58] sm:$0xff]
  %900 = vrot.lane.b32.xlu0 %v876, 127
  %v901 = vpop.permute.xlu0 %900
  %902 = vrot.lane.b32.xlu0 %v877, 127
  %v903 = vpop.permute.xlu0 %902
  %904 = vrot.lane.b32.xlu0 %v878, 127
  %v905 = vpop.permute.xlu0 %904
  %906 = vrot.lane.b32.xlu0 %v879, 127
  %v907 = vpop.permute.xlu0 %906
  %908 = vrot.lane.b32.xlu0 %v880, 127
  %v909 = vpop.permute.xlu0 %908
  %910 = vrot.lane.b32.xlu0 %v881, 127
  %v911 = vpop.permute.xlu0 %910
  %912 = vrot.lane.b32.xlu0 %v882, 127
  %v913 = vpop.permute.xlu0 %912
  %914 = vrot.lane.b32.xlu0 %v883, 127
  %v915 = vpop.permute.xlu0 %914
  %916 = vrot.lane.b32.xlu0 %v884, 127
  %v917 = vpop.permute.xlu0 %916
  %918 = vrot.lane.b32.xlu0 %v885, 127
  %v919 = vpop.permute.xlu0 %918
  %920 = vrot.lane.b32.xlu0 %v886, 127
  %v921 = vpop.permute.xlu0 %920
  %922 = vrot.lane.b32.xlu0 %v887, 127
  %v923 = vpop.permute.xlu0 %922
  %v924 = vsel %vm97, %v901, %v903
  %v925 = vsel %vm97, %v903, %v905
  %v926 = vsel %vm97, %v907, %v909
  %v927 = vsel %vm97, %v909, %v911
  %v928 = vsel %vm97, %v913, %v915
  %v929 = vsel %vm97, %v915, %v917
  %v930 = vsel %vm97, %v919, %v921
  %v931 = vsel %vm97, %v921, %v923
  %932 = vrot.lane.b32.xlu0 %v876, 126
  %v933 = vpop.permute.xlu0 %932
  %934 = vrot.lane.b32.xlu0 %v877, 126
  %v935 = vpop.permute.xlu0 %934
  %936 = vrot.lane.b32.xlu0 %v878, 126
  %v937 = vpop.permute.xlu0 %936
  %938 = vrot.lane.b32.xlu0 %v879, 126
  %v939 = vpop.permute.xlu0 %938
  %940 = vrot.lane.b32.xlu0 %v880, 126
  %v941 = vpop.permute.xlu0 %940
  %942 = vrot.lane.b32.xlu0 %v881, 126
  %v943 = vpop.permute.xlu0 %942
  %944 = vrot.lane.b32.xlu0 %v882, 126
  %v945 = vpop.permute.xlu0 %944
  %946 = vrot.lane.b32.xlu0 %v883, 126
  %v947 = vpop.permute.xlu0 %946
  %948 = vrot.lane.b32.xlu0 %v884, 126
  %v949 = vpop.permute.xlu0 %948
  %950 = vrot.lane.b32.xlu0 %v885, 126
  %v951 = vpop.permute.xlu0 %950
  %952 = vrot.lane.b32.xlu0 %v886, 126
  %v953 = vpop.permute.xlu0 %952
  %954 = vrot.lane.b32.xlu0 %v887, 126
  %v955 = vpop.permute.xlu0 %954
  %v956 = vsel %vm130, %v933, %v935
  %v957 = vsel %vm130, %v935, %v937
  %v958 = vsel %vm130, %v939, %v941
  %v959 = vsel %vm130, %v941, %v943
  %v960 = vsel %vm130, %v945, %v947
  %v961 = vsel %vm130, %v947, %v949
  %v962 = vsel %vm130, %v951, %v953
  %v963 = vsel %vm130, %v953, %v955
  %s964 = scalar_lea.vmem %s2, 96
  %v965 = vld [vmem:[%s964] sm:$0xff]
  %v966 = vld [vmem:[%s964 + $0x8] sm:$0xff]
  %v967 = vld [vmem:[%s964 + $0x10] sm:$0xff]
  %v968 = vld [vmem:[%s964 + $0x18] sm:$0xff]
  %s969 = scalar_lea.vmem %s2, 128
  %v970 = vld [vmem:[%s969] sm:$0xff]
  %v971 = vld [vmem:[%s969 + $0x8] sm:$0xff]
  %v972 = vld [vmem:[%s969 + $0x10] sm:$0xff]
  %v973 = vld [vmem:[%s969 + $0x18] sm:$0xff]
  %974 = vrot.lane.b32.xlu0 %v876, 1
  %v975 = vpop.permute.xlu0 %974
  %976 = vrot.lane.b32.xlu0 %v877, 1
  %v977 = vpop.permute.xlu0 %976
  %978 = vrot.lane.b32.xlu0 %v878, 1
  %v979 = vpop.permute.xlu0 %978
  %980 = vrot.lane.b32.xlu0 %v879, 1
  %v981 = vpop.permute.xlu0 %980
  %982 = vrot.lane.b32.xlu0 %v880, 1
  %v983 = vpop.permute.xlu0 %982
  %984 = vrot.lane.b32.xlu0 %v881, 1
  %v985 = vpop.permute.xlu0 %984
  %986 = vrot.lane.b32.xlu0 %v882, 1
  %v987 = vpop.permute.xlu0 %986
  %988 = vrot.lane.b32.xlu0 %v883, 1
  %v989 = vpop.permute.xlu0 %988
  %990 = vrot.lane.b32.xlu0 %v884, 1
  %v991 = vpop.permute.xlu0 %990
  %992 = vrot.lane.b32.xlu0 %v885, 1
  %v993 = vpop.permute.xlu0 %992
  %994 = vrot.lane.b32.xlu0 %v886, 1
  %v995 = vpop.permute.xlu0 %994
  %996 = vrot.lane.b32.xlu0 %v887, 1
  %v997 = vpop.permute.xlu0 %996
  %998 = vrot.lane.b32.xlu0 %v903, 1
  %v999 = vpop.permute.xlu0 %998
  %1000 = vrot.lane.b32.xlu0 %v925, 1
  %v1001 = vpop.permute.xlu0 %1000
  %1002 = vrot.lane.b32.xlu0 %v905, 1
  %v1003 = vpop.permute.xlu0 %1002
  %1004 = vrot.lane.b32.xlu0 %v909, 1
  %v1005 = vpop.permute.xlu0 %1004
  %1006 = vrot.lane.b32.xlu0 %v927, 1
  %v1007 = vpop.permute.xlu0 %1006
  %1008 = vrot.lane.b32.xlu0 %v911, 1
  %v1009 = vpop.permute.xlu0 %1008
  %1010 = vrot.lane.b32.xlu0 %v915, 1
  %v1011 = vpop.permute.xlu0 %1010
  %1012 = vrot.lane.b32.xlu0 %v929, 1
  %v1013 = vpop.permute.xlu0 %1012
  %1014 = vrot.lane.b32.xlu0 %v917, 1
  %v1015 = vpop.permute.xlu0 %1014
  %1016 = vrot.lane.b32.xlu0 %v921, 1
  %v1017 = vpop.permute.xlu0 %1016
  %1018 = vrot.lane.b32.xlu0 %v931, 1
  %v1019 = vpop.permute.xlu0 %1018
  %1020 = vrot.lane.b32.xlu0 %v923, 1
  %v1021 = vpop.permute.xlu0 %1020
  %1022 = vrot.lane.b32.xlu0 %v935, 1
  %v1023 = vpop.permute.xlu0 %1022
  %1024 = vrot.lane.b32.xlu0 %v957, 1
  %v1025 = vpop.permute.xlu0 %1024
  %1026 = vrot.lane.b32.xlu0 %v937, 1
  %v1027 = vpop.permute.xlu0 %1026
  %1028 = vrot.lane.b32.xlu0 %v941, 1
  %v1029 = vpop.permute.xlu0 %1028
  %1030 = vrot.lane.b32.xlu0 %v959, 1
  %v1031 = vpop.permute.xlu0 %1030
  %1032 = vrot.lane.b32.xlu0 %v943, 1
  %v1033 = vpop.permute.xlu0 %1032
  %1034 = vrot.lane.b32.xlu0 %v947, 1
  %v1035 = vpop.permute.xlu0 %1034
  %1036 = vrot.lane.b32.xlu0 %v961, 1
  %v1037 = vpop.permute.xlu0 %1036
  %1038 = vrot.lane.b32.xlu0 %v949, 1
  %v1039 = vpop.permute.xlu0 %1038
  %1040 = vrot.lane.b32.xlu0 %v953, 1
  %v1041 = vpop.permute.xlu0 %1040
  %1042 = vrot.lane.b32.xlu0 %v963, 1
  %v1043 = vpop.permute.xlu0 %1042
  %1044 = vrot.lane.b32.xlu0 %v955, 1
  %v1045 = vpop.permute.xlu0 %1044
  %v1046 = vsel %vm220, %v975, %v977
  %v1047 = vsel %vm220, %v977, %v979
  %v1048 = vsel %vm220, %v981, %v983
  %v1049 = vsel %vm220, %v983, %v985
  %v1050 = vsel %vm220, %v987, %v989
  %v1051 = vsel %vm220, %v989, %v991
  %v1052 = vsel %vm220, %v993, %v995
  %v1053 = vsel %vm220, %v995, %v997
  %v1054 = vsel %vm220, %v999, %v1001
  %v1055 = vsel %vm220, %v1001, %v1003
  %v1056 = vsel %vm220, %v1005, %v1007
  %v1057 = vsel %vm220, %v1007, %v1009
  %v1058 = vsel %vm220, %v1011, %v1013
  %v1059 = vsel %vm220, %v1013, %v1015
  %v1060 = vsel %vm220, %v1017, %v1019
  %v1061 = vsel %vm220, %v1019, %v1021
  %v1062 = vsel %vm220, %v1023, %v1025
  %v1063 = vsel %vm220, %v1025, %v1027
  %v1064 = vsel %vm220, %v1029, %v1031
  %v1065 = vsel %vm220, %v1031, %v1033
  %v1066 = vsel %vm220, %v1035, %v1037
  %v1067 = vsel %vm220, %v1037, %v1039
  %v1068 = vsel %vm220, %v1041, %v1043
  %v1069 = vsel %vm220, %v1043, %v1045
  %v1095 = vsel %vm269, %v970, 0
  %v1098 = vsel %vm269, %v971, 0
  %v1101 = vsel %vm269, %v972, 0
  %v1104 = vsel %vm269, %v973, 0
  %1106 = vmatprep.subr.mxu0 %v1047
  %1107 = vmatpush1.msra.mxu0 %v1046
  %1108 = vmatprep.subr.mxu0 %v1049
  %1109 = vmatpush1.msra.mxu0 %v1048
  %1110 = vmatprep.subr.mxu0 %v1051
  %1111 = vmatpush1.msra.mxu0 %v1050
  %1112 = vmatprep.subr.mxu0 %v1053
  %1113 = vmatpush1.msra.mxu0 %v1052
  %1114 = vmatprep.subr.mxu0 %v1055
  %1115 = vmatpush1.msra.mxu0 %v1054
  %1116 = vmatprep.subr.mxu0 %v1057
  %1117 = vmatpush1.msra.mxu0 %v1056
  %1118 = vmatprep.subr.mxu0 %v1059
  %1119 = vmatpush1.msra.mxu0 %v1058
  %1120 = vmatprep.subr.mxu0 %v1061
  %1121 = vmatpush1.msra.mxu0 %v1060
  %1122 = vmatprep.subr.mxu0 %v1063
  %1123 = vmatpush1.msra.mxu0 %v1062
  %1124 = vmatprep.subr.mxu0 %v1065
  %1125 = vmatpush1.msra.mxu0 %v1064
  %1126 = vmatprep.subr.mxu0 %v1067
  %1127 = vmatpush1.msra.mxu0 %v1066
  %1128 = vmatprep.subr.mxu0 %v1069
  %1129 = vmatpush1.msra.mxu0 %v1068
  %1130 = vmatprep.subr.mxu0 0.0
  %1131 = vmatpush1.msra.mxu0 0.0
  %1132 = vmatprep.subr.mxu0 0.0
  %1133 = vmatpush1.msra.mxu0 0.0
  %1134 = vmatprep.subr.mxu0 0.0
  %1135 = vmatpush1.msra.mxu0 0.0
  %1136 = vmatprep.subr.mxu0 0.0
  %1137 = vmatpush1.msra.mxu0 0.0
  %1138 = vmatprep.subr.mxu0 0.0
  %1139 = vmatpush1.msra.mxu0 0.0
  %1140 = vmatprep.subr.mxu0 0.0
  %1141 = vmatpush1.msra.mxu0 0.0
  %1142 = vmatprep.subr.mxu0 0.0
  %1143 = vmatpush1.msra.mxu0 0.0
  %1144 = vmatprep.subr.mxu0 0.0
  %1145 = vmatpush1.msra.mxu0 0.0
  %1146 = vmatprep.subr.mxu0 0.0
  %1147 = vmatpush1.msra.mxu0 0.0
  %1148 = vmatprep.subr.mxu0 0.0
  %1149 = vmatpush1.msra.mxu0 0.0
  %1150 = vmatprep.subr.mxu0 0.0
  %1151 = vmatpush1.msra.mxu0 0.0
  %1152 = vmatprep.subr.mxu0 0.0
  %1153 = vmatpush1.msra.mxu0 0.0
  %1154 = vmatprep.subr.mxu0 0.0
  %1155 = vmatpush1.msra.mxu0 0.0
  %1156 = vmatprep.subr.mxu0 0.0
  %1157 = vmatpush1.msra.mxu0 0.0
  %1158 = vmatprep.subr.mxu0 0.0
  %1159 = vmatpush1.msra.mxu0 0.0
  %1160 = vmatprep.subr.mxu0 0.0
  %1161 = vmatpush1.msra.mxu0 0.0
  %1162 = vmatprep.subr.mxu0 0.0
  %1163 = vmatpush1.msra.mxu0 0.0
  %1164 = vmatprep.subr.mxu0 0.0
  %1165 = vmatpush1.msra.mxu0 0.0
  %1166 = vmatprep.subr.mxu0 0.0
  %1167 = vmatpush1.msra.mxu0 0.0
  %1168 = vmatprep.subr.mxu0 0.0
  %1169 = vmatpush1.msra.mxu0 0.0
  %1170 = vmatprep.mubr.f32.mxu0 0.0
  %1171 = vmatmul.mubr.f32.gmra.mrb[0].mxu0 %v1095
  %v1172 = vpop.f32.mrb[0].mxu0
  %v1173 = vadd.f32 0.0, %v1172
  %v1174 = vpop.f32.mrb[0].mxu0
  %v1175 = vadd.f32 0.0, %v1174
  %1176 = vmatprep.mubr.f32.mxu0 0.0
  %1177 = vmatmul.mubr.f32.gmra.mrb[0].mxu0 %v1098
  %v1178 = vpop.f32.mrb[0].mxu0
  %v1179 = vadd.f32 0.0, %v1178
  %v1180 = vpop.f32.mrb[0].mxu0
  %v1181 = vadd.f32 0.0, %v1180
  %1182 = vmatprep.mubr.f32.mxu0 0.0
  %1183 = vmatmul.mubr.f32.gmra.mrb[0].mxu0 %v1101
  %v1184 = vpop.f32.mrb[0].mxu0
  %v1185 = vadd.f32 0.0, %v1184
  %v1186 = vpop.f32.mrb[0].mxu0
  %v1187 = vadd.f32 0.0, %v1186
  %1188 = vmatprep.mubr.f32.mxu0 0.0
  %1189 = vmatmul.mubr.f32.gmra.mrb[0].mxu0 %v1104
  %v1190 = vpop.f32.mrb[0].mxu0
  %v1191 = vadd.f32 0.0, %v1190
  %v1192 = vpop.f32.mrb[0].mxu0
  %v1193 = vadd.f32 0.0, %v1192
  %1194 = vdwg.mxu0
  %1195 = vrot.lane.b32.xlu0 %v876, 10
  %v1196 = vpop.permute.xlu0 %1195
  %1197 = vrot.lane.b32.xlu0 %v877, 10
  %v1198 = vpop.permute.xlu0 %1197
  %1199 = vrot.lane.b32.xlu0 %v878, 10
  %v1200 = vpop.permute.xlu0 %1199
  %1201 = vrot.lane.b32.xlu0 %v879, 10
  %v1202 = vpop.permute.xlu0 %1201
  %1203 = vrot.lane.b32.xlu0 %v880, 10
  %v1204 = vpop.permute.xlu0 %1203
  %1205 = vrot.lane.b32.xlu0 %v881, 10
  %v1206 = vpop.permute.xlu0 %1205
  %1207 = vrot.lane.b32.xlu0 %v882, 10
  %v1208 = vpop.permute.xlu0 %1207
  %1209 = vrot.lane.b32.xlu0 %v883, 10
  %v1210 = vpop.permute.xlu0 %1209
  %1211 = vrot.lane.b32.xlu0 %v884, 10
  %v1212 = vpop.permute.xlu0 %1211
  %1213 = vrot.lane.b32.xlu0 %v885, 10
  %v1214 = vpop.permute.xlu0 %1213
  %1215 = vrot.lane.b32.xlu0 %v886, 10
  %v1216 = vpop.permute.xlu0 %1215
  %1217 = vrot.lane.b32.xlu0 %v887, 10
  %v1218 = vpop.permute.xlu0 %1217
  %1219 = vrot.lane.b32.xlu0 %v924, 10
  %v1220 = vpop.permute.xlu0 %1219
  %1221 = vrot.lane.b32.xlu0 %v925, 10
  %v1222 = vpop.permute.xlu0 %1221
  %1223 = vrot.lane.b32.xlu0 %v905, 10
  %v1224 = vpop.permute.xlu0 %1223
  %1225 = vrot.lane.b32.xlu0 %v926, 10
  %v1226 = vpop.permute.xlu0 %1225
  %1227 = vrot.lane.b32.xlu0 %v927, 10
  %v1228 = vpop.permute.xlu0 %1227
  %1229 = vrot.lane.b32.xlu0 %v911, 10
  %v1230 = vpop.permute.xlu0 %1229
  %1231 = vrot.lane.b32.xlu0 %v928, 10
  %v1232 = vpop.permute.xlu0 %1231
  %1233 = vrot.lane.b32.xlu0 %v929, 10
  %v1234 = vpop.permute.xlu0 %1233
  %1235 = vrot.lane.b32.xlu0 %v917, 10
  %v1236 = vpop.permute.xlu0 %1235
  %1237 = vrot.lane.b32.xlu0 %v930, 10
  %v1238 = vpop.permute.xlu0 %1237
  %1239 = vrot.lane.b32.xlu0 %v931, 10
  %v1240 = vpop.permute.xlu0 %1239
  %1241 = vrot.lane.b32.xlu0 %v923, 10
  %v1242 = vpop.permute.xlu0 %1241
  %1243 = vrot.lane.b32.xlu0 %v956, 10
  %v1244 = vpop.permute.xlu0 %1243
  %1245 = vrot.lane.b32.xlu0 %v957, 10
  %v1246 = vpop.permute.xlu0 %1245
  %1247 = vrot.lane.b32.xlu0 %v937, 10
  %v1248 = vpop.permute.xlu0 %1247
  %1249 = vrot.lane.b32.xlu0 %v958, 10
  %v1250 = vpop.permute.xlu0 %1249
  %1251 = vrot.lane.b32.xlu0 %v959, 10
  %v1252 = vpop.permute.xlu0 %1251
  %1253 = vrot.lane.b32.xlu0 %v943, 10
  %v1254 = vpop.permute.xlu0 %1253
  %1255 = vrot.lane.b32.xlu0 %v960, 10
  %v1256 = vpop.permute.xlu0 %1255
  %1257 = vrot.lane.b32.xlu0 %v961, 10
  %v1258 = vpop.permute.xlu0 %1257
  %1259 = vrot.lane.b32.xlu0 %v949, 10
  %v1260 = vpop.permute.xlu0 %1259
  %1261 = vrot.lane.b32.xlu0 %v962, 10
  %v1262 = vpop.permute.xlu0 %1261
  %1263 = vrot.lane.b32.xlu0 %v963, 10
  %v1264 = vpop.permute.xlu0 %1263
  %1265 = vrot.lane.b32.xlu0 %v955, 10
  %v1266 = vpop.permute.xlu0 %1265
  %v1267 = vsel %vm443, %v1196, %v1198
  %v1268 = vsel %vm443, %v1198, %v1200
  %v1269 = vsel %vm443, %v1202, %v1204
  %v1270 = vsel %vm443, %v1204, %v1206
  %v1271 = vsel %vm443, %v1208, %v1210
  %v1272 = vsel %vm443, %v1210, %v1212
  %v1273 = vsel %vm443, %v1214, %v1216
  %v1274 = vsel %vm443, %v1216, %v1218
  %v1275 = vsel %vm443, %v1220, %v1222
  %v1276 = vsel %vm443, %v1222, %v1224
  %v1277 = vsel %vm443, %v1226, %v1228
  %v1278 = vsel %vm443, %v1228, %v1230
  %v1279 = vsel %vm443, %v1232, %v1234
  %v1280 = vsel %vm443, %v1234, %v1236
  %v1281 = vsel %vm443, %v1238, %v1240
  %v1282 = vsel %vm443, %v1240, %v1242
  %v1283 = vsel %vm443, %v1244, %v1246
  %v1284 = vsel %vm443, %v1246, %v1248
  %v1285 = vsel %vm443, %v1250, %v1252
  %v1286 = vsel %vm443, %v1252, %v1254
  %v1287 = vsel %vm443, %v1256, %v1258
  %v1288 = vsel %vm443, %v1258, %v1260
  %v1289 = vsel %vm443, %v1262, %v1264
  %v1290 = vsel %vm443, %v1264, %v1266
  %v1316 = vsel %vm269, %v965, 0
  %v1319 = vsel %vm269, %v966, 0
  %v1322 = vsel %vm269, %v967, 0
  %v1325 = vsel %vm269, %v968, 0
  %1327 = vmatprep.subr.mxu0 %v1268
  %1328 = vmatpush1.msra.mxu0 %v1267
  %1329 = vmatprep.subr.mxu0 %v1270
  %1330 = vmatpush1.msra.mxu0 %v1269
  %1331 = vmatprep.subr.mxu0 %v1272
  %1332 = vmatpush1.msra.mxu0 %v1271
  %1333 = vmatprep.subr.mxu0 %v1274
  %1334 = vmatpush1.msra.mxu0 %v1273
  %1335 = vmatprep.subr.mxu0 %v1276
  %1336 = vmatpush1.msra.mxu0 %v1275
  %1337 = vmatprep.subr.mxu0 %v1278
  %1338 = vmatpush1.msra.mxu0 %v1277
  %1339 = vmatprep.subr.mxu0 %v1280
  %1340 = vmatpush1.msra.mxu0 %v1279
  %1341 = vmatprep.subr.mxu0 %v1282
  %1342 = vmatpush1.msra.mxu0 %v1281
  %1343 = vmatprep.subr.mxu0 %v1284
  %1344 = vmatpush1.msra.mxu0 %v1283
  %1345 = vmatprep.subr.mxu0 %v1286
  %1346 = vmatpush1.msra.mxu0 %v1285
  %1347 = vmatprep.subr.mxu0 %v1288
  %1348 = vmatpush1.msra.mxu0 %v1287
  %1349 = vmatprep.subr.mxu0 %v1290
  %1350 = vmatpush1.msra.mxu0 %v1289
  %1351 = vmatprep.subr.mxu0 0.0
  %1352 = vmatpush1.msra.mxu0 0.0
  %1353 = vmatprep.subr.mxu0 0.0
  %1354 = vmatpush1.msra.mxu0 0.0
  %1355 = vmatprep.subr.mxu0 0.0
  %1356 = vmatpush1.msra.mxu0 0.0
  %1357 = vmatprep.subr.mxu0 0.0
  %1358 = vmatpush1.msra.mxu0 0.0
  %1359 = vmatprep.subr.mxu0 0.0
  %1360 = vmatpush1.msra.mxu0 0.0
  %1361 = vmatprep.subr.mxu0 0.0
  %1362 = vmatpush1.msra.mxu0 0.0
  %1363 = vmatprep.subr.mxu0 0.0
  %1364 = vmatpush1.msra.mxu0 0.0
  %1365 = vmatprep.subr.mxu0 0.0
  %1366 = vmatpush1.msra.mxu0 0.0
  %1367 = vmatprep.subr.mxu0 0.0
  %1368 = vmatpush1.msra.mxu0 0.0
  %1369 = vmatprep.subr.mxu0 0.0
  %1370 = vmatpush1.msra.mxu0 0.0
  %1371 = vmatprep.subr.mxu0 0.0
  %1372 = vmatpush1.msra.mxu0 0.0
  %1373 = vmatprep.subr.mxu0 0.0
  %1374 = vmatpush1.msra.mxu0 0.0
  %1375 = vmatprep.subr.mxu0 0.0
  %1376 = vmatpush1.msra.mxu0 0.0
  %1377 = vmatprep.subr.mxu0 0.0
  %1378 = vmatpush1.msra.mxu0 0.0
  %1379 = vmatprep.subr.mxu0 0.0
  %1380 = vmatpush1.msra.mxu0 0.0
  %1381 = vmatprep.subr.mxu0 0.0
  %1382 = vmatpush1.msra.mxu0 0.0
  %1383 = vmatprep.subr.mxu0 0.0
  %1384 = vmatpush1.msra.mxu0 0.0
  %1385 = vmatprep.subr.mxu0 0.0
  %1386 = vmatpush1.msra.mxu0 0.0
  %1387 = vmatprep.subr.mxu0 0.0
  %1388 = vmatpush1.msra.mxu0 0.0
  %1389 = vmatprep.subr.mxu0 0.0
  %1390 = vmatpush1.msra.mxu0 0.0
  %1391 = vmatprep.mubr.f32.mxu0 0.0
  %1392 = vmatmul.mubr.f32.gmra.mrb[0].mxu0 %v1316
  %v1393 = vpop.f32.mrb[0].mxu0
  %v1394 = vadd.f32 %v1173, %v1393
  %v1395 = vpop.f32.mrb[0].mxu0
  %v1396 = vadd.f32 %v1175, %v1395
  %1397 = vmatprep.mubr.f32.mxu0 0.0
  %1398 = vmatmul.mubr.f32.gmra.mrb[0].mxu0 %v1319
  %v1399 = vpop.f32.mrb[0].mxu0
  %v1400 = vadd.f32 %v1179, %v1399
  %v1401 = vpop.f32.mrb[0].mxu0
  %v1402 = vadd.f32 %v1181, %v1401
  %1403 = vmatprep.mubr.f32.mxu0 0.0
  %1404 = vmatmul.mubr.f32.gmra.mrb[0].mxu0 %v1322
  %v1405 = vpop.f32.mrb[0].mxu0
  %v1406 = vadd.f32 %v1185, %v1405
  %v1407 = vpop.f32.mrb[0].mxu0
  %v1408 = vadd.f32 %v1187, %v1407
  %1409 = vmatprep.mubr.f32.mxu0 0.0
  %1410 = vmatmul.mubr.f32.gmra.mrb[0].mxu0 %v1325
  %v1411 = vpop.f32.mrb[0].mxu0
  %v1412 = vadd.f32 %v1191, %v1411
  %v1413 = vpop.f32.mrb[0].mxu0
  %v1414 = vadd.f32 %v1193, %v1413
  %1415 = vdwg.mxu0
  %s1416 = scalar_lea.vmem %s2, 160
  %v1417 = vld [vmem:[%s1416] sm:$0xff]
  %v1418 = vld [vmem:[%s1416 + $0x8] sm:$0xff]
  %v1419 = vld [vmem:[%s1416 + $0x10] sm:$0xff]
  %v1420 = vld [vmem:[%s1416 + $0x18] sm:$0xff]
  %1421 = vrot.lane.b32.xlu0 %v877, 120
  %v1422 = vpop.permute.xlu0 %1421
  %1423 = vrot.lane.b32.xlu0 %v878, 120
  %v1424 = vpop.permute.xlu0 %1423
  %1425 = vrot.lane.b32.xlu0 %v880, 120
  %v1426 = vpop.permute.xlu0 %1425
  %1427 = vrot.lane.b32.xlu0 %v881, 120
  %v1428 = vpop.permute.xlu0 %1427
  %1429 = vrot.lane.b32.xlu0 %v883, 120
  %v1430 = vpop.permute.xlu0 %1429
  %1431 = vrot.lane.b32.xlu0 %v884, 120
  %v1432 = vpop.permute.xlu0 %1431
  %1433 = vrot.lane.b32.xlu0 %v886, 120
  %v1434 = vpop.permute.xlu0 %1433
  %1435 = vrot.lane.b32.xlu0 %v887, 120
  %v1436 = vpop.permute.xlu0 %1435
  %1437 = vrot.lane.b32.xlu0 %v925, 120
  %v1438 = vpop.permute.xlu0 %1437
  %1439 = vrot.lane.b32.xlu0 %v905, 120
  %v1440 = vpop.permute.xlu0 %1439
  %1441 = vrot.lane.b32.xlu0 %v927, 120
  %v1442 = vpop.permute.xlu0 %1441
  %1443 = vrot.lane.b32.xlu0 %v911, 120
  %v1444 = vpop.permute.xlu0 %1443
  %1445 = vrot.lane.b32.xlu0 %v929, 120
  %v1446 = vpop.permute.xlu0 %1445
  %1447 = vrot.lane.b32.xlu0 %v917, 120
  %v1448 = vpop.permute.xlu0 %1447
  %1449 = vrot.lane.b32.xlu0 %v931, 120
  %v1450 = vpop.permute.xlu0 %1449
  %1451 = vrot.lane.b32.xlu0 %v923, 120
  %v1452 = vpop.permute.xlu0 %1451
  %1453 = vrot.lane.b32.xlu0 %v957, 120
  %v1454 = vpop.permute.xlu0 %1453
  %1455 = vrot.lane.b32.xlu0 %v937, 120
  %v1456 = vpop.permute.xlu0 %1455
  %1457 = vrot.lane.b32.xlu0 %v959, 120
  %v1458 = vpop.permute.xlu0 %1457
  %1459 = vrot.lane.b32.xlu0 %v943, 120
  %v1460 = vpop.permute.xlu0 %1459
  %1461 = vrot.lane.b32.xlu0 %v961, 120
  %v1462 = vpop.permute.xlu0 %1461
  %1463 = vrot.lane.b32.xlu0 %v949, 120
  %v1464 = vpop.permute.xlu0 %1463
  %1465 = vrot.lane.b32.xlu0 %v963, 120
  %v1466 = vpop.permute.xlu0 %1465
  %1467 = vrot.lane.b32.xlu0 %v955, 120
  %v1468 = vpop.permute.xlu0 %1467
  %v1469 = vsel %vm646, %v1422, %v1424
  %v1470 = vsel %vm646, %v1426, %v1428
  %v1471 = vsel %vm646, %v1430, %v1432
  %v1472 = vsel %vm646, %v1434, %v1436
  %v1473 = vsel %vm646, %v1438, %v1440
  %v1474 = vsel %vm646, %v1442, %v1444
  %v1475 = vsel %vm646, %v1446, %v1448
  %v1476 = vsel %vm646, %v1450, %v1452
  %v1477 = vsel %vm646, %v1454, %v1456
  %v1478 = vsel %vm646, %v1458, %v1460
  %v1479 = vsel %vm646, %v1462, %v1464
  %v1480 = vsel %vm646, %v1466, %v1468
  %v1506 = vsel %vm269, %v1417, 0
  %v1509 = vsel %vm269, %v1418, 0
  %v1512 = vsel %vm269, %v1419, 0
  %v1515 = vsel %vm269, %v1420, 0
  %1517 = vmatprep.subr.mxu0 %v1424
  %1518 = vmatpush1.msra.mxu0 %v1469
  %1519 = vmatprep.subr.mxu0 %v1428
  %1520 = vmatpush1.msra.mxu0 %v1470
  %1521 = vmatprep.subr.mxu0 %v1432
  %1522 = vmatpush1.msra.mxu0 %v1471
  %1523 = vmatprep.subr.mxu0 %v1436
  %1524 = vmatpush1.msra.mxu0 %v1472
  %1525 = vmatprep.subr.mxu0 %v1440
  %1526 = vmatpush1.msra.mxu0 %v1473
  %1527 = vmatprep.subr.mxu0 %v1444
  %1528 = vmatpush1.msra.mxu0 %v1474
  %1529 = vmatprep.subr.mxu0 %v1448
  %1530 = vmatpush1.msra.mxu0 %v1475
  %1531 = vmatprep.subr.mxu0 %v1452
  %1532 = vmatpush1.msra.mxu0 %v1476
  %1533 = vmatprep.subr.mxu0 %v1456
  %1534 = vmatpush1.msra.mxu0 %v1477
  %1535 = vmatprep.subr.mxu0 %v1460
  %1536 = vmatpush1.msra.mxu0 %v1478
  %1537 = vmatprep.subr.mxu0 %v1464
  %1538 = vmatpush1.msra.mxu0 %v1479
  %1539 = vmatprep.subr.mxu0 %v1468
  %1540 = vmatpush1.msra.mxu0 %v1480
  %1541 = vmatprep.subr.mxu0 0.0
  %1542 = vmatpush1.msra.mxu0 0.0
  %1543 = vmatprep.subr.mxu0 0.0
  %1544 = vmatpush1.msra.mxu0 0.0
  %1545 = vmatprep.subr.mxu0 0.0
  %1546 = vmatpush1.msra.mxu0 0.0
  %1547 = vmatprep.subr.mxu0 0.0
  %1548 = vmatpush1.msra.mxu0 0.0
  %1549 = vmatprep.subr.mxu0 0.0
  %1550 = vmatpush1.msra.mxu0 0.0
  %1551 = vmatprep.subr.mxu0 0.0
  %1552 = vmatpush1.msra.mxu0 0.0
  %1553 = vmatprep.subr.mxu0 0.0
  %1554 = vmatpush1.msra.mxu0 0.0
  %1555 = vmatprep.subr.mxu0 0.0
  %1556 = vmatpush1.msra.mxu0 0.0
  %1557 = vmatprep.subr.mxu0 0.0
  %1558 = vmatpush1.msra.mxu0 0.0
  %1559 = vmatprep.subr.mxu0 0.0
  %1560 = vmatpush1.msra.mxu0 0.0
  %1561 = vmatprep.subr.mxu0 0.0
  %1562 = vmatpush1.msra.mxu0 0.0
  %1563 = vmatprep.subr.mxu0 0.0
  %1564 = vmatpush1.msra.mxu0 0.0
  %1565 = vmatprep.subr.mxu0 0.0
  %1566 = vmatpush1.msra.mxu0 0.0
  %1567 = vmatprep.subr.mxu0 0.0
  %1568 = vmatpush1.msra.mxu0 0.0
  %1569 = vmatprep.subr.mxu0 0.0
  %1570 = vmatpush1.msra.mxu0 0.0
  %1571 = vmatprep.subr.mxu0 0.0
  %1572 = vmatpush1.msra.mxu0 0.0
  %1573 = vmatprep.subr.mxu0 0.0
  %1574 = vmatpush1.msra.mxu0 0.0
  %1575 = vmatprep.subr.mxu0 0.0
  %1576 = vmatpush1.msra.mxu0 0.0
  %1577 = vmatprep.subr.mxu0 0.0
  %1578 = vmatpush1.msra.mxu0 0.0
  %1579 = vmatprep.subr.mxu0 0.0
  %1580 = vmatpush1.msra.mxu0 0.0
  %1581 = vmatprep.mubr.f32.mxu0 0.0
  %1582 = vmatmul.mubr.f32.gmra.mrb[0].mxu0 %v1506
  %v1583 = vpop.f32.mrb[0].mxu0
  %v1584 = vadd.f32 0.0, %v1583
  %v1585 = vpop.f32.mrb[0].mxu0
  %v1586 = vadd.f32 0.0, %v1585
  %1587 = vmatprep.mubr.f32.mxu0 0.0
  %1588 = vmatmul.mubr.f32.gmra.mrb[0].mxu0 %v1509
  %v1589 = vpop.f32.mrb[0].mxu0
  %v1590 = vadd.f32 0.0, %v1589
  %v1591 = vpop.f32.mrb[0].mxu0
  %v1592 = vadd.f32 0.0, %v1591
  %1593 = vmatprep.mubr.f32.mxu0 0.0
  %1594 = vmatmul.mubr.f32.gmra.mrb[0].mxu0 %v1512
  %v1595 = vpop.f32.mrb[0].mxu0
  %v1596 = vadd.f32 0.0, %v1595
  %v1597 = vpop.f32.mrb[0].mxu0
  %v1598 = vadd.f32 0.0, %v1597
  %1599 = vmatprep.mubr.f32.mxu0 0.0
  %1600 = vmatmul.mubr.f32.gmra.mrb[0].mxu0 %v1515
  %v1601 = vpop.f32.mrb[0].mxu0
  %v1602 = vadd.f32 0.0, %v1601
  %v1603 = vpop.f32.mrb[0].mxu0
  %v1604 = vadd.f32 0.0, %v1603
  %1605 = vdwg.mxu0
  %v1606 = vadd.f32 %v1394, %v1584
  %v1607 = vadd.f32 %v1396, %v1586
  %v1608 = vadd.f32 %v1400, %v1590
  %v1609 = vadd.f32 %v1402, %v1592
  %v1610 = vadd.f32 %v1406, %v1596
  %v1611 = vadd.f32 %v1408, %v1598
  %v1612 = vadd.f32 %v1412, %v1602
  %v1613 = vadd.f32 %v1414, %v1604
  %s1614 = scalar_lea.vmem %s3, 32
  %v1615 = vld [vmem:[%s1614] sm:$0xff]
  %v1616 = vld [vmem:[%s1614 + $0x8] sm:$0xff]
  %v1617 = vld [vmem:[%s1614 + $0x10] sm:$0xff]
  %v1618 = vld [vmem:[%s1614 + $0x18] sm:$0xff]
  %1620 = vset.pattern.permute.xlu0 0
  %1621 = vperm.xlu0 %1620, %v1615
  %v1622 = vpop.permute.xlu0 %1621
  %1625 = vset.pattern.permute.xlu0 0
  %1626 = vperm.xlu0 %1625, %v1616
  %v1627 = vpop.permute.xlu0 %1626
  %1630 = vset.pattern.permute.xlu0 0
  %1631 = vperm.xlu0 %1630, %v1617
  %v1632 = vpop.permute.xlu0 %1631
  %1635 = vset.pattern.permute.xlu0 0
  %1636 = vperm.xlu0 %1635, %v1618
  %v1637 = vpop.permute.xlu0 %1636
  %v1639 = vadd.f32 %v1606, %v1622
  %v1640 = vadd.f32 %v1607, %v1622
  %v1641 = vadd.f32 %v1608, %v1627
  %v1642 = vadd.f32 %v1609, %v1627
  %v1643 = vadd.f32 %v1610, %v1632
  %v1644 = vadd.f32 %v1611, %v1632
  %v1645 = vadd.f32 %v1612, %v1637
  %v1646 = vadd.f32 %v1613, %v1637
  %vm1647 = vcmp.ge.f32.partialorder %v1639, 0.0
  %vm1648 = vcmp.ge.f32.partialorder %v1640, 0.0
  %vm1649 = vcmp.ge.f32.partialorder %v1641, 0.0
  %vm1650 = vcmp.ge.f32.partialorder %v1642, 0.0
  %vm1651 = vcmp.ge.f32.partialorder %v1643, 0.0
  %vm1652 = vcmp.ge.f32.partialorder %v1644, 0.0
  %vm1653 = vcmp.ge.f32.partialorder %v1645, 0.0
  %vm1654 = vcmp.ge.f32.partialorder %v1646, 0.0
  %v1655 = vmul.f32 %v1639, 0.01
  %v1656 = vmul.f32 %v1640, 0.01
  %v1657 = vmul.f32 %v1641, 0.01
  %v1658 = vmul.f32 %v1642, 0.01
  %v1659 = vmul.f32 %v1643, 0.01
  %v1660 = vmul.f32 %v1644, 0.01
  %v1661 = vmul.f32 %v1645, 0.01
  %v1662 = vmul.f32 %v1646, 0.01
  %v1663 = vsel %vm1647, %v1639, %v1655
  %v1664 = vsel %vm1648, %v1640, %v1656
  %v1665 = vsel %vm1649, %v1641, %v1657
  %v1666 = vsel %vm1650, %v1642, %v1658
  %v1667 = vsel %vm1651, %v1643, %v1659
  %v1668 = vsel %vm1652, %v1644, %v1660
  %v1669 = vsel %vm1653, %v1645, %v1661
  %v1670 = vsel %vm1654, %v1646, %v1662
  %v1671 = vmul.f32 %v1663, %v852
  %v1672 = vmul.f32 %v1664, %v856
  %v1673 = vmul.f32 %v1665, %v852
  %v1674 = vmul.f32 %v1666, %v856
  %v1675 = vmul.f32 %v1667, %v852
  %v1676 = vmul.f32 %v1668, %v856
  %v1677 = vmul.f32 %v1669, %v852
  %v1678 = vmul.f32 %v1670, %v856
  %1679 = vst [vmem:[#allocation3 + $0x8] sm:$0xff] %v1671
  %1680 = vst.msk [vmem:[#allocation3 + $0x10] sm:$0xff] %vm868, %v1672
  %1681 = vst [vmem:[#allocation3 + $0x20] sm:$0xff] %v1673
  %1682 = vst.msk [vmem:[#allocation3 + $0x28] sm:$0xff] %vm868, %v1674
  %1683 = vst [vmem:[#allocation3 + $0x38] sm:$0xff] %v1675
  %1684 = vst.msk [vmem:[#allocation3 + $0x40] sm:$0xff] %vm868, %v1676
  %1685 = vst [vmem:[#allocation3 + $0x50] sm:$0xff] %v1677
  %1686 = vst.msk [vmem:[#allocation3 + $0x58] sm:$0xff] %vm868, %v1678
  %v1687 = vld [vmem:[#allocation3] sm:$0xff]
  %v1688 = vld [vmem:[#allocation3 + $0x8] sm:$0xff]
  %v1689 = vld [vmem:[#allocation3 + $0x10] sm:$0xff]
  %v1690 = vld [vmem:[#allocation3 + $0x18] sm:$0xff]
  %v1691 = vld [vmem:[#allocation3 + $0x20] sm:$0xff]
  %v1692 = vld [vmem:[#allocation3 + $0x28] sm:$0xff]
  %v1693 = vld [vmem:[#allocation3 + $0x30] sm:$0xff]
  %v1694 = vld [vmem:[#allocation3 + $0x38] sm:$0xff]
  %v1695 = vld [vmem:[#allocation3 + $0x40] sm:$0xff]
  %v1696 = vld [vmem:[#allocation3 + $0x48] sm:$0xff]
  %v1697 = vld [vmem:[#allocation3 + $0x50] sm:$0xff]
  %v1698 = vld [vmem:[#allocation3 + $0x58] sm:$0xff]
  %1711 = vrot.lane.b32.xlu0 %v1687, 127
  %v1712 = vpop.permute.xlu0 %1711
  %1713 = vrot.lane.b32.xlu0 %v1688, 127
  %v1714 = vpop.permute.xlu0 %1713
  %1715 = vrot.lane.b32.xlu0 %v1689, 127
  %v1716 = vpop.permute.xlu0 %1715
  %1717 = vrot.lane.b32.xlu0 %v1690, 127
  %v1718 = vpop.permute.xlu0 %1717
  %1719 = vrot.lane.b32.xlu0 %v1691, 127
  %v1720 = vpop.permute.xlu0 %1719
  %1721 = vrot.lane.b32.xlu0 %v1692, 127
  %v1722 = vpop.permute.xlu0 %1721
  %1723 = vrot.lane.b32.xlu0 %v1693, 127
  %v1724 = vpop.permute.xlu0 %1723
  %1725 = vrot.lane.b32.xlu0 %v1694, 127
  %v1726 = vpop.permute.xlu0 %1725
  %1727 = vrot.lane.b32.xlu0 %v1695, 127
  %v1728 = vpop.permute.xlu0 %1727
  %1729 = vrot.lane.b32.xlu0 %v1696, 127
  %v1730 = vpop.permute.xlu0 %1729
  %1731 = vrot.lane.b32.xlu0 %v1697, 127
  %v1732 = vpop.permute.xlu0 %1731
  %1733 = vrot.lane.b32.xlu0 %v1698, 127
  %v1734 = vpop.permute.xlu0 %1733
  %v1735 = vsel %vm97, %v1712, %v1714
  %v1736 = vsel %vm97, %v1714, %v1716
  %v1737 = vsel %vm97, %v1718, %v1720
  %v1738 = vsel %vm97, %v1720, %v1722
  %v1739 = vsel %vm97, %v1724, %v1726
  %v1740 = vsel %vm97, %v1726, %v1728
  %v1741 = vsel %vm97, %v1730, %v1732
  %v1742 = vsel %vm97, %v1732, %v1734
  %1743 = vrot.lane.b32.xlu0 %v1687, 126
  %v1744 = vpop.permute.xlu0 %1743
  %1745 = vrot.lane.b32.xlu0 %v1688, 126
  %v1746 = vpop.permute.xlu0 %1745
  %1747 = vrot.lane.b32.xlu0 %v1689, 126
  %v1748 = vpop.permute.xlu0 %1747
  %1749 = vrot.lane.b32.xlu0 %v1690, 126
  %v1750 = vpop.permute.xlu0 %1749
  %1751 = vrot.lane.b32.xlu0 %v1691, 126
  %v1752 = vpop.permute.xlu0 %1751
  %1753 = vrot.lane.b32.xlu0 %v1692, 126
  %v1754 = vpop.permute.xlu0 %1753
  %1755 = vrot.lane.b32.xlu0 %v1693, 126
  %v1756 = vpop.permute.xlu0 %1755
  %1757 = vrot.lane.b32.xlu0 %v1694, 126
  %v1758 = vpop.permute.xlu0 %1757
  %1759 = vrot.lane.b32.xlu0 %v1695, 126
  %v1760 = vpop.permute.xlu0 %1759
  %1761 = vrot.lane.b32.xlu0 %v1696, 126
  %v1762 = vpop.permute.xlu0 %1761
  %1763 = vrot.lane.b32.xlu0 %v1697, 126
  %v1764 = vpop.permute.xlu0 %1763
  %1765 = vrot.lane.b32.xlu0 %v1698, 126
  %v1766 = vpop.permute.xlu0 %1765
  %v1767 = vsel %vm130, %v1744, %v1746
  %v1768 = vsel %vm130, %v1746, %v1748
  %v1769 = vsel %vm130, %v1750, %v1752
  %v1770 = vsel %vm130, %v1752, %v1754
  %v1771 = vsel %vm130, %v1756, %v1758
  %v1772 = vsel %vm130, %v1758, %v1760
  %v1773 = vsel %vm130, %v1762, %v1764
  %v1774 = vsel %vm130, %v1764, %v1766
  %s1775 = scalar_lea.vmem %s2, 192
  %v1776 = vld [vmem:[%s1775] sm:$0xff]
  %v1777 = vld [vmem:[%s1775 + $0x8] sm:$0xff]
  %v1778 = vld [vmem:[%s1775 + $0x10] sm:$0xff]
  %v1779 = vld [vmem:[%s1775 + $0x18] sm:$0xff]
  %s1780 = scalar_lea.vmem %s2, 224
  %v1781 = vld [vmem:[%s1780] sm:$0xff]
  %v1782 = vld [vmem:[%s1780 + $0x8] sm:$0xff]
  %v1783 = vld [vmem:[%s1780 + $0x10] sm:$0xff]
  %v1784 = vld [vmem:[%s1780 + $0x18] sm:$0xff]
  %1785 = vrot.lane.b32.xlu0 %v1687, 1
  %v1786 = vpop.permute.xlu0 %1785
  %1787 = vrot.lane.b32.xlu0 %v1688, 1
  %v1788 = vpop.permute.xlu0 %1787
  %1789 = vrot.lane.b32.xlu0 %v1689, 1
  %v1790 = vpop.permute.xlu0 %1789
  %1791 = vrot.lane.b32.xlu0 %v1690, 1
  %v1792 = vpop.permute.xlu0 %1791
  %1793 = vrot.lane.b32.xlu0 %v1691, 1
  %v1794 = vpop.permute.xlu0 %1793
  %1795 = vrot.lane.b32.xlu0 %v1692, 1
  %v1796 = vpop.permute.xlu0 %1795
  %1797 = vrot.lane.b32.xlu0 %v1693, 1
  %v1798 = vpop.permute.xlu0 %1797
  %1799 = vrot.lane.b32.xlu0 %v1694, 1
  %v1800 = vpop.permute.xlu0 %1799
  %1801 = vrot.lane.b32.xlu0 %v1695, 1
  %v1802 = vpop.permute.xlu0 %1801
  %1803 = vrot.lane.b32.xlu0 %v1696, 1
  %v1804 = vpop.permute.xlu0 %1803
  %1805 = vrot.lane.b32.xlu0 %v1697, 1
  %v1806 = vpop.permute.xlu0 %1805
  %1807 = vrot.lane.b32.xlu0 %v1698, 1
  %v1808 = vpop.permute.xlu0 %1807
  %1809 = vrot.lane.b32.xlu0 %v1714, 1
  %v1810 = vpop.permute.xlu0 %1809
  %1811 = vrot.lane.b32.xlu0 %v1736, 1
  %v1812 = vpop.permute.xlu0 %1811
  %1813 = vrot.lane.b32.xlu0 %v1716, 1
  %v1814 = vpop.permute.xlu0 %1813
  %1815 = vrot.lane.b32.xlu0 %v1720, 1
  %v1816 = vpop.permute.xlu0 %1815
  %1817 = vrot.lane.b32.xlu0 %v1738, 1
  %v1818 = vpop.permute.xlu0 %1817
  %1819 = vrot.lane.b32.xlu0 %v1722, 1
  %v1820 = vpop.permute.xlu0 %1819
  %1821 = vrot.lane.b32.xlu0 %v1726, 1
  %v1822 = vpop.permute.xlu0 %1821
  %1823 = vrot.lane.b32.xlu0 %v1740, 1
  %v1824 = vpop.permute.xlu0 %1823
  %1825 = vrot.lane.b32.xlu0 %v1728, 1
  %v1826 = vpop.permute.xlu0 %1825
  %1827 = vrot.lane.b32.xlu0 %v1732, 1
  %v1828 = vpop.permute.xlu0 %1827
  %1829 = vrot.lane.b32.xlu0 %v1742, 1
  %v1830 = vpop.permute.xlu0 %1829
  %1831 = vrot.lane.b32.xlu0 %v1734, 1
  %v1832 = vpop.permute.xlu0 %1831
  %1833 = vrot.lane.b32.xlu0 %v1746, 1
  %v1834 = vpop.permute.xlu0 %1833
  %1835 = vrot.lane.b32.xlu0 %v1768, 1
  %v1836 = vpop.permute.xlu0 %1835
  %1837 = vrot.lane.b32.xlu0 %v1748, 1
  %v1838 = vpop.permute.xlu0 %1837
  %1839 = vrot.lane.b32.xlu0 %v1752, 1
  %v1840 = vpop.permute.xlu0 %1839
  %1841 = vrot.lane.b32.xlu0 %v1770, 1
  %v1842 = vpop.permute.xlu0 %1841
  %1843 = vrot.lane.b32.xlu0 %v1754, 1
  %v1844 = vpop.permute.xlu0 %1843
  %1845 = vrot.lane.b32.xlu0 %v1758, 1
  %v1846 = vpop.permute.xlu0 %1845
  %1847 = vrot.lane.b32.xlu0 %v1772, 1
  %v1848 = vpop.permute.xlu0 %1847
  %1849 = vrot.lane.b32.xlu0 %v1760, 1
  %v1850 = vpop.permute.xlu0 %1849
  %1851 = vrot.lane.b32.xlu0 %v1764, 1
  %v1852 = vpop.permute.xlu0 %1851
  %1853 = vrot.lane.b32.xlu0 %v1774, 1
  %v1854 = vpop.permute.xlu0 %1853
  %1855 = vrot.lane.b32.xlu0 %v1766, 1
  %v1856 = vpop.permute.xlu0 %1855
  %v1857 = vsel %vm220, %v1786, %v1788
  %v1858 = vsel %vm220, %v1788, %v1790
  %v1859 = vsel %vm220, %v1792, %v1794
  %v1860 = vsel %vm220, %v1794, %v1796
  %v1861 = vsel %vm220, %v1798, %v1800
  %v1862 = vsel %vm220, %v1800, %v1802
  %v1863 = vsel %vm220, %v1804, %v1806
  %v1864 = vsel %vm220, %v1806, %v1808
  %v1865 = vsel %vm220, %v1810, %v1812
  %v1866 = vsel %vm220, %v1812, %v1814
  %v1867 = vsel %vm220, %v1816, %v1818
  %v1868 = vsel %vm220, %v1818, %v1820
  %v1869 = vsel %vm220, %v1822, %v1824
  %v1870 = vsel %vm220, %v1824, %v1826
  %v1871 = vsel %vm220, %v1828, %v1830
  %v1872 = vsel %vm220, %v1830, %v1832
  %v1873 = vsel %vm220, %v1834, %v1836
  %v1874 = vsel %vm220, %v1836, %v1838
  %v1875 = vsel %vm220, %v1840, %v1842
  %v1876 = vsel %vm220, %v1842, %v1844
  %v1877 = vsel %vm220, %v1846, %v1848
  %v1878 = vsel %vm220, %v1848, %v1850
  %v1879 = vsel %vm220, %v1852, %v1854
  %v1880 = vsel %vm220, %v1854, %v1856
  %v1906 = vsel %vm269, %v1781, 0
  %v1909 = vsel %vm269, %v1782, 0
  %v1912 = vsel %vm269, %v1783, 0
  %v1915 = vsel %vm269, %v1784, 0
  %1917 = vmatprep.subr.mxu0 %v1858
  %1918 = vmatpush1.msra.mxu0 %v1857
  %1919 = vmatprep.subr.mxu0 %v1860
  %1920 = vmatpush1.msra.mxu0 %v1859
  %1921 = vmatprep.subr.mxu0 %v1862
  %1922 = vmatpush1.msra.mxu0 %v1861
  %1923 = vmatprep.subr.mxu0 %v1864
  %1924 = vmatpush1.msra.mxu0 %v1863
  %1925 = vmatprep.subr.mxu0 %v1866
  %1926 = vmatpush1.msra.mxu0 %v1865
  %1927 = vmatprep.subr.mxu0 %v1868
  %1928 = vmatpush1.msra.mxu0 %v1867
  %1929 = vmatprep.subr.mxu0 %v1870
  %1930 = vmatpush1.msra.mxu0 %v1869
  %1931 = vmatprep.subr.mxu0 %v1872
  %1932 = vmatpush1.msra.mxu0 %v1871
  %1933 = vmatprep.subr.mxu0 %v1874
  %1934 = vmatpush1.msra.mxu0 %v1873
  %1935 = vmatprep.subr.mxu0 %v1876
  %1936 = vmatpush1.msra.mxu0 %v1875
  %1937 = vmatprep.subr.mxu0 %v1878
  %1938 = vmatpush1.msra.mxu0 %v1877
  %1939 = vmatprep.subr.mxu0 %v1880
  %1940 = vmatpush1.msra.mxu0 %v1879
  %1941 = vmatprep.subr.mxu0 0.0
  %1942 = vmatpush1.msra.mxu0 0.0
  %1943 = vmatprep.subr.mxu0 0.0
  %1944 = vmatpush1.msra.mxu0 0.0
  %1945 = vmatprep.subr.mxu0 0.0
  %1946 = vmatpush1.msra.mxu0 0.0
  %1947 = vmatprep.subr.mxu0 0.0
  %1948 = vmatpush1.msra.mxu0 0.0
  %1949 = vmatprep.subr.mxu0 0.0
  %1950 = vmatpush1.msra.mxu0 0.0
  %1951 = vmatprep.subr.mxu0 0.0
  %1952 = vmatpush1.msra.mxu0 0.0
  %1953 = vmatprep.subr.mxu0 0.0
  %1954 = vmatpush1.msra.mxu0 0.0
  %1955 = vmatprep.subr.mxu0 0.0
  %1956 = vmatpush1.msra.mxu0 0.0
  %1957 = vmatprep.subr.mxu0 0.0
  %1958 = vmatpush1.msra.mxu0 0.0
  %1959 = vmatprep.subr.mxu0 0.0
  %1960 = vmatpush1.msra.mxu0 0.0
  %1961 = vmatprep.subr.mxu0 0.0
  %1962 = vmatpush1.msra.mxu0 0.0
  %1963 = vmatprep.subr.mxu0 0.0
  %1964 = vmatpush1.msra.mxu0 0.0
  %1965 = vmatprep.subr.mxu0 0.0
  %1966 = vmatpush1.msra.mxu0 0.0
  %1967 = vmatprep.subr.mxu0 0.0
  %1968 = vmatpush1.msra.mxu0 0.0
  %1969 = vmatprep.subr.mxu0 0.0
  %1970 = vmatpush1.msra.mxu0 0.0
  %1971 = vmatprep.subr.mxu0 0.0
  %1972 = vmatpush1.msra.mxu0 0.0
  %1973 = vmatprep.subr.mxu0 0.0
  %1974 = vmatpush1.msra.mxu0 0.0
  %1975 = vmatprep.subr.mxu0 0.0
  %1976 = vmatpush1.msra.mxu0 0.0
  %1977 = vmatprep.subr.mxu0 0.0
  %1978 = vmatpush1.msra.mxu0 0.0
  %1979 = vmatprep.subr.mxu0 0.0
  %1980 = vmatpush1.msra.mxu0 0.0
  %1981 = vmatprep.mubr.f32.mxu0 0.0
  %1982 = vmatmul.mubr.f32.gmra.mrb[0].mxu0 %v1906
  %v1983 = vpop.f32.mrb[0].mxu0
  %v1984 = vadd.f32 0.0, %v1983
  %v1985 = vpop.f32.mrb[0].mxu0
  %v1986 = vadd.f32 0.0, %v1985
  %1987 = vmatprep.mubr.f32.mxu0 0.0
  %1988 = vmatmul.mubr.f32.gmra.mrb[0].mxu0 %v1909
  %v1989 = vpop.f32.mrb[0].mxu0
  %v1990 = vadd.f32 0.0, %v1989
  %v1991 = vpop.f32.mrb[0].mxu0
  %v1992 = vadd.f32 0.0, %v1991
  %1993 = vmatprep.mubr.f32.mxu0 0.0
  %1994 = vmatmul.mubr.f32.gmra.mrb[0].mxu0 %v1912
  %v1995 = vpop.f32.mrb[0].mxu0
  %v1996 = vadd.f32 0.0, %v1995
  %v1997 = vpop.f32.mrb[0].mxu0
  %v1998 = vadd.f32 0.0, %v1997
  %1999 = vmatprep.mubr.f32.mxu0 0.0
  %2000 = vmatmul.mubr.f32.gmra.mrb[0].mxu0 %v1915
  %v2001 = vpop.f32.mrb[0].mxu0
  %v2002 = vadd.f32 0.0, %v2001
  %v2003 = vpop.f32.mrb[0].mxu0
  %v2004 = vadd.f32 0.0, %v2003
  %2005 = vdwg.mxu0
  %2006 = vrot.lane.b32.xlu0 %v1687, 10
  %v2007 = vpop.permute.xlu0 %2006
  %2008 = vrot.lane.b32.xlu0 %v1688, 10
  %v2009 = vpop.permute.xlu0 %2008
  %2010 = vrot.lane.b32.xlu0 %v1689, 10
  %v2011 = vpop.permute.xlu0 %2010
  %2012 = vrot.lane.b32.xlu0 %v1690, 10
  %v2013 = vpop.permute.xlu0 %2012
  %2014 = vrot.lane.b32.xlu0 %v1691, 10
  %v2015 = vpop.permute.xlu0 %2014
  %2016 = vrot.lane.b32.xlu0 %v1692, 10
  %v2017 = vpop.permute.xlu0 %2016
  %2018 = vrot.lane.b32.xlu0 %v1693, 10
  %v2019 = vpop.permute.xlu0 %2018
  %2020 = vrot.lane.b32.xlu0 %v1694, 10
  %v2021 = vpop.permute.xlu0 %2020
  %2022 = vrot.lane.b32.xlu0 %v1695, 10
  %v2023 = vpop.permute.xlu0 %2022
  %2024 = vrot.lane.b32.xlu0 %v1696, 10
  %v2025 = vpop.permute.xlu0 %2024
  %2026 = vrot.lane.b32.xlu0 %v1697, 10
  %v2027 = vpop.permute.xlu0 %2026
  %2028 = vrot.lane.b32.xlu0 %v1698, 10
  %v2029 = vpop.permute.xlu0 %2028
  %2030 = vrot.lane.b32.xlu0 %v1735, 10
  %v2031 = vpop.permute.xlu0 %2030
  %2032 = vrot.lane.b32.xlu0 %v1736, 10
  %v2033 = vpop.permute.xlu0 %2032
  %2034 = vrot.lane.b32.xlu0 %v1716, 10
  %v2035 = vpop.permute.xlu0 %2034
  %2036 = vrot.lane.b32.xlu0 %v1737, 10
  %v2037 = vpop.permute.xlu0 %2036
  %2038 = vrot.lane.b32.xlu0 %v1738, 10
  %v2039 = vpop.permute.xlu0 %2038
  %2040 = vrot.lane.b32.xlu0 %v1722, 10
  %v2041 = vpop.permute.xlu0 %2040
  %2042 = vrot.lane.b32.xlu0 %v1739, 10
  %v2043 = vpop.permute.xlu0 %2042
  %2044 = vrot.lane.b32.xlu0 %v1740, 10
  %v2045 = vpop.permute.xlu0 %2044
  %2046 = vrot.lane.b32.xlu0 %v1728, 10
  %v2047 = vpop.permute.xlu0 %2046
  %2048 = vrot.lane.b32.xlu0 %v1741, 10
  %v2049 = vpop.permute.xlu0 %2048
  %2050 = vrot.lane.b32.xlu0 %v1742, 10
  %v2051 = vpop.permute.xlu0 %2050
  %2052 = vrot.lane.b32.xlu0 %v1734, 10
  %v2053 = vpop.permute.xlu0 %2052
  %2054 = vrot.lane.b32.xlu0 %v1767, 10
  %v2055 = vpop.permute.xlu0 %2054
  %2056 = vrot.lane.b32.xlu0 %v1768, 10
  %v2057 = vpop.permute.xlu0 %2056
  %2058 = vrot.lane.b32.xlu0 %v1748, 10
  %v2059 = vpop.permute.xlu0 %2058
  %2060 = vrot.lane.b32.xlu0 %v1769, 10
  %v2061 = vpop.permute.xlu0 %2060
  %2062 = vrot.lane.b32.xlu0 %v1770, 10
  %v2063 = vpop.permute.xlu0 %2062
  %2064 = vrot.lane.b32.xlu0 %v1754, 10
  %v2065 = vpop.permute.xlu0 %2064
  %2066 = vrot.lane.b32.xlu0 %v1771, 10
  %v2067 = vpop.permute.xlu0 %2066
  %2068 = vrot.lane.b32.xlu0 %v1772, 10
  %v2069 = vpop.permute.xlu0 %2068
  %2070 = vrot.lane.b32.xlu0 %v1760, 10
  %v2071 = vpop.permute.xlu0 %2070
  %2072 = vrot.lane.b32.xlu0 %v1773, 10
  %v2073 = vpop.permute.xlu0 %2072
  %2074 = vrot.lane.b32.xlu0 %v1774, 10
  %v2075 = vpop.permute.xlu0 %2074
  %2076 = vrot.lane.b32.xlu0 %v1766, 10
  %v2077 = vpop.permute.xlu0 %2076
  %v2078 = vsel %vm443, %v2007, %v2009
  %v2079 = vsel %vm443, %v2009, %v2011
  %v2080 = vsel %vm443, %v2013, %v2015
  %v2081 = vsel %vm443, %v2015, %v2017
  %v2082 = vsel %vm443, %v2019, %v2021
  %v2083 = vsel %vm443, %v2021, %v2023
  %v2084 = vsel %vm443, %v2025, %v2027
  %v2085 = vsel %vm443, %v2027, %v2029
  %v2086 = vsel %vm443, %v2031, %v2033
  %v2087 = vsel %vm443, %v2033, %v2035
  %v2088 = vsel %vm443, %v2037, %v2039
  %v2089 = vsel %vm443, %v2039, %v2041
  %v2090 = vsel %vm443, %v2043, %v2045
  %v2091 = vsel %vm443, %v2045, %v2047
  %v2092 = vsel %vm443, %v2049, %v2051
  %v2093 = vsel %vm443, %v2051, %v2053
  %v2094 = vsel %vm443, %v2055, %v2057
  %v2095 = vsel %vm443, %v2057, %v2059
  %v2096 = vsel %vm443, %v2061, %v2063
  %v2097 = vsel %vm443, %v2063, %v2065
  %v2098 = vsel %vm443, %v2067, %v2069
  %v2099 = vsel %vm443, %v2069, %v2071
  %v2100 = vsel %vm443, %v2073, %v2075
  %v2101 = vsel %vm443, %v2075, %v2077
  %v2127 = vsel %vm269, %v1776, 0
  %v2130 = vsel %vm269, %v1777, 0
  %v2133 = vsel %vm269, %v1778, 0
  %v2136 = vsel %vm269, %v1779, 0
  %2138 = vmatprep.subr.mxu0 %v2079
  %2139 = vmatpush1.msra.mxu0 %v2078
  %2140 = vmatprep.subr.mxu0 %v2081
  %2141 = vmatpush1.msra.mxu0 %v2080
  %2142 = vmatprep.subr.mxu0 %v2083
  %2143 = vmatpush1.msra.mxu0 %v2082
  %2144 = vmatprep.subr.mxu0 %v2085
  %2145 = vmatpush1.msra.mxu0 %v2084
  %2146 = vmatprep.subr.mxu0 %v2087
  %2147 = vmatpush1.msra.mxu0 %v2086
  %2148 = vmatprep.subr.mxu0 %v2089
  %2149 = vmatpush1.msra.mxu0 %v2088
  %2150 = vmatprep.subr.mxu0 %v2091
  %2151 = vmatpush1.msra.mxu0 %v2090
  %2152 = vmatprep.subr.mxu0 %v2093
  %2153 = vmatpush1.msra.mxu0 %v2092
  %2154 = vmatprep.subr.mxu0 %v2095
  %2155 = vmatpush1.msra.mxu0 %v2094
  %2156 = vmatprep.subr.mxu0 %v2097
  %2157 = vmatpush1.msra.mxu0 %v2096
  %2158 = vmatprep.subr.mxu0 %v2099
  %2159 = vmatpush1.msra.mxu0 %v2098
  %2160 = vmatprep.subr.mxu0 %v2101
  %2161 = vmatpush1.msra.mxu0 %v2100
  %2162 = vmatprep.subr.mxu0 0.0
  %2163 = vmatpush1.msra.mxu0 0.0
  %2164 = vmatprep.subr.mxu0 0.0
  %2165 = vmatpush1.msra.mxu0 0.0
  %2166 = vmatprep.subr.mxu0 0.0
  %2167 = vmatpush1.msra.mxu0 0.0
  %2168 = vmatprep.subr.mxu0 0.0
  %2169 = vmatpush1.msra.mxu0 0.0
  %2170 = vmatprep.subr.mxu0 0.0
  %2171 = vmatpush1.msra.mxu0 0.0
  %2172 = vmatprep.subr.mxu0 0.0
  %2173 = vmatpush1.msra.mxu0 0.0
  %2174 = vmatprep.subr.mxu0 0.0
  %2175 = vmatpush1.msra.mxu0 0.0
  %2176 = vmatprep.subr.mxu0 0.0
  %2177 = vmatpush1.msra.mxu0 0.0
  %2178 = vmatprep.subr.mxu0 0.0
  %2179 = vmatpush1.msra.mxu0 0.0
  %2180 = vmatprep.subr.mxu0 0.0
  %2181 = vmatpush1.msra.mxu0 0.0
  %2182 = vmatprep.subr.mxu0 0.0
  %2183 = vmatpush1.msra.mxu0 0.0
  %2184 = vmatprep.subr.mxu0 0.0
  %2185 = vmatpush1.msra.mxu0 0.0
  %2186 = vmatprep.subr.mxu0 0.0
  %2187 = vmatpush1.msra.mxu0 0.0
  %2188 = vmatprep.subr.mxu0 0.0
  %2189 = vmatpush1.msra.mxu0 0.0
  %2190 = vmatprep.subr.mxu0 0.0
  %2191 = vmatpush1.msra.mxu0 0.0
  %2192 = vmatprep.subr.mxu0 0.0
  %2193 = vmatpush1.msra.mxu0 0.0
  %2194 = vmatprep.subr.mxu0 0.0
  %2195 = vmatpush1.msra.mxu0 0.0
  %2196 = vmatprep.subr.mxu0 0.0
  %2197 = vmatpush1.msra.mxu0 0.0
  %2198 = vmatprep.subr.mxu0 0.0
  %2199 = vmatpush1.msra.mxu0 0.0
  %2200 = vmatprep.subr.mxu0 0.0
  %2201 = vmatpush1.msra.mxu0 0.0
  %2202 = vmatprep.mubr.f32.mxu0 0.0
  %2203 = vmatmul.mubr.f32.gmra.mrb[0].mxu0 %v2127
  %v2204 = vpop.f32.mrb[0].mxu0
  %v2205 = vadd.f32 %v1984, %v2204
  %v2206 = vpop.f32.mrb[0].mxu0
  %v2207 = vadd.f32 %v1986, %v2206
  %2208 = vmatprep.mubr.f32.mxu0 0.0
  %2209 = vmatmul.mubr.f32.gmra.mrb[0].mxu0 %v2130
  %v2210 = vpop.f32.mrb[0].mxu0
  %v2211 = vadd.f32 %v1990, %v2210
  %v2212 = vpop.f32.mrb[0].mxu0
  %v2213 = vadd.f32 %v1992, %v2212
  %2214 = vmatprep.mubr.f32.mxu0 0.0
  %2215 = vmatmul.mubr.f32.gmra.mrb[0].mxu0 %v2133
  %v2216 = vpop.f32.mrb[0].mxu0
  %v2217 = vadd.f32 %v1996, %v2216
  %v2218 = vpop.f32.mrb[0].mxu0
  %v2219 = vadd.f32 %v1998, %v2218
  %2220 = vmatprep.mubr.f32.mxu0 0.0
  %2221 = vmatmul.mubr.f32.gmra.mrb[0].mxu0 %v2136
  %v2222 = vpop.f32.mrb[0].mxu0
  %v2223 = vadd.f32 %v2002, %v2222
  %v2224 = vpop.f32.mrb[0].mxu0
  %v2225 = vadd.f32 %v2004, %v2224
  %2226 = vdwg.mxu0
  %s2227 = scalar_lea.vmem %s2, 256
  %v2228 = vld [vmem:[%s2227] sm:$0xff]
  %v2229 = vld [vmem:[%s2227 + $0x8] sm:$0xff]
  %v2230 = vld [vmem:[%s2227 + $0x10] sm:$0xff]
  %v2231 = vld [vmem:[%s2227 + $0x18] sm:$0xff]
  %2232 = vrot.lane.b32.xlu0 %v1688, 120
  %v2233 = vpop.permute.xlu0 %2232
  %2234 = vrot.lane.b32.xlu0 %v1689, 120
  %v2235 = vpop.permute.xlu0 %2234
  %2236 = vrot.lane.b32.xlu0 %v1691, 120
  %v2237 = vpop.permute.xlu0 %2236
  %2238 = vrot.lane.b32.xlu0 %v1692, 120
  %v2239 = vpop.permute.xlu0 %2238
  %2240 = vrot.lane.b32.xlu0 %v1694, 120
  %v2241 = vpop.permute.xlu0 %2240
  %2242 = vrot.lane.b32.xlu0 %v1695, 120
  %v2243 = vpop.permute.xlu0 %2242
  %2244 = vrot.lane.b32.xlu0 %v1697, 120
  %v2245 = vpop.permute.xlu0 %2244
  %2246 = vrot.lane.b32.xlu0 %v1698, 120
  %v2247 = vpop.permute.xlu0 %2246
  %2248 = vrot.lane.b32.xlu0 %v1736, 120
  %v2249 = vpop.permute.xlu0 %2248
  %2250 = vrot.lane.b32.xlu0 %v1716, 120
  %v2251 = vpop.permute.xlu0 %2250
  %2252 = vrot.lane.b32.xlu0 %v1738, 120
  %v2253 = vpop.permute.xlu0 %2252
  %2254 = vrot.lane.b32.xlu0 %v1722, 120
  %v2255 = vpop.permute.xlu0 %2254
  %2256 = vrot.lane.b32.xlu0 %v1740, 120
  %v2257 = vpop.permute.xlu0 %2256
  %2258 = vrot.lane.b32.xlu0 %v1728, 120
  %v2259 = vpop.permute.xlu0 %2258
  %2260 = vrot.lane.b32.xlu0 %v1742, 120
  %v2261 = vpop.permute.xlu0 %2260
  %2262 = vrot.lane.b32.xlu0 %v1734, 120
  %v2263 = vpop.permute.xlu0 %2262
  %2264 = vrot.lane.b32.xlu0 %v1768, 120
  %v2265 = vpop.permute.xlu0 %2264
  %2266 = vrot.lane.b32.xlu0 %v1748, 120
  %v2267 = vpop.permute.xlu0 %2266
  %2268 = vrot.lane.b32.xlu0 %v1770, 120
  %v2269 = vpop.permute.xlu0 %2268
  %2270 = vrot.lane.b32.xlu0 %v1754, 120
  %v2271 = vpop.permute.xlu0 %2270
  %2272 = vrot.lane.b32.xlu0 %v1772, 120
  %v2273 = vpop.permute.xlu0 %2272
  %2274 = vrot.lane.b32.xlu0 %v1760, 120
  %v2275 = vpop.permute.xlu0 %2274
  %2276 = vrot.lane.b32.xlu0 %v1774, 120
  %v2277 = vpop.permute.xlu0 %2276
  %2278 = vrot.lane.b32.xlu0 %v1766, 120
  %v2279 = vpop.permute.xlu0 %2278
  %v2280 = vsel %vm646, %v2233, %v2235
  %v2281 = vsel %vm646, %v2237, %v2239
  %v2282 = vsel %vm646, %v2241, %v2243
  %v2283 = vsel %vm646, %v2245, %v2247
  %v2284 = vsel %vm646, %v2249, %v2251
  %v2285 = vsel %vm646, %v2253, %v2255
  %v2286 = vsel %vm646, %v2257, %v2259
  %v2287 = vsel %vm646, %v2261, %v2263
  %v2288 = vsel %vm646, %v2265, %v2267
  %v2289 = vsel %vm646, %v2269, %v2271
  %v2290 = vsel %vm646, %v2273, %v2275
  %v2291 = vsel %vm646, %v2277, %v2279
  %v2317 = vsel %vm269, %v2228, 0
  %v2320 = vsel %vm269, %v2229, 0
  %v2323 = vsel %vm269, %v2230, 0
  %v2326 = vsel %vm269, %v2231, 0
  %2328 = vmatprep.subr.mxu0 %v2235
  %2329 = vmatpush1.msra.mxu0 %v2280
  %2330 = vmatprep.subr.mxu0 %v2239
  %2331 = vmatpush1.msra.mxu0 %v2281
  %2332 = vmatprep.subr.mxu0 %v2243
  %2333 = vmatpush1.msra.mxu0 %v2282
  %2334 = vmatprep.subr.mxu0 %v2247
  %2335 = vmatpush1.msra.mxu0 %v2283
  %2336 = vmatprep.subr.mxu0 %v2251
  %2337 = vmatpush1.msra.mxu0 %v2284
  %2338 = vmatprep.subr.mxu0 %v2255
  %2339 = vmatpush1.msra.mxu0 %v2285
  %2340 = vmatprep.subr.mxu0 %v2259
  %2341 = vmatpush1.msra.mxu0 %v2286
  %2342 = vmatprep.subr.mxu0 %v2263
  %2343 = vmatpush1.msra.mxu0 %v2287
  %2344 = vmatprep.subr.mxu0 %v2267
  %2345 = vmatpush1.msra.mxu0 %v2288
  %2346 = vmatprep.subr.mxu0 %v2271
  %2347 = vmatpush1.msra.mxu0 %v2289
  %2348 = vmatprep.subr.mxu0 %v2275
  %2349 = vmatpush1.msra.mxu0 %v2290
  %2350 = vmatprep.subr.mxu0 %v2279
  %2351 = vmatpush1.msra.mxu0 %v2291
  %2352 = vmatprep.subr.mxu0 0.0
  %2353 = vmatpush1.msra.mxu0 0.0
  %2354 = vmatprep.subr.mxu0 0.0
  %2355 = vmatpush1.msra.mxu0 0.0
  %2356 = vmatprep.subr.mxu0 0.0
  %2357 = vmatpush1.msra.mxu0 0.0
  %2358 = vmatprep.subr.mxu0 0.0
  %2359 = vmatpush1.msra.mxu0 0.0
  %2360 = vmatprep.subr.mxu0 0.0
  %2361 = vmatpush1.msra.mxu0 0.0
  %2362 = vmatprep.subr.mxu0 0.0
  %2363 = vmatpush1.msra.mxu0 0.0
  %2364 = vmatprep.subr.mxu0 0.0
  %2365 = vmatpush1.msra.mxu0 0.0
  %2366 = vmatprep.subr.mxu0 0.0
  %2367 = vmatpush1.msra.mxu0 0.0
  %2368 = vmatprep.subr.mxu0 0.0
  %2369 = vmatpush1.msra.mxu0 0.0
  %2370 = vmatprep.subr.mxu0 0.0
  %2371 = vmatpush1.msra.mxu0 0.0
  %2372 = vmatprep.subr.mxu0 0.0
  %2373 = vmatpush1.msra.mxu0 0.0
  %2374 = vmatprep.subr.mxu0 0.0
  %2375 = vmatpush1.msra.mxu0 0.0
  %2376 = vmatprep.subr.mxu0 0.0
  %2377 = vmatpush1.msra.mxu0 0.0
  %2378 = vmatprep.subr.mxu0 0.0
  %2379 = vmatpush1.msra.mxu0 0.0
  %2380 = vmatprep.subr.mxu0 0.0
  %2381 = vmatpush1.msra.mxu0 0.0
  %2382 = vmatprep.subr.mxu0 0.0
  %2383 = vmatpush1.msra.mxu0 0.0
  %2384 = vmatprep.subr.mxu0 0.0
  %2385 = vmatpush1.msra.mxu0 0.0
  %2386 = vmatprep.subr.mxu0 0.0
  %2387 = vmatpush1.msra.mxu0 0.0
  %2388 = vmatprep.subr.mxu0 0.0
  %2389 = vmatpush1.msra.mxu0 0.0
  %2390 = vmatprep.subr.mxu0 0.0
  %2391 = vmatpush1.msra.mxu0 0.0
  %2392 = vmatprep.mubr.f32.mxu0 0.0
  %2393 = vmatmul.mubr.f32.gmra.mrb[0].mxu0 %v2317
  %v2394 = vpop.f32.mrb[0].mxu0
  %v2395 = vadd.f32 0.0, %v2394
  %v2396 = vpop.f32.mrb[0].mxu0
  %v2397 = vadd.f32 0.0, %v2396
  %2398 = vmatprep.mubr.f32.mxu0 0.0
  %2399 = vmatmul.mubr.f32.gmra.mrb[0].mxu0 %v2320
  %v2400 = vpop.f32.mrb[0].mxu0
  %v2401 = vadd.f32 0.0, %v2400
  %v2402 = vpop.f32.mrb[0].mxu0
  %v2403 = vadd.f32 0.0, %v2402
  %2404 = vmatprep.mubr.f32.mxu0 0.0
  %2405 = vmatmul.mubr.f32.gmra.mrb[0].mxu0 %v2323
  %v2406 = vpop.f32.mrb[0].mxu0
  %v2407 = vadd.f32 0.0, %v2406
  %v2408 = vpop.f32.mrb[0].mxu0
  %v2409 = vadd.f32 0.0, %v2408
  %2410 = vmatprep.mubr.f32.mxu0 0.0
  %2411 = vmatmul.mubr.f32.gmra.mrb[0].mxu0 %v2326
  %v2412 = vpop.f32.mrb[0].mxu0
  %v2413 = vadd.f32 0.0, %v2412
  %v2414 = vpop.f32.mrb[0].mxu0
  %v2415 = vadd.f32 0.0, %v2414
  %2416 = vdwg.mxu0
  %v2417 = vadd.f32 %v2205, %v2395
  %v2418 = vadd.f32 %v2207, %v2397
  %v2419 = vadd.f32 %v2211, %v2401
  %v2420 = vadd.f32 %v2213, %v2403
  %v2421 = vadd.f32 %v2217, %v2407
  %v2422 = vadd.f32 %v2219, %v2409
  %v2423 = vadd.f32 %v2223, %v2413
  %v2424 = vadd.f32 %v2225, %v2415
  %s2425 = scalar_lea.vmem %s3, 64
  %v2426 = vld [vmem:[%s2425] sm:$0xff]
  %v2427 = vld [vmem:[%s2425 + $0x8] sm:$0xff]
  %v2428 = vld [vmem:[%s2425 + $0x10] sm:$0xff]
  %v2429 = vld [vmem:[%s2425 + $0x18] sm:$0xff]
  %2431 = vset.pattern.permute.xlu0 0
  %2432 = vperm.xlu0 %2431, %v2426
  %v2433 = vpop.permute.xlu0 %2432
  %2436 = vset.pattern.permute.xlu0 0
  %2437 = vperm.xlu0 %2436, %v2427
  %v2438 = vpop.permute.xlu0 %2437
  %2441 = vset.pattern.permute.xlu0 0
  %2442 = vperm.xlu0 %2441, %v2428
  %v2443 = vpop.permute.xlu0 %2442
  %2446 = vset.pattern.permute.xlu0 0
  %2447 = vperm.xlu0 %2446, %v2429
  %v2448 = vpop.permute.xlu0 %2447
  %v2450 = vadd.f32 %v2417, %v2433
  %v2451 = vadd.f32 %v2418, %v2433
  %v2452 = vadd.f32 %v2419, %v2438
  %v2453 = vadd.f32 %v2420, %v2438
  %v2454 = vadd.f32 %v2421, %v2443
  %v2455 = vadd.f32 %v2422, %v2443
  %v2456 = vadd.f32 %v2423, %v2448
  %v2457 = vadd.f32 %v2424, %v2448
  %vm2458 = vcmp.ge.f32.partialorder %v2450, 0.0
  %vm2459 = vcmp.ge.f32.partialorder %v2451, 0.0
  %vm2460 = vcmp.ge.f32.partialorder %v2452, 0.0
  %vm2461 = vcmp.ge.f32.partialorder %v2453, 0.0
  %vm2462 = vcmp.ge.f32.partialorder %v2454, 0.0
  %vm2463 = vcmp.ge.f32.partialorder %v2455, 0.0
  %vm2464 = vcmp.ge.f32.partialorder %v2456, 0.0
  %vm2465 = vcmp.ge.f32.partialorder %v2457, 0.0
  %v2466 = vmul.f32 %v2450, 0.01
  %v2467 = vmul.f32 %v2451, 0.01
  %v2468 = vmul.f32 %v2452, 0.01
  %v2469 = vmul.f32 %v2453, 0.01
  %v2470 = vmul.f32 %v2454, 0.01
  %v2471 = vmul.f32 %v2455, 0.01
  %v2472 = vmul.f32 %v2456, 0.01
  %v2473 = vmul.f32 %v2457, 0.01
  %v2474 = vsel %vm2458, %v2450, %v2466
  %v2475 = vsel %vm2459, %v2451, %v2467
  %v2476 = vsel %vm2460, %v2452, %v2468
  %v2477 = vsel %vm2461, %v2453, %v2469
  %v2478 = vsel %vm2462, %v2454, %v2470
  %v2479 = vsel %vm2463, %v2455, %v2471
  %v2480 = vsel %vm2464, %v2456, %v2472
  %v2481 = vsel %vm2465, %v2457, %v2473
  %v2482 = vmul.f32 %v2474, %v852
  %v2483 = vmul.f32 %v2475, %v856
  %v2484 = vmul.f32 %v2476, %v852
  %v2485 = vmul.f32 %v2477, %v856
  %v2486 = vmul.f32 %v2478, %v852
  %v2487 = vmul.f32 %v2479, %v856
  %v2488 = vmul.f32 %v2480, %v852
  %v2489 = vmul.f32 %v2481, %v856
  %v2490 = vlaneseq
  %v2491 = vshrl.u32 %v2490, 7
  %v2492 = vadd.s32 %v2491, 8
  %v2493 = vadd.s32 %v2491, 16
  %v2494 = vadd.s32 %v2491, 24
  %v2495 = vadd.s32 %v2491, 32
  %v2496 = vadd.s32 %v2491, 40
  %v2497 = vadd.s32 %v2491, 48
  %v2498 = vadd.s32 %v2491, 56
  %v2499 = vadd.s32 %v2491, 64
  %v2500 = vadd.s32 %v2491, 72
  %v2501 = vadd.s32 %v2491, 80
  %v2502 = vadd.s32 %v2491, 88
  %v2503 = vadd.s32 %v2491, 96
  %v2504 = vadd.s32 %v2491, 104
  %v2505 = vadd.s32 %v2491, 112
  %v2506 = vadd.s32 %v2491, 120
  %v2507 = vadd.s32 %v2491, 128
  %v2508 = vadd.s32 %v2491, 136
  %v2509 = vadd.s32 %v2491, 144
  %v2510 = vadd.s32 %v2491, 152
  %v2511 = vadd.s32 %v2491, 160
  %v2512 = vlaneseq
  %v2513 = vand.u32 %v2512, 127
  %v2514 = vmul.u32 %v2513, 81
  %vm2515 = vcmp.ge.s32.totalorder %v2491, %v2514
  %vm2516 = vcmp.ge.s32.totalorder %v2492, %v2514
  %vm2517 = vcmp.ge.s32.totalorder %v2493, %v2514
  %vm2518 = vcmp.ge.s32.totalorder %v2494, %v2514
  %vm2519 = vcmp.ge.s32.totalorder %v2495, %v2514
  %vm2520 = vcmp.ge.s32.totalorder %v2496, %v2514
  %vm2521 = vcmp.ge.s32.totalorder %v2497, %v2514
  %vm2522 = vcmp.ge.s32.totalorder %v2498, %v2514
  %vm2523 = vcmp.ge.s32.totalorder %v2499, %v2514
  %vm2524 = vcmp.ge.s32.totalorder %v2500, %v2514
  %vm2525 = vcmp.ge.s32.totalorder %v2501, %v2514
  %vm2526 = vcmp.ge.s32.totalorder %v2502, %v2514
  %vm2527 = vcmp.ge.s32.totalorder %v2503, %v2514
  %vm2528 = vcmp.ge.s32.totalorder %v2504, %v2514
  %vm2529 = vcmp.ge.s32.totalorder %v2505, %v2514
  %vm2530 = vcmp.ge.s32.totalorder %v2506, %v2514
  %vm2531 = vcmp.ge.s32.totalorder %v2507, %v2514
  %vm2532 = vcmp.ge.s32.totalorder %v2508, %v2514
  %vm2533 = vcmp.ge.s32.totalorder %v2509, %v2514
  %vm2534 = vcmp.ge.s32.totalorder %v2510, %v2514
  %vm2535 = vcmp.ge.s32.totalorder %v2511, %v2514
  %v2536 = vadd.s32 %v2513, 1
  %v2537 = vmul.u32 %v2536, 81
  %vm2538 = vcmp.lt.s32.totalorder %v2491, %v2537
  %vm2539 = vcmp.lt.s32.totalorder %v2492, %v2537
  %vm2540 = vcmp.lt.s32.totalorder %v2493, %v2537
  %vm2541 = vcmp.lt.s32.totalorder %v2494, %v2537
  %vm2542 = vcmp.lt.s32.totalorder %v2495, %v2537
  %vm2543 = vcmp.lt.s32.totalorder %v2496, %v2537
  %vm2544 = vcmp.lt.s32.totalorder %v2497, %v2537
  %vm2545 = vcmp.lt.s32.totalorder %v2498, %v2537
  %vm2546 = vcmp.lt.s32.totalorder %v2499, %v2537
  %vm2547 = vcmp.lt.s32.totalorder %v2500, %v2537
  %vm2548 = vcmp.lt.s32.totalorder %v2501, %v2537
  %vm2549 = vcmp.lt.s32.totalorder %v2502, %v2537
  %vm2550 = vcmp.lt.s32.totalorder %v2503, %v2537
  %vm2551 = vcmp.lt.s32.totalorder %v2504, %v2537
  %vm2552 = vcmp.lt.s32.totalorder %v2505, %v2537
  %vm2553 = vcmp.lt.s32.totalorder %v2506, %v2537
  %vm2554 = vcmp.lt.s32.totalorder %v2507, %v2537
  %vm2555 = vcmp.lt.s32.totalorder %v2508, %v2537
  %vm2556 = vcmp.lt.s32.totalorder %v2509, %v2537
  %vm2557 = vcmp.lt.s32.totalorder %v2510, %v2537
  %vm2558 = vcmp.lt.s32.totalorder %v2511, %v2537
  %vm2559 = vmand %vm2515, %vm2538
  %vm2560 = vmand %vm2516, %vm2539
  %vm2561 = vmand %vm2517, %vm2540
  %vm2562 = vmand %vm2518, %vm2541
  %vm2563 = vmand %vm2519, %vm2542
  %vm2564 = vmand %vm2520, %vm2543
  %vm2565 = vmand %vm2521, %vm2544
  %vm2566 = vmand %vm2522, %vm2545
  %vm2567 = vmand %vm2523, %vm2546
  %vm2568 = vmand %vm2524, %vm2547
  %vm2569 = vmand %vm2525, %vm2548
  %vm2570 = vmand %vm2526, %vm2549
  %vm2571 = vmand %vm2527, %vm2550
  %vm2572 = vmand %vm2528, %vm2551
  %vm2573 = vmand %vm2529, %vm2552
  %vm2574 = vmand %vm2530, %vm2553
  %vm2575 = vmand %vm2531, %vm2554
  %vm2576 = vmand %vm2532, %vm2555
  %vm2577 = vmand %vm2533, %vm2556
  %vm2578 = vmand %vm2534, %vm2557
  %vm2579 = vmand %vm2535, %vm2558
  %v2580 = vsel %vm2559, 0.020408163, 0.0
  %v2581 = vsel %vm2560, 0.020408163, 0.0
  %v2582 = vsel %vm2561, 0.020408163, 0.0
  %v2583 = vsel %vm2562, 0.020408163, 0.0
  %v2584 = vsel %vm2563, 0.020408163, 0.0
  %v2585 = vsel %vm2564, 0.020408163, 0.0
  %v2586 = vsel %vm2565, 0.020408163, 0.0
  %v2587 = vsel %vm2566, 0.020408163, 0.0
  %v2588 = vsel %vm2567, 0.020408163, 0.0
  %v2589 = vsel %vm2568, 0.020408163, 0.0
  %v2590 = vsel %vm2569, 0.020408163, 0.0
  %v2591 = vsel %vm2570, 0.020408163, 0.0
  %v2592 = vsel %vm2571, 0.020408163, 0.0
  %v2593 = vsel %vm2572, 0.020408163, 0.0
  %v2594 = vsel %vm2573, 0.020408163, 0.0
  %v2595 = vsel %vm2574, 0.020408163, 0.0
  %v2596 = vsel %vm2575, 0.020408163, 0.0
  %v2597 = vsel %vm2576, 0.020408163, 0.0
  %v2598 = vsel %vm2577, 0.020408163, 0.0
  %v2599 = vsel %vm2578, 0.020408163, 0.0
  %v2600 = vsel %vm2579, 0.020408163, 0.0
  %v2602 = vsel %vm868, %v2483, 0
  %v2605 = vsel %vm868, %v2485, 0
  %v2608 = vsel %vm868, %v2487, 0
  %v2611 = vsel %vm868, %v2489, 0
  %vm2613 = vcmask 1041408
  %v2615 = vsel %vm2613, %v2600, 0
  %2617 = vmatprep.subr.mxu0 0.0
  %2618 = vmatpush1.msra.mxu0 %v2580
  %2619 = vmatprep.subr.mxu0 0.0
  %2620 = vmatpush1.msra.mxu0 %v2581
  %2621 = vmatprep.subr.mxu0 0.0
  %2622 = vmatpush1.msra.mxu0 %v2582
  %2623 = vmatprep.subr.mxu0 0.0
  %2624 = vmatpush1.msra.mxu0 %v2583
  %2625 = vmatprep.subr.mxu0 0.0
  %2626 = vmatpush1.msra.mxu0 %v2584
  %2627 = vmatprep.subr.mxu0 0.0
  %2628 = vmatpush1.msra.mxu0 %v2585
  %2629 = vmatprep.subr.mxu0 0.0
  %2630 = vmatpush1.msra.mxu0 %v2586
  %2631 = vmatprep.subr.mxu0 0.0
  %2632 = vmatpush1.msra.mxu0 %v2587
  %2633 = vmatprep.subr.mxu0 0.0
  %2634 = vmatpush1.msra.mxu0 %v2588
  %2635 = vmatprep.subr.mxu0 0.0
  %2636 = vmatpush1.msra.mxu0 %v2589
  %2637 = vmatprep.subr.mxu0 0.0
  %2638 = vmatpush1.msra.mxu0 %v2590
  %2639 = vmatprep.subr.mxu0 0.0
  %2640 = vmatpush1.msra.mxu0 %v2591
  %2641 = vmatprep.subr.mxu0 0.0
  %2642 = vmatpush1.msra.mxu0 %v2592
  %2643 = vmatprep.subr.mxu0 0.0
  %2644 = vmatpush1.msra.mxu0 %v2593
  %2645 = vmatprep.subr.mxu0 0.0
  %2646 = vmatpush1.msra.mxu0 %v2594
  %2647 = vmatprep.subr.mxu0 0.0
  %2648 = vmatpush1.msra.mxu0 %v2595
  %2649 = vmatprep.subr.mxu0 0.0
  %2650 = vmatpush1.msra.mxu0 %v2596
  %2651 = vmatprep.subr.mxu0 0.0
  %2652 = vmatpush1.msra.mxu0 %v2597
  %2653 = vmatprep.subr.mxu0 0.0
  %2654 = vmatpush1.msra.mxu0 %v2598
  %2655 = vmatprep.subr.mxu0 0.0
  %2656 = vmatpush1.msra.mxu0 %v2599
  %2657 = vmatprep.subr.mxu0 0.0
  %2658 = vmatpush1.msra.mxu0 %v2615
  %2659 = vmatprep.subr.mxu0 0.0
  %2660 = vmatpush1.msra.mxu0 0.0
  %2661 = vmatprep.subr.mxu0 0.0
  %2662 = vmatpush1.msra.mxu0 0.0
  %2663 = vmatprep.subr.mxu0 0.0
  %2664 = vmatpush1.msra.mxu0 0.0
  %2665 = vmatprep.subr.mxu0 0.0
  %2666 = vmatpush1.msra.mxu0 0.0
  %2667 = vmatprep.subr.mxu0 0.0
  %2668 = vmatpush1.msra.mxu0 0.0
  %2669 = vmatprep.subr.mxu0 0.0
  %2670 = vmatpush1.msra.mxu0 0.0
  %2671 = vmatprep.subr.mxu0 0.0
  %2672 = vmatpush1.msra.mxu0 0.0
  %2673 = vmatprep.subr.mxu0 0.0
  %2674 = vmatpush1.msra.mxu0 0.0
  %2675 = vmatprep.subr.mxu0 0.0
  %2676 = vmatpush1.msra.mxu0 0.0
  %2677 = vmatprep.subr.mxu0 0.0
  %2678 = vmatpush1.msra.mxu0 0.0
  %2679 = vmatprep.subr.mxu0 0.0
  %2680 = vmatpush1.msra.mxu0 0.0
  %2681 = vmatprep.mubr.f32.mxu0 %v2602
  %2682 = vmatmul.mubr.f32.gmra.mrb[0].mxu0 %v2482
  %v2683 = vpop.f32.mrb[0].mxu0
  %v2684 = vadd.f32 0.0, %v2683
  %v2685 = vpop.f32.mrb[0].mxu0
  %2686 = vmatprep.mubr.f32.mxu0 %v2605
  %2687 = vmatmul.mubr.f32.gmra.mrb[0].mxu0 %v2484
  %v2688 = vpop.f32.mrb[0].mxu0
  %v2689 = vadd.f32 0.0, %v2688
  %v2690 = vpop.f32.mrb[0].mxu0
  %2691 = vmatprep.mubr.f32.mxu0 %v2608
  %2692 = vmatmul.mubr.f32.gmra.mrb[0].mxu0 %v2486
  %v2693 = vpop.f32.mrb[0].mxu0
  %v2694 = vadd.f32 0.0, %v2693
  %v2695 = vpop.f32.mrb[0].mxu0
  %2696 = vmatprep.mubr.f32.mxu0 %v2611
  %2697 = vmatmul.mubr.f32.gmra.mrb[0].mxu0 %v2488
  %v2698 = vpop.f32.mrb[0].mxu0
  %v2699 = vadd.f32 0.0, %v2698
  %v2700 = vpop.f32.mrb[0].mxu0
  %2701 = vdwg.mxu0
  %v2702 = vld [vmem:[%s4] sm:$0xff]
  %v2703 = vld [vmem:[%s4 + $0x8] sm:$0xff]
  %v2704 = vld [vmem:[%s4 + $0x10] sm:$0xff]
  %v2705 = vld [vmem:[%s4 + $0x18] sm:$0xff]
  %s2706 = scalar_lea.vmem %s3, 96
  %v2707 = vld [vmem:[%s2706] sm:$0xff]
  %v2708 = vld [vmem:[%s2706 + $0x8] sm:$0xff]
  %v2709 = vld [vmem:[%s2706 + $0x10] sm:$0xff]
  %v2710 = vld [vmem:[%s2706 + $0x18] sm:$0xff]
  %2712 = vset.pattern.permute.xlu0 0
  %2713 = vperm.xlu0 %2712, %v2707
  %v2714 = vpop.permute.xlu0 %2713
  %2717 = vset.pattern.permute.xlu0 0
  %2718 = vperm.xlu0 %2717, %v2708
  %v2719 = vpop.permute.xlu0 %2718
  %2722 = vset.pattern.permute.xlu0 0
  %2723 = vperm.xlu0 %2722, %v2709
  %v2724 = vpop.permute.xlu0 %2723
  %2727 = vset.pattern.permute.xlu0 0
  %2728 = vperm.xlu0 %2727, %v2710
  %v2729 = vpop.permute.xlu0 %2728
  %vm2731 = vcmask 261120
  %v2733 = vsel %vm2731, %v2702, 0
  %v2736 = vsel %vm2731, %v2703, 0
  %v2739 = vsel %vm2731, %v2704, 0
  %v2742 = vsel %vm2731, %v2705, 0
  %2744 = vmatprep.subr.mxu0 0.0
  %2745 = vmatpush1.msra.mxu0 %v2684
  %2746 = vmatprep.subr.mxu0 0.0
  %2747 = vmatpush1.msra.mxu0 %v2689
  %2748 = vmatprep.subr.mxu0 0.0
  %2749 = vmatpush1.msra.mxu0 %v2694
  %2750 = vmatprep.subr.mxu0 0.0
  %2751 = vmatpush1.msra.mxu0 %v2699
  %2752 = vmatprep.subr.mxu0 0.0
  %2753 = vmatpush1.msra.mxu0 0.0
  %2754 = vmatprep.subr.mxu0 0.0
  %2755 = vmatpush1.msra.mxu0 0.0
  %2756 = vmatprep.subr.mxu0 0.0
  %2757 = vmatpush1.msra.mxu0 0.0
  %2758 = vmatprep.subr.mxu0 0.0
  %2759 = vmatpush1.msra.mxu0 0.0
  %2760 = vmatprep.subr.mxu0 0.0
  %2761 = vmatpush1.msra.mxu0 0.0
  %2762 = vmatprep.subr.mxu0 0.0
  %2763 = vmatpush1.msra.mxu0 0.0
  %2764 = vmatprep.subr.mxu0 0.0
  %2765 = vmatpush1.msra.mxu0 0.0
  %2766 = vmatprep.subr.mxu0 0.0
  %2767 = vmatpush1.msra.mxu0 0.0
  %2768 = vmatprep.subr.mxu0 0.0
  %2769 = vmatpush1.msra.mxu0 0.0
  %2770 = vmatprep.subr.mxu0 0.0
  %2771 = vmatpush1.msra.mxu0 0.0
  %2772 = vmatprep.subr.mxu0 0.0
  %2773 = vmatpush1.msra.mxu0 0.0
  %2774 = vmatprep.subr.mxu0 0.0
  %2775 = vmatpush1.msra.mxu0 0.0
  %2776 = vmatprep.subr.mxu0 0.0
  %2777 = vmatpush1.msra.mxu0 0.0
  %2778 = vmatprep.subr.mxu0 0.0
  %2779 = vmatpush1.msra.mxu0 0.0
  %2780 = vmatprep.subr.mxu0 0.0
  %2781 = vmatpush1.msra.mxu0 0.0
  %2782 = vmatprep.subr.mxu0 0.0
  %2783 = vmatpush1.msra.mxu0 0.0
  %2784 = vmatprep.subr.mxu0 0.0
  %2785 = vmatpush1.msra.mxu0 0.0
  %2786 = vmatprep.subr.mxu0 0.0
  %2787 = vmatpush1.msra.mxu0 0.0
  %2788 = vmatprep.subr.mxu0 0.0
  %2789 = vmatpush1.msra.mxu0 0.0
  %2790 = vmatprep.subr.mxu0 0.0
  %2791 = vmatpush1.msra.mxu0 0.0
  %2792 = vmatprep.subr.mxu0 0.0
  %2793 = vmatpush1.msra.mxu0 0.0
  %2794 = vmatprep.subr.mxu0 0.0
  %2795 = vmatpush1.msra.mxu0 0.0
  %2796 = vmatprep.subr.mxu0 0.0
  %2797 = vmatpush1.msra.mxu0 0.0
  %2798 = vmatprep.subr.mxu0 0.0
  %2799 = vmatpush1.msra.mxu0 0.0
  %2800 = vmatprep.subr.mxu0 0.0
  %2801 = vmatpush1.msra.mxu0 0.0
  %2802 = vmatprep.subr.mxu0 0.0
  %2803 = vmatpush1.msra.mxu0 0.0
  %2804 = vmatprep.subr.mxu0 0.0
  %2805 = vmatpush1.msra.mxu0 0.0
  %2806 = vmatprep.subr.mxu0 0.0
  %2807 = vmatpush1.msra.mxu0 0.0
  %2808 = vmatprep.mubr.f32.mxu0 0.0
  %2809 = vmatmul.mubr.f32.gmra.mrb[0].mxu0 %v2733
  %v2810 = vpop.f32.mrb[0].mxu0
  %v2811 = vadd.f32 %v2714, %v2810
  %v2812 = vpop.f32.mrb[0].mxu0
  %2813 = vmatprep.mubr.f32.mxu0 0.0
  %2814 = vmatmul.mubr.f32.gmra.mrb[0].mxu0 %v2736
  %v2815 = vpop.f32.mrb[0].mxu0
  %v2816 = vadd.f32 %v2719, %v2815
  %v2817 = vpop.f32.mrb[0].mxu0
  %2818 = vmatprep.mubr.f32.mxu0 0.0
  %2819 = vmatmul.mubr.f32.gmra.mrb[0].mxu0 %v2739
  %v2820 = vpop.f32.mrb[0].mxu0
  %v2821 = vadd.f32 %v2724, %v2820
  %v2822 = vpop.f32.mrb[0].mxu0
  %2823 = vmatprep.mubr.f32.mxu0 0.0
  %2824 = vmatmul.mubr.f32.gmra.mrb[0].mxu0 %v2742
  %v2825 = vpop.f32.mrb[0].mxu0
  %v2826 = vadd.f32 %v2729, %v2825
  %v2827 = vpop.f32.mrb[0].mxu0
  %2828 = vdwg.mxu0
  %vm2829 = vcmp.ge.f32.partialorder %v2811, 0.0
  %vm2830 = vcmp.ge.f32.partialorder %v2816, 0.0
  %vm2831 = vcmp.ge.f32.partialorder %v2821, 0.0
  %vm2832 = vcmp.ge.f32.partialorder %v2826, 0.0
  %v2833 = vmul.f32 %v2811, 0.01
  %v2834 = vmul.f32 %v2816, 0.01
  %v2835 = vmul.f32 %v2821, 0.01
  %v2836 = vmul.f32 %v2826, 0.01
  %v2837 = vsel %vm2829, %v2811, %v2833
  %v2838 = vsel %vm2830, %v2816, %v2834
  %v2839 = vsel %vm2831, %v2821, %v2835
  %v2840 = vsel %vm2832, %v2826, %v2836
  %s2841 = scalar_lea.vmem %s4, 32
  %v2842 = vld [vmem:[%s2841] sm:$0xff]
  %v2843 = vld [vmem:[%s2841 + $0x8] sm:$0xff]
  %v2844 = vld [vmem:[%s2841 + $0x10] sm:$0xff]
  %v2845 = vld [vmem:[%s2841 + $0x18] sm:$0xff]
  %s2846 = scalar_lea.vmem %s3, 128
  %v2847 = vld [vmem:[%s2846] sm:$0xff]
  %v2848 = vld [vmem:[%s2846 + $0x8] sm:$0xff]
  %v2849 = vld [vmem:[%s2846 + $0x10] sm:$0xff]
  %v2850 = vld [vmem:[%s2846 + $0x18] sm:$0xff]
  %2852 = vset.pattern.permute.xlu0 0
  %2853 = vperm.xlu0 %2852, %v2847
  %v2854 = vpop.permute.xlu0 %2853
  %2857 = vset.pattern.permute.xlu0 0
  %2858 = vperm.xlu0 %2857, %v2848
  %v2859 = vpop.permute.xlu0 %2858
  %2862 = vset.pattern.permute.xlu0 0
  %2863 = vperm.xlu0 %2862, %v2849
  %v2864 = vpop.permute.xlu0 %2863
  %2867 = vset.pattern.permute.xlu0 0
  %2868 = vperm.xlu0 %2867, %v2850
  %v2869 = vpop.permute.xlu0 %2868
  %v2872 = vsel %vm2731, %v2842, 0
  %v2875 = vsel %vm2731, %v2843, 0
  %v2878 = vsel %vm2731, %v2844, 0
  %v2881 = vsel %vm2731, %v2845, 0
  %2883 = vmatprep.subr.mxu0 0.0
  %2884 = vmatpush1.msra.mxu0 %v2837
  %2885 = vmatprep.subr.mxu0 0.0
  %2886 = vmatpush1.msra.mxu0 %v2838
  %2887 = vmatprep.subr.mxu0 0.0
  %2888 = vmatpush1.msra.mxu0 %v2839
  %2889 = vmatprep.subr.mxu0 0.0
  %2890 = vmatpush1.msra.mxu0 %v2840
  %2891 = vmatprep.subr.mxu0 0.0
  %2892 = vmatpush1.msra.mxu0 0.0
  %2893 = vmatprep.subr.mxu0 0.0
  %2894 = vmatpush1.msra.mxu0 0.0
  %2895 = vmatprep.subr.mxu0 0.0
  %2896 = vmatpush1.msra.mxu0 0.0
  %2897 = vmatprep.subr.mxu0 0.0
  %2898 = vmatpush1.msra.mxu0 0.0
  %2899 = vmatprep.subr.mxu0 0.0
  %2900 = vmatpush1.msra.mxu0 0.0
  %2901 = vmatprep.subr.mxu0 0.0
  %2902 = vmatpush1.msra.mxu0 0.0
  %2903 = vmatprep.subr.mxu0 0.0
  %2904 = vmatpush1.msra.mxu0 0.0
  %2905 = vmatprep.subr.mxu0 0.0
  %2906 = vmatpush1.msra.mxu0 0.0
  %2907 = vmatprep.subr.mxu0 0.0
  %2908 = vmatpush1.msra.mxu0 0.0
  %2909 = vmatprep.subr.mxu0 0.0
  %2910 = vmatpush1.msra.mxu0 0.0
  %2911 = vmatprep.subr.mxu0 0.0
  %2912 = vmatpush1.msra.mxu0 0.0
  %2913 = vmatprep.subr.mxu0 0.0
  %2914 = vmatpush1.msra.mxu0 0.0
  %2915 = vmatprep.subr.mxu0 0.0
  %2916 = vmatpush1.msra.mxu0 0.0
  %2917 = vmatprep.subr.mxu0 0.0
  %2918 = vmatpush1.msra.mxu0 0.0
  %2919 = vmatprep.subr.mxu0 0.0
  %2920 = vmatpush1.msra.mxu0 0.0
  %2921 = vmatprep.subr.mxu0 0.0
  %2922 = vmatpush1.msra.mxu0 0.0
  %2923 = vmatprep.subr.mxu0 0.0
  %2924 = vmatpush1.msra.mxu0 0.0
  %2925 = vmatprep.subr.mxu0 0.0
  %2926 = vmatpush1.msra.mxu0 0.0
  %2927 = vmatprep.subr.mxu0 0.0
  %2928 = vmatpush1.msra.mxu0 0.0
  %2929 = vmatprep.subr.mxu0 0.0
  %2930 = vmatpush1.msra.mxu0 0.0
  %2931 = vmatprep.subr.mxu0 0.0
  %2932 = vmatpush1.msra.mxu0 0.0
  %2933 = vmatprep.subr.mxu0 0.0
  %2934 = vmatpush1.msra.mxu0 0.0
  %2935 = vmatprep.subr.mxu0 0.0
  %2936 = vmatpush1.msra.mxu0 0.0
  %2937 = vmatprep.subr.mxu0 0.0
  %2938 = vmatpush1.msra.mxu0 0.0
  %2939 = vmatprep.subr.mxu0 0.0
  %2940 = vmatpush1.msra.mxu0 0.0
  %2941 = vmatprep.subr.mxu0 0.0
  %2942 = vmatpush1.msra.mxu0 0.0
  %2943 = vmatprep.subr.mxu0 0.0
  %2944 = vmatpush1.msra.mxu0 0.0
  %2945 = vmatprep.subr.mxu0 0.0
  %2946 = vmatpush1.msra.mxu0 0.0
  %2947 = vmatprep.mubr.f32.mxu0 0.0
  %2948 = vmatmul.mubr.f32.gmra.mrb[0].mxu0 %v2872
  %v2949 = vpop.f32.mrb[0].mxu0
  %v2950 = vadd.f32 %v2854, %v2949
  %v2951 = vpop.f32.mrb[0].mxu0
  %2952 = vmatprep.mubr.f32.mxu0 0.0
  %2953 = vmatmul.mubr.f32.gmra.mrb[0].mxu0 %v2875
  %v2954 = vpop.f32.mrb[0].mxu0
  %v2955 = vadd.f32 %v2859, %v2954
  %v2956 = vpop.f32.mrb[0].mxu0
  %2957 = vmatprep.mubr.f32.mxu0 0.0
  %2958 = vmatmul.mubr.f32.gmra.mrb[0].mxu0 %v2878
  %v2959 = vpop.f32.mrb[0].mxu0
  %v2960 = vadd.f32 %v2864, %v2959
  %v2961 = vpop.f32.mrb[0].mxu0
  %2962 = vmatprep.mubr.f32.mxu0 0.0
  %2963 = vmatmul.mubr.f32.gmra.mrb[0].mxu0 %v2881
  %v2964 = vpop.f32.mrb[0].mxu0
  %v2965 = vadd.f32 %v2869, %v2964
  %v2966 = vpop.f32.mrb[0].mxu0
  %2967 = vdwg.mxu0
  %vm2968 = vcmp.ge.f32.partialorder %v2950, 0.0
  %vm2969 = vcmp.ge.f32.partialorder %v2955, 0.0
  %vm2970 = vcmp.ge.f32.partialorder %v2960, 0.0
  %vm2971 = vcmp.ge.f32.partialorder %v2965, 0.0
  %v2972 = vmul.f32 %v2950, 0.01
  %v2973 = vmul.f32 %v2955, 0.01
  %v2974 = vmul.f32 %v2960, 0.01
  %v2975 = vmul.f32 %v2965, 0.01
  %v2976 = vsel %vm2968, %v2950, %v2972
  %v2977 = vsel %vm2969, %v2955, %v2973
  %v2978 = vsel %vm2970, %v2960, %v2974
  %v2979 = vsel %vm2971, %v2965, %v2975
  %v2980 = vld [vmem:[%s5] sm:$0x3]
  %s2981 = scalar_lea.vmem %s3, 160
  %v2982 = vld [vmem:[%s2981] sm:$0x3]
  %2984 = vset.pattern.permute.xlu0 0
  %2985 = vperm.xlu0 %2984, %v2982
  %v2986 = vpop.permute.xlu0 %2985
  %v2989 = vsel %vm2731, %v2980, 0
  %2991 = vmatprep.subr.mxu0 0.0
  %2992 = vmatpush1.msra.mxu0 %v2976
  %2993 = vmatprep.subr.mxu0 0.0
  %2994 = vmatpush1.msra.mxu0 %v2977
  %2995 = vmatprep.subr.mxu0 0.0
  %2996 = vmatpush1.msra.mxu0 %v2978
  %2997 = vmatprep.subr.mxu0 0.0
  %2998 = vmatpush1.msra.mxu0 %v2979
  %2999 = vmatprep.subr.mxu0 0.0
  %3000 = vmatpush1.msra.mxu0 0.0
  %3001 = vmatprep.subr.mxu0 0.0
  %3002 = vmatpush1.msra.mxu0 0.0
  %3003 = vmatprep.subr.mxu0 0.0
  %3004 = vmatpush1.msra.mxu0 0.0
  %3005 = vmatprep.subr.mxu0 0.0
  %3006 = vmatpush1.msra.mxu0 0.0
  %3007 = vmatprep.subr.mxu0 0.0
  %3008 = vmatpush1.msra.mxu0 0.0
  %3009 = vmatprep.subr.mxu0 0.0
  %3010 = vmatpush1.msra.mxu0 0.0
  %3011 = vmatprep.subr.mxu0 0.0
  %3012 = vmatpush1.msra.mxu0 0.0
  %3013 = vmatprep.subr.mxu0 0.0
  %3014 = vmatpush1.msra.mxu0 0.0
  %3015 = vmatprep.subr.mxu0 0.0
  %3016 = vmatpush1.msra.mxu0 0.0
  %3017 = vmatprep.subr.mxu0 0.0
  %3018 = vmatpush1.msra.mxu0 0.0
  %3019 = vmatprep.subr.mxu0 0.0
  %3020 = vmatpush1.msra.mxu0 0.0
  %3021 = vmatprep.subr.mxu0 0.0
  %3022 = vmatpush1.msra.mxu0 0.0
  %3023 = vmatprep.subr.mxu0 0.0
  %3024 = vmatpush1.msra.mxu0 0.0
  %3025 = vmatprep.subr.mxu0 0.0
  %3026 = vmatpush1.msra.mxu0 0.0
  %3027 = vmatprep.subr.mxu0 0.0
  %3028 = vmatpush1.msra.mxu0 0.0
  %3029 = vmatprep.subr.mxu0 0.0
  %3030 = vmatpush1.msra.mxu0 0.0
  %3031 = vmatprep.subr.mxu0 0.0
  %3032 = vmatpush1.msra.mxu0 0.0
  %3033 = vmatprep.subr.mxu0 0.0
  %3034 = vmatpush1.msra.mxu0 0.0
  %3035 = vmatprep.subr.mxu0 0.0
  %3036 = vmatpush1.msra.mxu0 0.0
  %3037 = vmatprep.subr.mxu0 0.0
  %3038 = vmatpush1.msra.mxu0 0.0
  %3039 = vmatprep.subr.mxu0 0.0
  %3040 = vmatpush1.msra.mxu0 0.0
  %3041 = vmatprep.subr.mxu0 0.0
  %3042 = vmatpush1.msra.mxu0 0.0
  %3043 = vmatprep.subr.mxu0 0.0
  %3044 = vmatpush1.msra.mxu0 0.0
  %3045 = vmatprep.subr.mxu0 0.0
  %3046 = vmatpush1.msra.mxu0 0.0
  %3047 = vmatprep.subr.mxu0 0.0
  %3048 = vmatpush1.msra.mxu0 0.0
  %3049 = vmatprep.subr.mxu0 0.0
  %3050 = vmatpush1.msra.mxu0 0.0
  %3051 = vmatprep.subr.mxu0 0.0
  %3052 = vmatpush1.msra.mxu0 0.0
  %3053 = vmatprep.subr.mxu0 0.0
  %3054 = vmatpush1.msra.mxu0 0.0
  %3055 = vmatprep.mubr.f32.mxu0 0.0
  %3056 = vmatmul.mubr.f32.gmra.mrb[0].mxu0 %v2989
  %v3057 = vpop.f32.mrb[0].mxu0
  %v3058 = vadd.f32 %v2986, %v3057
  %v3059 = vpop.f32.mrb[0].mxu0
  %3060 = vdwg.mxu0
  %vm3061 = vcmask 9216
  %3062 = vst.msk [vmem:[%s6] sm:$0x3] %vm3061, %v3058
  // Predicated region
  $region26: #{pose_net_forward.1} parent=0 // pred_check
    _
  $region27: #{pose_net_forward.1} parent=0 // pred_check_branch
    %3064 = sbr.rel (0) target = $region29
  $region28: #{pose_net_forward.1} parent=0 // pred_region
    _
  $region29: #{pose_net_forward.1} parent=0 // pred_fallthru
    _
  // Predicated region
  $region30: #{pose_net_forward.1} parent=0 // pred_check
    _
  $region31: #{pose_net_forward.1} parent=0 // pred_check_branch
    %3066 = sbr.rel (0) target = $region33
  $region32: #{pose_net_forward.1} parent=0 // pred_region
    _
  $region33: #{pose_net_forward.1} parent=0 // pred_fallthru
    _

</llo_original>
